<compile_context>
chip_gen: v7x
topology: tpu7x:2x2x1
jax: 0.10.0
libtpu: 0.0.40
codegen_flags: <defaults>
</compile_context>

<pallas_src>
import functools
import math

import jax
import jax.numpy as jnp
from jax.experimental import pallas as pl
from jax.experimental.pallas import tpu as pltpu

_K1 = 16  # conv1 contraction depth: 9 real taps zero-padded to 16 (clean bf16 sublane packing)


# ---------------------------------------------------------------------------
# Fused Pallas kernel: one batch element per grid cell
# ---------------------------------------------------------------------------
def _fused_forward_kernel(seed_ref, a1_ref, w1c_ref, b1c_ref, w2c_ref, b2c_ref,
                          w1f_ref, b1f_ref, w2f_ref, b2f_ref, o_ref, y1pad_ref, *,
                          hp, wp, c1, c2, dropout_p, training):
    """conv1+pool -> conv2+pool -> fc1 -> ReLU -> dropout -> fc2 -> L2 normalize.

    a1_ref    : (4*hp*wp, 16)  conv1 patch matrix; rows = [pool phase (4)] x [pooled pos (hp*wp)],
                               cols = conv tap 3*dh+dw (cols 9..15 are zero padding)
    w1c_ref   : (16, c1)       conv1 weight, tap-major (zero rows 9..15)
    w2c_ref   : (9, c1, c2)    conv2 weight, tap index = 3*dh + dw
    w1f_ref   : (hq*wq*c2, c1) fc1 weight, rows pre-permuted to HWC-flatten order
    w2f_ref   : (c1, feat)     fc2 weight (dropout 1/(1-p) rescale pre-folded when training)
    y1pad_ref : (hp+2, wp+2, c1) f32 VMEM scratch holding the zero-padded conv1 pooled output
    o_ref     : (1, feat)
    """
    rows = hp * wp
    hq, wq = hp // 2, wp // 2

    # ---- conv1: one MXU matmul, max over the 4 pooling phases, then bias + ReLU (exact) ----
    y = jnp.dot(a1_ref[...], w1c_ref[...], preferred_element_type=jnp.float32)   # (4*rows, c1)
    y1 = jnp.max(y.reshape(4, rows, c1), axis=0)                                  # (rows, c1)
    y1 = jnp.maximum(y1 + b1c_ref[...], 0.0)

    # ---- zero-padded copy so every conv2 tap is a unit-stride slice ----
    y1pad_ref[...] = jnp.zeros_like(y1pad_ref)
    y1pad_ref[1:hp + 1, 1:wp + 1, :] = y1.reshape(hp, wp, c1)

    # ---- conv2: per-tap MXU accumulation (9 x (rows,128)@(128,32)) into an f32 accumulator ----
    acc = jnp.zeros((rows, c2), jnp.float32)
    for dh in range(3):
        for dw in range(3):
            patch = y1pad_ref[dh:dh + hp, dw:dw + wp, :].reshape(rows, c1)
            acc = acc + jnp.dot(patch.astype(jnp.bfloat16), w2c_ref[3 * dh + dw],
                                preferred_element_type=jnp.float32)

    # ---- 2x2 maxpool (rows = i*wp + j, row-major), then bias + ReLU (exact reorder) ----
    a3 = acc.reshape(rows // 2, 2, c2)                       # pair adjacent columns j
    hpool = jnp.maximum(a3[:, 0, :], a3[:, 1, :])            # (hp*wq, c2)
    v4 = hpool.reshape(hq, 2, wq, c2)                        # pair adjacent rows i
    pooled = jnp.maximum(v4[:, 0, :, :], v4[:, 1, :, :])     # (hq, wq, c2)
    pooled = jnp.maximum(pooled + b2c_ref[...], 0.0)

    # ---- lane-dense HWC flatten (fc1 weight rows were permuted once to match this order) ----
    p2 = pooled.reshape(hq * wq, c2)
    flat = jnp.concatenate([p2[s:s + 1, :] for s in range(hq * wq)], axis=1)      # (1, hq*wq*c2)
    flat = flat.astype(jnp.bfloat16)

    # ---- head: fc1 -> ReLU -> dropout -> fc2 -> L2 normalize ----
    h = jnp.dot(flat, w1f_ref[...], preferred_element_type=jnp.float32) + b1f_ref[...]
    h = jnp.maximum(h, 0.0)
    if training and dropout_p > 0.0:
        # Inverted dropout via integer-threshold compare on raw PRNG bits; the 1/(1-p) rescale
        # is folded into fc2's weight in prepare_params.
        # TODO(synk): statistically equivalent to torch.nn.Dropout, not bitwise-identical RNG.
        pltpu.prng_seed(seed_ref[0] + pl.program_id(0))
        bits = pltpu.bitcast(pltpu.prng_random_bits(h.shape), jnp.uint32)
        thresh = jnp.uint32(min(int(dropout_p * 4294967296.0), 4294967295))
        h = jnp.where(bits >= thresh, h, 0.0)
    f = jnp.dot(h.astype(jnp.bfloat16), w2f_ref[...],
                preferred_element_type=jnp.float32) + b2f_ref[...]
    # F.normalize(dim=1): f / max(||f||, 1e-12) == f * rsqrt(max(||f||^2, 1e-24))
    sumsq = jnp.sum(f * f, axis=1, keepdims=True)
    o_ref[...] = (f * jax.lax.rsqrt(jnp.maximum(sumsq, 1e-24))).astype(o_ref.dtype)


# ---------------------------------------------------------------------------
# Glue (pure layout plumbing; fuses into one XLA op under jit)
# ---------------------------------------------------------------------------
def _conv1_patches(x_nchw):
    """Build conv1's (4*Hp*Wp, 16) patch matrix per batch element (~9 KB of layout work).

    Row order = [pooling phase (ph, pw)] x [pooled position (i, j) row-major]; column t is conv
    tap (dh, dw) with t = 3*dh + dw (columns 9..15 are zeros so K matches bf16 packing).
    Entry = xpad[2i + ph + dh, 2j + pw + dw] with xpad the 1-zero-padded input.
    """
    N, _, H, W = x_nchw.shape
    hp, wp = H // 2, W // 2
    xpad = jnp.pad(x_nchw[:, 0].astype(jnp.float32), ((0, 0), (1, 1), (1, 1)))
    blocks = []
    for ph in range(2):
        for pw in range(2):
            taps = [xpad[:, ph + dh: ph + dh + 2 * hp - 1: 2,
                            pw + dw: pw + dw + 2 * wp - 1: 2].reshape(N, hp * wp)
                    for dh in range(3) for dw in range(3)]
            taps += [jnp.zeros_like(taps[0])] * (_K1 - 9)
            blocks.append(jnp.stack(taps, axis=-1))                    # (N, hp*wp, 16)
    return jnp.concatenate(blocks, axis=1).astype(jnp.bfloat16)        # (N, 4*hp*wp, 16)


def prepare_params(params, *, in_hw=(16, 16), training=False, dropout_p=0.3):
    """One-time parameter prep (hoisted out of forward): dtype casts, conv-weight reshapes,
    fc1 row permutation (PyTorch CHW flatten -> kernel HWC flatten), dropout fold into fc2."""
    H, W = in_hw
    hq, wq = H // 4, W // 4
    c1 = params["conv1_b"].shape[0]
    c2 = params["conv2_b"].shape[0]
    w1c = jnp.pad(params["conv1_w"].reshape(9, c1), ((0, _K1 - 9), (0, 0)))
    w1f = params["fc1_w"].reshape(c2, hq, wq, -1).transpose(1, 2, 0, 3).reshape(hq * wq * c2, -1)
    w2f = params["fc2_w"]
    if training and dropout_p > 0.0:
        w2f = w2f / (1.0 - dropout_p)
    return dict(
        conv1_w=w1c.astype(jnp.bfloat16),                              # (16, 128)
        conv1_b=params["conv1_b"].reshape(1, -1).astype(jnp.float32),
        conv2_w=params["conv2_w"].reshape(9, c1, c2).astype(jnp.bfloat16),
        conv2_b=params["conv2_b"].reshape(1, -1).astype(jnp.float32),
        fc1_w=w1f.astype(jnp.bfloat16),                                # (hq*wq*c2, 128), HWC rows
        fc1_b=params["fc1_b"].reshape(1, -1).astype(jnp.float32),
        fc2_w=w2f.astype(jnp.bfloat16),                                # (128, feat)
        fc2_b=params["fc2_b"].reshape(1, -1).astype(jnp.float32),
    )


def custom_cnn_minidrop_forward(x_nchw, prep, seed, *, training=False, dropout_p=0.3):
    N, Cin, H, W = x_nchw.shape
    assert Cin == 1 and H % 4 == 0 and W % 4 == 0, (Cin, H, W)
    hp, wp = H // 2, W // 2
    hq, wq = H // 4, W // 4
    c1 = prep["conv1_b"].shape[-1]
    c2 = prep["conv2_b"].shape[-1]
    feat = prep["fc2_b"].shape[-1]
    rows4 = 4 * hp * wp

    a1 = _conv1_patches(x_nchw)                                        # (N, 4*hp*wp, 16) bf16

    kernel = functools.partial(_fused_forward_kernel, hp=hp, wp=wp, c1=c1, c2=c2,
                               dropout_p=dropout_p, training=training)
    out = pl.pallas_call(
        kernel,
        out_shape=jax.ShapeDtypeStruct((N, 1, feat), jnp.float32),
        grid=(N,),
        in_specs=[
            pl.BlockSpec(memory_space=pltpu.MemorySpace.SMEM),          # dropout seed (scalar)
            pl.BlockSpec((None, rows4, _K1), lambda n: (n, 0, 0)),      # conv1 patch matrix
            pl.BlockSpec((_K1, c1), lambda n: (0, 0)),                  # conv1 weight
            pl.BlockSpec((1, c1), lambda n: (0, 0)),                    # conv1 bias
            pl.BlockSpec((9, c1, c2), lambda n: (0, 0, 0)),             # conv2 weight
            pl.BlockSpec((1, c2), lambda n: (0, 0)),                    # conv2 bias
            pl.BlockSpec((hq * wq * c2, c1), lambda n: (0, 0)),         # fc1 weight (permuted)
            pl.BlockSpec((1, c1), lambda n: (0, 0)),                    # fc1 bias
            pl.BlockSpec((c1, feat), lambda n: (0, 0)),                 # fc2 weight
            pl.BlockSpec((1, feat), lambda n: (0, 0)),                  # fc2 bias
        ],
        out_specs=pl.BlockSpec((None, 1, feat), lambda n: (n, 0, 0)),
        scratch_shapes=[pltpu.VMEM((hp + 2, wp + 2, c1), jnp.float32)],
        compiler_params=pltpu.CompilerParams(dimension_semantics=("parallel",)),
    )(seed, a1, prep["conv1_w"], prep["conv1_b"], prep["conv2_w"], prep["conv2_b"],
      prep["fc1_w"], prep["fc1_b"], prep["fc2_w"], prep["fc2_b"])
    return out.reshape(N, feat)


forward = jax.jit(custom_cnn_minidrop_forward, static_argnames=("training", "dropout_p"))


# ---------------------------------------------------------------------------
# Model parameters + pure-XLA reference
# ---------------------------------------------------------------------------
def init_params(key, *, in_hw=(16, 16), feat_dim=64):
    H, W = in_hw
    flatten_dim = 32 * (H // 4) * (W // 4)
    ks = jax.random.split(key, 8)

    def u(k, shape, fan_in):
        bound = 1.0 / math.sqrt(fan_in)
        return jax.random.uniform(k, shape, jnp.float32, -bound, bound)

    return dict(
        conv1_w=u(ks[0], (3, 3, 1, 128), 9 * 1),           # HWIO
        conv1_b=u(ks[1], (128,), 9 * 1),
        conv2_w=u(ks[2], (3, 3, 128, 32), 9 * 128),
        conv2_b=u(ks[3], (32,), 9 * 128),
        fc1_w=u(ks[4], (flatten_dim, 128), flatten_dim),   # rows in PyTorch CHW flatten order
        fc1_b=u(ks[5], (128,), flatten_dim),
        fc2_w=u(ks[6], (128, feat_dim), 128),
        fc2_b=u(ks[7], (feat_dim,), 128),
    )


def _reference_forward(x_nchw, params):
    """Pure-XLA f32 reference mirroring the PyTorch module (eval mode)."""
    def conv_block(x, w_hwio, b):
        y = jax.lax.conv_general_dilated(
            x, jnp.transpose(w_hwio, (3, 2, 0, 1)), (1, 1), ((1, 1), (1, 1)),
            dimension_numbers=("NCHW", "OIHW", "NCHW"))
        y = jnp.maximum(y + b[None, :, None, None], 0.0)
        return jax.lax.reduce_window(y, -jnp.inf, jax.lax.max, (1, 1, 2, 2), (1, 1, 2, 2), "VALID")

    x = conv_block(x_nchw.astype(jnp.float32), params["conv1_w"], params["conv1_b"])
    x = conv_block(x, params["conv2_w"], params["conv2_b"])
    x = x.reshape(x.shape[0], -1)
    h = jnp.maximum(x @ params["fc1_w"] + params["fc1_b"], 0.0)
    f = h @ params["fc2_w"] + params["fc2_b"]
    n = jnp.sqrt(jnp.sum(f * f, axis=1, keepdims=True))
    return f / jnp.maximum(n, 1e-12)


if __name__ == "__main__":
    key = jax.random.PRNGKey(0)
    k_x, k_p = jax.random.split(key)

    N, H, W = 2, 16, 16
    x = jax.random.normal(k_x, (N, 1, H, W), jnp.float32)          # NCHW, like the PyTorch module
    params = init_params(k_p, in_hw=(H, W), feat_dim=64)
    prep = prepare_params(params, in_hw=(H, W), training=False)    # one-time param prep
    seed = jnp.zeros((1,), jnp.int32)

    feat = forward(x, prep, seed, training=False)                  # eval-mode forward
    feat = jax.block_until_ready(feat)

    assert feat.shape == (N, 64), feat.shape
    norms = jnp.linalg.norm(feat, axis=1)
    assert bool(jnp.all(jnp.abs(norms - 1.0) < 3e-3)), norms

    ref = _reference_forward(x, params)
    err = float(jnp.max(jnp.abs(feat - ref)))
    assert err < 5e-2, err        # bf16 matmul path vs f32 reference

    print("KERNEL_OK")
</pallas_src>

<mosaic_0001>
module attributes {stable_mosaic.version = 11 : i64} {
  func.func @_fused_forward_kernel(%arg0: i32, %arg1: memref<1xi32, #tpu.memory_space<smem>>, %arg2: memref<1x256x16xbf16, #tpu.memory_space<vmem>>, %arg3: memref<16x128xbf16, #tpu.memory_space<vmem>>, %arg4: memref<1x128xf32, #tpu.memory_space<vmem>>, %arg5: memref<9x128x32xbf16, #tpu.memory_space<vmem>>, %arg6: memref<1x32xf32, #tpu.memory_space<vmem>>, %arg7: memref<512x128xbf16, #tpu.memory_space<vmem>>, %arg8: memref<1x128xf32, #tpu.memory_space<vmem>>, %arg9: memref<128x64xbf16, #tpu.memory_space<vmem>>, %arg10: memref<1x64xf32, #tpu.memory_space<vmem>>, %arg11: memref<1x1x64xf32, #tpu.memory_space<vmem>>, %arg12: memref<10x10x128xf32, #tpu.memory_space<vmem>>) attributes {dimension_semantics = [#tpu.dimension_semantics<parallel>], iteration_bounds = array<i64: 2>, scalar_prefetch = 0 : i64, scratch_operands = 1 : i64, tpu.core_type = #tpu.core_type<tc>, window_params = [{transform_indices = @transform_0, window_bounds = array<i64: 1>}, {transform_indices = @transform_1, window_bounds = array<i64: 1, 256, 16>}, {pipeline_mode = #tpu.pipeline_mode<synchronous>, transform_indices = @transform_2, window_bounds = array<i64: 16, 128>}, {pipeline_mode = #tpu.pipeline_mode<synchronous>, transform_indices = @transform_3, window_bounds = array<i64: 1, 128>}, {pipeline_mode = #tpu.pipeline_mode<synchronous>, transform_indices = @transform_4, window_bounds = array<i64: 9, 128, 32>}, {pipeline_mode = #tpu.pipeline_mode<synchronous>, transform_indices = @transform_5, window_bounds = array<i64: 1, 32>}, {pipeline_mode = #tpu.pipeline_mode<synchronous>, transform_indices = @transform_6, window_bounds = array<i64: 512, 128>}, {pipeline_mode = #tpu.pipeline_mode<synchronous>, transform_indices = @transform_7, window_bounds = array<i64: 1, 128>}, {pipeline_mode = #tpu.pipeline_mode<synchronous>, transform_indices = @transform_8, window_bounds = array<i64: 128, 64>}, {pipeline_mode = #tpu.pipeline_mode<synchronous>, transform_indices = @transform_9, window_bounds = array<i64: 1, 64>}, {transform_indices = @transform_10, window_bounds = array<i64: 1, 1, 64>}]} {
    %c0 = arith.constant 0 : index
    %c0_0 = arith.constant 0 : index
    %c0_1 = arith.constant 0 : index
    %0 = vector.load %arg2[%c0, %c0_0, %c0_1] : memref<1x256x16xbf16, #tpu.memory_space<vmem>>, vector<1x256x16xbf16>
    %1 = vector.shape_cast %0 : vector<1x256x16xbf16> to vector<256x16xbf16>
    %c0_2 = arith.constant 0 : index
    %c0_3 = arith.constant 0 : index
    %2 = vector.load %arg3[%c0_2, %c0_3] : memref<16x128xbf16, #tpu.memory_space<vmem>>, vector<16x128xbf16>
    %cst = arith.constant dense<0.000000e+00> : vector<256x128xf32>
    %3 = tpu.matmul %1, %2, %cst {dimension_numbers = #tpu.dot_dimension_numbers<[1], [0], [0], [1], [0, 0, 1, 1], [], []>} : vector<256x16xbf16>, vector<16x128xbf16>, vector<256x128xf32> -> vector<256x128xf32>
    %4 = vector.shape_cast %3 : vector<256x128xf32> to vector<4x64x128xf32>
    %cst_4 = arith.constant dense<0xFF800000> : vector<64x128xf32>
    %5 = vector.multi_reduction <maximumf>, %4, %cst_4 [0] : vector<4x64x128xf32> to vector<64x128xf32>
    %c0_5 = arith.constant 0 : index
    %c0_6 = arith.constant 0 : index
    %6 = vector.load %arg4[%c0_5, %c0_6] : memref<1x128xf32, #tpu.memory_space<vmem>>, vector<1x128xf32>
    %7 = vector.broadcast %6 : vector<1x128xf32> to vector<64x128xf32>
    %8 = arith.addf %5, %7 : vector<64x128xf32>
    %cst_7 = arith.constant 0.000000e+00 : f32
    %9 = vector.broadcast %cst_7 : f32 to vector<64x128xf32>
    %10 = arith.maximumf %8, %9 : vector<64x128xf32>
    %cst_8 = arith.constant 0.000000e+00 : f32
    %11 = vector.broadcast %cst_8 : f32 to vector<10x10x128xf32>
    %c0_9 = arith.constant 0 : index
    %c0_10 = arith.constant 0 : index
    %c0_11 = arith.constant 0 : index
    %12 = vector.load %arg12[%c0_9, %c0_10, %c0_11] : memref<10x10x128xf32, #tpu.memory_space<vmem>>, vector<10x10x128xf32>
    tpu.vector_store %arg12[%c0_9, %c0_10, %c0_11], %11 {strides = array<i32>} : memref<10x10x128xf32, #tpu.memory_space<vmem>>, vector<10x10x128xf32>,
    %13 = vector.shape_cast %10 : vector<64x128xf32> to vector<8x8x128xf32>
    %c1 = arith.constant 1 : index
    %c1_12 = arith.constant 1 : index
    %c0_13 = arith.constant 0 : index
    %14 = vector.load %arg12[%c1, %c1_12, %c0_13] : memref<10x10x128xf32, #tpu.memory_space<vmem>>, vector<8x8x128xf32>
    tpu.vector_store %arg12[%c1, %c1_12, %c0_13], %13 {strides = array<i32>} : memref<10x10x128xf32, #tpu.memory_space<vmem>>, vector<8x8x128xf32>,
    %cst_14 = arith.constant 0.000000e+00 : f32
    %15 = vector.broadcast %cst_14 : f32 to vector<64x32xf32>
    %c0_15 = arith.constant 0 : index
    %c0_16 = arith.constant 0 : index
    %c0_17 = arith.constant 0 : index
    %16 = vector.load %arg12[%c0_15, %c0_16, %c0_17] : memref<10x10x128xf32, #tpu.memory_space<vmem>>, vector<8x8x128xf32>
    %17 = vector.shape_cast %16 : vector<8x8x128xf32> to vector<64x128xf32>
    %18 = arith.truncf %17 : vector<64x128xf32> to vector<64x128xbf16>
    %c0_18 = arith.constant 0 : index
    %c0_19 = arith.constant 0 : index
    %c0_20 = arith.constant 0 : index
    %19 = vector.load %arg5[%c0_18, %c0_19, %c0_20] : memref<9x128x32xbf16, #tpu.memory_space<vmem>>, vector<1x128x32xbf16>
    %20 = vector.shape_cast %19 : vector<1x128x32xbf16> to vector<128x32xbf16>
    %cst_21 = arith.constant dense<0.000000e+00> : vector<64x32xf32>
    %21 = tpu.matmul %18, %20, %cst_21 {dimension_numbers = #tpu.dot_dimension_numbers<[1], [0], [0], [1], [0, 0, 1, 1], [], []>} : vector<64x128xbf16>, vector<128x32xbf16>, vector<64x32xf32> -> vector<64x32xf32>
    %22 = arith.addf %15, %21 : vector<64x32xf32>
    %c0_22 = arith.constant 0 : index
    %c1_23 = arith.constant 1 : index
    %c0_24 = arith.constant 0 : index
    %23 = vector.load %arg12[%c0_22, %c1_23, %c0_24] : memref<10x10x128xf32, #tpu.memory_space<vmem>>, vector<8x8x128xf32>
    %24 = vector.shape_cast %23 : vector<8x8x128xf32> to vector<64x128xf32>
    %25 = arith.truncf %24 : vector<64x128xf32> to vector<64x128xbf16>
    %c1_25 = arith.constant 1 : index
    %c0_26 = arith.constant 0 : index
    %c0_27 = arith.constant 0 : index
    %26 = vector.load %arg5[%c1_25, %c0_26, %c0_27] : memref<9x128x32xbf16, #tpu.memory_space<vmem>>, vector<1x128x32xbf16>
    %27 = vector.shape_cast %26 : vector<1x128x32xbf16> to vector<128x32xbf16>
    %cst_28 = arith.constant dense<0.000000e+00> : vector<64x32xf32>
    %28 = tpu.matmul %25, %27, %cst_28 {dimension_numbers = #tpu.dot_dimension_numbers<[1], [0], [0], [1], [0, 0, 1, 1], [], []>} : vector<64x128xbf16>, vector<128x32xbf16>, vector<64x32xf32> -> vector<64x32xf32>
    %29 = arith.addf %22, %28 : vector<64x32xf32>
    %c0_29 = arith.constant 0 : index
    %c2 = arith.constant 2 : index
    %c0_30 = arith.constant 0 : index
    %30 = vector.load %arg12[%c0_29, %c2, %c0_30] : memref<10x10x128xf32, #tpu.memory_space<vmem>>, vector<8x8x128xf32>
    %31 = vector.shape_cast %30 : vector<8x8x128xf32> to vector<64x128xf32>
    %32 = arith.truncf %31 : vector<64x128xf32> to vector<64x128xbf16>
    %c2_31 = arith.constant 2 : index
    %c0_32 = arith.constant 0 : index
    %c0_33 = arith.constant 0 : index
    %33 = vector.load %arg5[%c2_31, %c0_32, %c0_33] : memref<9x128x32xbf16, #tpu.memory_space<vmem>>, vector<1x128x32xbf16>
    %34 = vector.shape_cast %33 : vector<1x128x32xbf16> to vector<128x32xbf16>
    %cst_34 = arith.constant dense<0.000000e+00> : vector<64x32xf32>
    %35 = tpu.matmul %32, %34, %cst_34 {dimension_numbers = #tpu.dot_dimension_numbers<[1], [0], [0], [1], [0, 0, 1, 1], [], []>} : vector<64x128xbf16>, vector<128x32xbf16>, vector<64x32xf32> -> vector<64x32xf32>
    %36 = arith.addf %29, %35 : vector<64x32xf32>
    %c1_35 = arith.constant 1 : index
    %c0_36 = arith.constant 0 : index
    %c0_37 = arith.constant 0 : index
    %37 = vector.load %arg12[%c1_35, %c0_36, %c0_37] : memref<10x10x128xf32, #tpu.memory_space<vmem>>, vector<8x8x128xf32>
    %38 = vector.shape_cast %37 : vector<8x8x128xf32> to vector<64x128xf32>
    %39 = arith.truncf %38 : vector<64x128xf32> to vector<64x128xbf16>
    %c3 = arith.constant 3 : index
    %c0_38 = arith.constant 0 : index
    %c0_39 = arith.constant 0 : index
    %40 = vector.load %arg5[%c3, %c0_38, %c0_39] : memref<9x128x32xbf16, #tpu.memory_space<vmem>>, vector<1x128x32xbf16>
    %41 = vector.shape_cast %40 : vector<1x128x32xbf16> to vector<128x32xbf16>
    %cst_40 = arith.constant dense<0.000000e+00> : vector<64x32xf32>
    %42 = tpu.matmul %39, %41, %cst_40 {dimension_numbers = #tpu.dot_dimension_numbers<[1], [0], [0], [1], [0, 0, 1, 1], [], []>} : vector<64x128xbf16>, vector<128x32xbf16>, vector<64x32xf32> -> vector<64x32xf32>
    %43 = arith.addf %36, %42 : vector<64x32xf32>
    %c1_41 = arith.constant 1 : index
    %c1_42 = arith.constant 1 : index
    %c0_43 = arith.constant 0 : index
    %44 = vector.load %arg12[%c1_41, %c1_42, %c0_43] : memref<10x10x128xf32, #tpu.memory_space<vmem>>, vector<8x8x128xf32>
    %45 = vector.shape_cast %44 : vector<8x8x128xf32> to vector<64x128xf32>
    %46 = arith.truncf %45 : vector<64x128xf32> to vector<64x128xbf16>
    %c4 = arith.constant 4 : index
    %c0_44 = arith.constant 0 : index
    %c0_45 = arith.constant 0 : index
    %47 = vector.load %arg5[%c4, %c0_44, %c0_45] : memref<9x128x32xbf16, #tpu.memory_space<vmem>>, vector<1x128x32xbf16>
    %48 = vector.shape_cast %47 : vector<1x128x32xbf16> to vector<128x32xbf16>
    %cst_46 = arith.constant dense<0.000000e+00> : vector<64x32xf32>
    %49 = tpu.matmul %46, %48, %cst_46 {dimension_numbers = #tpu.dot_dimension_numbers<[1], [0], [0], [1], [0, 0, 1, 1], [], []>} : vector<64x128xbf16>, vector<128x32xbf16>, vector<64x32xf32> -> vector<64x32xf32>
    %50 = arith.addf %43, %49 : vector<64x32xf32>
    %c1_47 = arith.constant 1 : index
    %c2_48 = arith.constant 2 : index
    %c0_49 = arith.constant 0 : index
    %51 = vector.load %arg12[%c1_47, %c2_48, %c0_49] : memref<10x10x128xf32, #tpu.memory_space<vmem>>, vector<8x8x128xf32>
    %52 = vector.shape_cast %51 : vector<8x8x128xf32> to vector<64x128xf32>
    %53 = arith.truncf %52 : vector<64x128xf32> to vector<64x128xbf16>
    %c5 = arith.constant 5 : index
    %c0_50 = arith.constant 0 : index
    %c0_51 = arith.constant 0 : index
    %54 = vector.load %arg5[%c5, %c0_50, %c0_51] : memref<9x128x32xbf16, #tpu.memory_space<vmem>>, vector<1x128x32xbf16>
    %55 = vector.shape_cast %54 : vector<1x128x32xbf16> to vector<128x32xbf16>
    %cst_52 = arith.constant dense<0.000000e+00> : vector<64x32xf32>
    %56 = tpu.matmul %53, %55, %cst_52 {dimension_numbers = #tpu.dot_dimension_numbers<[1], [0], [0], [1], [0, 0, 1, 1], [], []>} : vector<64x128xbf16>, vector<128x32xbf16>, vector<64x32xf32> -> vector<64x32xf32>
    %57 = arith.addf %50, %56 : vector<64x32xf32>
    %c2_53 = arith.constant 2 : index
    %c0_54 = arith.constant 0 : index
    %c0_55 = arith.constant 0 : index
    %58 = vector.load %arg12[%c2_53, %c0_54, %c0_55] : memref<10x10x128xf32, #tpu.memory_space<vmem>>, vector<8x8x128xf32>
    %59 = vector.shape_cast %58 : vector<8x8x128xf32> to vector<64x128xf32>
    %60 = arith.truncf %59 : vector<64x128xf32> to vector<64x128xbf16>
    %c6 = arith.constant 6 : index
    %c0_56 = arith.constant 0 : index
    %c0_57 = arith.constant 0 : index
    %61 = vector.load %arg5[%c6, %c0_56, %c0_57] : memref<9x128x32xbf16, #tpu.memory_space<vmem>>, vector<1x128x32xbf16>
    %62 = vector.shape_cast %61 : vector<1x128x32xbf16> to vector<128x32xbf16>
    %cst_58 = arith.constant dense<0.000000e+00> : vector<64x32xf32>
    %63 = tpu.matmul %60, %62, %cst_58 {dimension_numbers = #tpu.dot_dimension_numbers<[1], [0], [0], [1], [0, 0, 1, 1], [], []>} : vector<64x128xbf16>, vector<128x32xbf16>, vector<64x32xf32> -> vector<64x32xf32>
    %64 = arith.addf %57, %63 : vector<64x32xf32>
    %c2_59 = arith.constant 2 : index
    %c1_60 = arith.constant 1 : index
    %c0_61 = arith.constant 0 : index
    %65 = vector.load %arg12[%c2_59, %c1_60, %c0_61] : memref<10x10x128xf32, #tpu.memory_space<vmem>>, vector<8x8x128xf32>
    %66 = vector.shape_cast %65 : vector<8x8x128xf32> to vector<64x128xf32>
    %67 = arith.truncf %66 : vector<64x128xf32> to vector<64x128xbf16>
    %c7 = arith.constant 7 : index
    %c0_62 = arith.constant 0 : index
    %c0_63 = arith.constant 0 : index
    %68 = vector.load %arg5[%c7, %c0_62, %c0_63] : memref<9x128x32xbf16, #tpu.memory_space<vmem>>, vector<1x128x32xbf16>
    %69 = vector.shape_cast %68 : vector<1x128x32xbf16> to vector<128x32xbf16>
    %cst_64 = arith.constant dense<0.000000e+00> : vector<64x32xf32>
    %70 = tpu.matmul %67, %69, %cst_64 {dimension_numbers = #tpu.dot_dimension_numbers<[1], [0], [0], [1], [0, 0, 1, 1], [], []>} : vector<64x128xbf16>, vector<128x32xbf16>, vector<64x32xf32> -> vector<64x32xf32>
    %71 = arith.addf %64, %70 : vector<64x32xf32>
    %c2_65 = arith.constant 2 : index
    %c2_66 = arith.constant 2 : index
    %c0_67 = arith.constant 0 : index
    %72 = vector.load %arg12[%c2_65, %c2_66, %c0_67] : memref<10x10x128xf32, #tpu.memory_space<vmem>>, vector<8x8x128xf32>
    %73 = vector.shape_cast %72 : vector<8x8x128xf32> to vector<64x128xf32>
    %74 = arith.truncf %73 : vector<64x128xf32> to vector<64x128xbf16>
    %c8 = arith.constant 8 : index
    %c0_68 = arith.constant 0 : index
    %c0_69 = arith.constant 0 : index
    %75 = vector.load %arg5[%c8, %c0_68, %c0_69] : memref<9x128x32xbf16, #tpu.memory_space<vmem>>, vector<1x128x32xbf16>
    %76 = vector.shape_cast %75 : vector<1x128x32xbf16> to vector<128x32xbf16>
    %cst_70 = arith.constant dense<0.000000e+00> : vector<64x32xf32>
    %77 = tpu.matmul %74, %76, %cst_70 {dimension_numbers = #tpu.dot_dimension_numbers<[1], [0], [0], [1], [0, 0, 1, 1], [], []>} : vector<64x128xbf16>, vector<128x32xbf16>, vector<64x32xf32> -> vector<64x32xf32>
    %78 = arith.addf %71, %77 : vector<64x32xf32>
    %79 = vector.shape_cast %78 : vector<64x32xf32> to vector<32x2x32xf32>
    %80 = vector.extract_strided_slice %79 {offsets = [0, 0, 0], sizes = [32, 1, 32], strides = [1, 1, 1]} : vector<32x2x32xf32> to vector<32x1x32xf32>
    %81 = vector.shape_cast %80 : vector<32x1x32xf32> to vector<32x32xf32>
    %82 = vector.extract_strided_slice %79 {offsets = [0, 1, 0], sizes = [32, 1, 32], strides = [1, 1, 1]} : vector<32x2x32xf32> to vector<32x1x32xf32>
    %83 = vector.shape_cast %82 : vector<32x1x32xf32> to vector<32x32xf32>
    %84 = arith.maximumf %81, %83 : vector<32x32xf32>
    %85 = vector.shape_cast %84 : vector<32x32xf32> to vector<4x2x4x32xf32>
    %86 = vector.extract_strided_slice %85 {offsets = [0, 0, 0, 0], sizes = [4, 1, 4, 32], strides = [1, 1, 1, 1]} : vector<4x2x4x32xf32> to vector<4x1x4x32xf32>
    %87 = vector.shape_cast %86 : vector<4x1x4x32xf32> to vector<4x4x32xf32>
    %88 = vector.extract_strided_slice %85 {offsets = [0, 1, 0, 0], sizes = [4, 1, 4, 32], strides = [1, 1, 1, 1]} : vector<4x2x4x32xf32> to vector<4x1x4x32xf32>
    %89 = vector.shape_cast %88 : vector<4x1x4x32xf32> to vector<4x4x32xf32>
    %90 = arith.maximumf %87, %89 : vector<4x4x32xf32>
    %c0_71 = arith.constant 0 : index
    %c0_72 = arith.constant 0 : index
    %91 = vector.load %arg6[%c0_71, %c0_72] : memref<1x32xf32, #tpu.memory_space<vmem>>, vector<1x32xf32>
    %92 = vector.shape_cast %91 : vector<1x32xf32> to vector<1x1x32xf32>
    %93 = vector.broadcast %92 : vector<1x1x32xf32> to vector<4x4x32xf32>
    %94 = arith.addf %90, %93 : vector<4x4x32xf32>
    %cst_73 = arith.constant 0.000000e+00 : f32
    %95 = vector.broadcast %cst_73 : f32 to vector<4x4x32xf32>
    %96 = arith.maximumf %94, %95 : vector<4x4x32xf32>
    %97 = vector.shape_cast %96 : vector<4x4x32xf32> to vector<16x32xf32>
    %98 = vector.extract_strided_slice %97 {offsets = [0, 0], sizes = [1, 32], strides = [1, 1]} : vector<16x32xf32> to vector<1x32xf32>
    %99 = vector.extract_strided_slice %97 {offsets = [1, 0], sizes = [1, 32], strides = [1, 1]} : vector<16x32xf32> to vector<1x32xf32>
    %100 = vector.extract_strided_slice %97 {offsets = [2, 0], sizes = [1, 32], strides = [1, 1]} : vector<16x32xf32> to vector<1x32xf32>
    %101 = vector.extract_strided_slice %97 {offsets = [3, 0], sizes = [1, 32], strides = [1, 1]} : vector<16x32xf32> to vector<1x32xf32>
    %102 = vector.extract_strided_slice %97 {offsets = [4, 0], sizes = [1, 32], strides = [1, 1]} : vector<16x32xf32> to vector<1x32xf32>
    %103 = vector.extract_strided_slice %97 {offsets = [5, 0], sizes = [1, 32], strides = [1, 1]} : vector<16x32xf32> to vector<1x32xf32>
    %104 = vector.extract_strided_slice %97 {offsets = [6, 0], sizes = [1, 32], strides = [1, 1]} : vector<16x32xf32> to vector<1x32xf32>
    %105 = vector.extract_strided_slice %97 {offsets = [7, 0], sizes = [1, 32], strides = [1, 1]} : vector<16x32xf32> to vector<1x32xf32>
    %106 = vector.extract_strided_slice %97 {offsets = [8, 0], sizes = [1, 32], strides = [1, 1]} : vector<16x32xf32> to vector<1x32xf32>
    %107 = vector.extract_strided_slice %97 {offsets = [9, 0], sizes = [1, 32], strides = [1, 1]} : vector<16x32xf32> to vector<1x32xf32>
    %108 = vector.extract_strided_slice %97 {offsets = [10, 0], sizes = [1, 32], strides = [1, 1]} : vector<16x32xf32> to vector<1x32xf32>
    %109 = vector.extract_strided_slice %97 {offsets = [11, 0], sizes = [1, 32], strides = [1, 1]} : vector<16x32xf32> to vector<1x32xf32>
    %110 = vector.extract_strided_slice %97 {offsets = [12, 0], sizes = [1, 32], strides = [1, 1]} : vector<16x32xf32> to vector<1x32xf32>
    %111 = vector.extract_strided_slice %97 {offsets = [13, 0], sizes = [1, 32], strides = [1, 1]} : vector<16x32xf32> to vector<1x32xf32>
    %112 = vector.extract_strided_slice %97 {offsets = [14, 0], sizes = [1, 32], strides = [1, 1]} : vector<16x32xf32> to vector<1x32xf32>
    %113 = vector.extract_strided_slice %97 {offsets = [15, 0], sizes = [1, 32], strides = [1, 1]} : vector<16x32xf32> to vector<1x32xf32>
    %114 = tpu.concatenate %98, %99, %100, %101, %102, %103, %104, %105, %106, %107, %108, %109, %110, %111, %112, %113 in 1 : vector<1x32xf32>, vector<1x32xf32>, vector<1x32xf32>, vector<1x32xf32>, vector<1x32xf32>, vector<1x32xf32>, vector<1x32xf32>, vector<1x32xf32>, vector<1x32xf32>, vector<1x32xf32>, vector<1x32xf32>, vector<1x32xf32>, vector<1x32xf32>, vector<1x32xf32>, vector<1x32xf32>, vector<1x32xf32> -> vector<1x512xf32>
    %115 = arith.truncf %114 : vector<1x512xf32> to vector<1x512xbf16>
    %c0_74 = arith.constant 0 : index
    %c0_75 = arith.constant 0 : index
    %116 = vector.load %arg7[%c0_74, %c0_75] : memref<512x128xbf16, #tpu.memory_space<vmem>>, vector<512x128xbf16>
    %cst_76 = arith.constant dense<0.000000e+00> : vector<1x128xf32>
    %117 = tpu.matmul %115, %116, %cst_76 {dimension_numbers = #tpu.dot_dimension_numbers<[1], [0], [0], [1], [0, 0, 1, 1], [], []>} : vector<1x512xbf16>, vector<512x128xbf16>, vector<1x128xf32> -> vector<1x128xf32>
    %c0_77 = arith.constant 0 : index
    %c0_78 = arith.constant 0 : index
    %118 = vector.load %arg8[%c0_77, %c0_78] : memref<1x128xf32, #tpu.memory_space<vmem>>, vector<1x128xf32>
    %119 = arith.addf %117, %118 : vector<1x128xf32>
    %cst_79 = arith.constant 0.000000e+00 : f32
    %120 = vector.broadcast %cst_79 : f32 to vector<1x128xf32>
    %121 = arith.maximumf %119, %120 : vector<1x128xf32>
    %122 = arith.truncf %121 : vector<1x128xf32> to vector<1x128xbf16>
    %c0_80 = arith.constant 0 : index
    %c0_81 = arith.constant 0 : index
    %123 = vector.load %arg9[%c0_80, %c0_81] : memref<128x64xbf16, #tpu.memory_space<vmem>>, vector<128x64xbf16>
    %cst_82 = arith.constant dense<0.000000e+00> : vector<1x64xf32>
    %124 = tpu.matmul %122, %123, %cst_82 {dimension_numbers = #tpu.dot_dimension_numbers<[1], [0], [0], [1], [0, 0, 1, 1], [], []>} : vector<1x128xbf16>, vector<128x64xbf16>, vector<1x64xf32> -> vector<1x64xf32>
    %c0_83 = arith.constant 0 : index
    %c0_84 = arith.constant 0 : index
    %125 = vector.load %arg10[%c0_83, %c0_84] : memref<1x64xf32, #tpu.memory_space<vmem>>, vector<1x64xf32>
    %126 = arith.addf %124, %125 : vector<1x64xf32>
    %127 = arith.mulf %126, %126 : vector<1x64xf32>
    %cst_85 = arith.constant dense<0.000000e+00> : vector<1xf32>
    %128 = vector.multi_reduction <add>, %127, %cst_85 [1] : vector<1x64xf32> to vector<1xf32>
    %129 = vector.shape_cast %128 : vector<1xf32> to vector<1x1xf32>
    %cst_86 = arith.constant 1.000000e-24 : f32
    %130 = vector.broadcast %cst_86 : f32 to vector<1x1xf32>
    %131 = arith.maximumf %129, %130 : vector<1x1xf32>
    %132 = math.rsqrt %131 : vector<1x1xf32>
    %133 = vector.broadcast %132 : vector<1x1xf32> to vector<1x64xf32>
    %134 = arith.mulf %126, %133 : vector<1x64xf32>
    %c0_87 = arith.constant 0 : index
    %c0_88 = arith.constant 0 : index
    %c0_89 = arith.constant 0 : index
    %135 = vector.load %arg11[%c0_87, %c0_88, %c0_89] : memref<1x1x64xf32, #tpu.memory_space<vmem>>, vector<1x1x64xf32>
    %136 = vector.shape_cast %135 : vector<1x1x64xf32> to vector<1x64xf32>
    %137 = vector.shape_cast %134 : vector<1x64xf32> to vector<1x1x64xf32>
    tpu.vector_store %arg11[%c0_87, %c0_88, %c0_89], %137 {strides = array<i32>} : memref<1x1x64xf32, #tpu.memory_space<vmem>>, vector<1x1x64xf32>,
    return
  }
  func.func @transform_0(%arg0: i32) -> i32 {
    %c0_i32 = arith.constant 0 : i32
    %c0_i32_0 = arith.constant 0 : i32
    return %c0_i32 : i32
  }
  func.func @transform_1(%arg0: i32) -> (i32, i32, i32) {
    %c0_i32 = arith.constant 0 : i32
    %c0_i32_0 = arith.constant 0 : i32
    %c0_i32_1 = arith.constant 0 : i32
    return %arg0, %c0_i32, %c0_i32_0 : i32, i32, i32
  }
  func.func @transform_2(%arg0: i32) -> (i32, i32) {
    %c0_i32 = arith.constant 0 : i32
    %c0_i32_0 = arith.constant 0 : i32
    %c0_i32_1 = arith.constant 0 : i32
    return %c0_i32, %c0_i32_0 : i32, i32
  }
  func.func @transform_3(%arg0: i32) -> (i32, i32) {
    %c0_i32 = arith.constant 0 : i32
    %c0_i32_0 = arith.constant 0 : i32
    %c0_i32_1 = arith.constant 0 : i32
    return %c0_i32, %c0_i32_0 : i32, i32
  }
  func.func @transform_4(%arg0: i32) -> (i32, i32, i32) {
    %c0_i32 = arith.constant 0 : i32
    %c0_i32_0 = arith.constant 0 : i32
    %c0_i32_1 = arith.constant 0 : i32
    %c0_i32_2 = arith.constant 0 : i32
    return %c0_i32, %c0_i32_0, %c0_i32_1 : i32, i32, i32
  }
  func.func @transform_5(%arg0: i32) -> (i32, i32) {
    %c0_i32 = arith.constant 0 : i32
    %c0_i32_0 = arith.constant 0 : i32
    %c0_i32_1 = arith.constant 0 : i32
    return %c0_i32, %c0_i32_0 : i32, i32
  }
  func.func @transform_6(%arg0: i32) -> (i32, i32) {
    %c0_i32 = arith.constant 0 : i32
    %c0_i32_0 = arith.constant 0 : i32
    %c0_i32_1 = arith.constant 0 : i32
    return %c0_i32, %c0_i32_0 : i32, i32
  }
  func.func @transform_7(%arg0: i32) -> (i32, i32) {
    %c0_i32 = arith.constant 0 : i32
    %c0_i32_0 = arith.constant 0 : i32
    %c0_i32_1 = arith.constant 0 : i32
    return %c0_i32, %c0_i32_0 : i32, i32
  }
  func.func @transform_8(%arg0: i32) -> (i32, i32) {
    %c0_i32 = arith.constant 0 : i32
    %c0_i32_0 = arith.constant 0 : i32
    %c0_i32_1 = arith.constant 0 : i32
    return %c0_i32, %c0_i32_0 : i32, i32
  }
  func.func @transform_9(%arg0: i32) -> (i32, i32) {
    %c0_i32 = arith.constant 0 : i32
    %c0_i32_0 = arith.constant 0 : i32
    %c0_i32_1 = arith.constant 0 : i32
    return %c0_i32, %c0_i32_0 : i32, i32
  }
  func.func @transform_10(%arg0: i32) -> (i32, i32, i32) {
    %c0_i32 = arith.constant 0 : i32
    %c0_i32_0 = arith.constant 0 : i32
    %c0_i32_1 = arith.constant 0 : i32
    return %arg0, %c0_i32, %c0_i32_0 : i32, i32, i32
  }
}

</mosaic_0001>

<llo_original>
// kernel: custom_cnn_minidrop_forward.1
$region0: #{custom_cnn_minidrop_forward.1}
  #allocation0 [shape = 'u32[]', space=smem, size = 0x4, offset = 0x4, fixed_abs, tag = 'smem constant byte address 0x4 - core index']
  #allocation1 [shape = 'u32[144,128]{1,0:T(1,128)}', space=vmem, size = 0x12000, scoped, tag = 'internal scratch']
  #allocation2 [shape = 'f32[10,10,128]{2,1,0:T(8,128)}', space=vmem, size = 0x14000, scoped, tag = 'scratch operand']
  #allocation3 [shape = 's32[1]{0:T(128)S(6)}', space=smem, size = 0x200, scoped, tag = 'scoped memory for custom_cnn_minidrop_forward.1']
  %s0 = inlined_call_operand.<no memory space> [shape: s32[1], index: 0, kind: input, shape index: {}]
  %s1 = inlined_call_operand.vmem [shape: bf16[2,256,16], index: 1, kind: input, shape index: {}]
  %s2 = inlined_call_operand.vmem [shape: bf16[16,128], index: 2, kind: input, shape index: {}]
  %s3 = inlined_call_operand.vmem [shape: f32[1,128], index: 3, kind: input, shape index: {}]
  %s4 = inlined_call_operand.vmem [shape: bf16[9,128,32], index: 4, kind: input, shape index: {}]
  %s5 = inlined_call_operand.vmem [shape: f32[1,32], index: 5, kind: input, shape index: {}]
  %s6 = inlined_call_operand.vmem [shape: bf16[512,128], index: 6, kind: input, shape index: {}]
  %s7 = inlined_call_operand.vmem [shape: f32[1,128], index: 7, kind: input, shape index: {}]
  %s8 = inlined_call_operand.vmem [shape: bf16[128,64], index: 8, kind: input, shape index: {}]
  %s9 = inlined_call_operand.vmem [shape: f32[1,64], index: 9, kind: input, shape index: {}]
  %s10 = inlined_call_operand.hbm [shape: f32[2,1,64], index: 10, kind: output, shape index: {}]
  %s11 = sld [smem:[#allocation0]]
  $region73: #{custom_cnn_minidrop_forward.1} parent=0
    _
  %s13 = ssub.s32 1, %s11
  %s14 = scalar_select 0, %s13, %s11
  %15 = sst [smem:[#allocation3]] %s0
  $region1: #{custom_cnn_minidrop_forward.1} parent=0
    #allocation4 [shape = 'u8[1024]{0}', space=vmem, size = 0x400, scoped, tag = 'output window, operand 0']
    #allocation5 [shape = 's32[2]{0}', space=sflag, size = 0x8, scoped, tag = 'scoped memory for custom_cnn_minidrop_forward.1']
    %16 = vsyncpa [#allocation5], 0
    %s17 = scalar_lea.sflag [#allocation5], 1
    %18 = vsyncpa %s17, 0
    loop: start=0, step=1, limit=4
    $region2: #{custom_cnn_minidrop_forward.1} parent=1 // loop_pre_header
      _
    $region3: #{custom_cnn_minidrop_forward.1} parent=1 // loop_header
      %s20 = sphi 0, %s24
      %p21 = scmp.ge.s32.totalorder %s20, 4
      %s28 = sphi 0, %s28
      %s30 = sphi 0, %s28
      %s31 = sphi 0, %s30
      %s45 = sphi 0, %s31
      %s51 = sphi 0, %s53
      %s54 = sphi 0, %s51
      %s55 = sphi 0, %s54
      %s71 = sphi 0, %s55
      %s75 = sphi 0, %s75
      %s77 = sphi 0, %s75
      %s78 = sphi 0, %s77
      %s92 = sphi 0, %s78
      %s96 = sphi 0, %s96
      %s98 = sphi 0, %s96
      %s99 = sphi 0, %s98
      %s113 = sphi 0, %s99
      %s117 = sphi 0, %s117
      %s119 = sphi 0, %s117
      %s120 = sphi 0, %s119
      %s134 = sphi 0, %s120
      %s138 = sphi 0, %s138
      %s140 = sphi 0, %s138
      %s141 = sphi 0, %s140
      %s155 = sphi 0, %s141
      %s159 = sphi 0, %s159
      %s161 = sphi 0, %s159
      %s162 = sphi 0, %s161
      %s176 = sphi 0, %s162
      %s180 = sphi 0, %s180
      %s182 = sphi 0, %s180
      %s183 = sphi 0, %s182
      %s197 = sphi 0, %s183
      %s201 = sphi 0, %s201
      %s203 = sphi 0, %s201
      %s204 = sphi 0, %s203
      %s218 = sphi 0, %s204
      %s222 = sphi 0, %s222
      %s224 = sphi 0, %s222
      %s225 = sphi 0, %s224
      %s239 = sphi 0, %s225
      %s245 = sphi 0, %s247
      %s248 = sphi 0, %s245
      %s249 = sphi 0, %s248
      %s265 = sphi 0, %s249
    $region4: #{custom_cnn_minidrop_forward.1} parent=1 // loop_header_branch
      %23 = sbr.rel (%p21) target = $region8
    $region5: #{custom_cnn_minidrop_forward.1} parent=1 // loop_body
      %s25 = ssub.s32 %s20, 1
      %s26 = ssub.s32 %s20, 2
      %s27 = sadd.s32 %s20, 1
      %s29 = sadd.s32 %s28, 1
      %p32 = scmp.eq.s32.totalorder %s20, 1
      %p33 = scmp.ne.s32.totalorder %s28, %s30
      %p34 = scmp.eq.s32.totalorder %s20, 0
      %p35 = por %p33, %p34
      %p36 = scmp.ne.s32.totalorder %s28, %s30
      %p37 = scmp.eq.s32.totalorder %s25, 1
      %p38 = por %p36, %p37
      %p39 = scmp.ne.s32.totalorder %s30, %s31
      %p40 = scmp.eq.s32.totalorder %s25, 0
      %p41 = por %p39, %p40
      %p42 = scmp.ne.s32.totalorder %s30, %s31
      %p43 = scmp.eq.s32.totalorder %s26, 1
      %p44 = por %p42, %p43
      %p46 = scmp.ne.s32.totalorder %s31, %s45
      %p47 = scmp.eq.s32.totalorder %s26, 0
      %p48 = por %p46, %p47
      %s49 = ssub.s32 %s20, %s27
      %p50 = scmp.eq.s32.totalorder %s49, 0
      %s52 = sadd.s32 %s51, 1
      %s53 = scalar_select %p50, %s51, %s52
      %p56 = pneg %p50
      %p57 = scmp.eq.s32.totalorder %s20, 1
      %p58 = por %p56, %p57
      %p59 = scmp.ne.s32.totalorder %s51, %s54
      %p60 = scmp.eq.s32.totalorder %s20, 0
      %p61 = por %p59, %p60
      %p62 = scmp.ne.s32.totalorder %s51, %s54
      %p63 = scmp.eq.s32.totalorder %s25, 1
      %p64 = por %p62, %p63
      %p65 = scmp.ne.s32.totalorder %s54, %s55
      %p66 = scmp.eq.s32.totalorder %s25, 0
      %p67 = por %p65, %p66
      %p68 = scmp.ne.s32.totalorder %s54, %s55
      %p69 = scmp.eq.s32.totalorder %s26, 1
      %p70 = por %p68, %p69
      %p72 = scmp.ne.s32.totalorder %s55, %s71
      %p73 = scmp.eq.s32.totalorder %s26, 0
      %p74 = por %p72, %p73
      %s76 = sadd.s32 %s75, 1
      %p79 = scmp.eq.s32.totalorder %s20, 1
      %p80 = scmp.ne.s32.totalorder %s75, %s77
      %p81 = scmp.eq.s32.totalorder %s20, 0
      %p82 = por %p80, %p81
      %p83 = scmp.ne.s32.totalorder %s75, %s77
      %p84 = scmp.eq.s32.totalorder %s25, 1
      %p85 = por %p83, %p84
      %p86 = scmp.ne.s32.totalorder %s77, %s78
      %p87 = scmp.eq.s32.totalorder %s25, 0
      %p88 = por %p86, %p87
      %p89 = scmp.ne.s32.totalorder %s77, %s78
      %p90 = scmp.eq.s32.totalorder %s26, 1
      %p91 = por %p89, %p90
      %p93 = scmp.ne.s32.totalorder %s78, %s92
      %p94 = scmp.eq.s32.totalorder %s26, 0
      %p95 = por %p93, %p94
      %s97 = sadd.s32 %s96, 1
      %p100 = scmp.eq.s32.totalorder %s20, 1
      %p101 = scmp.ne.s32.totalorder %s96, %s98
      %p102 = scmp.eq.s32.totalorder %s20, 0
      %p103 = por %p101, %p102
      %p104 = scmp.ne.s32.totalorder %s96, %s98
      %p105 = scmp.eq.s32.totalorder %s25, 1
      %p106 = por %p104, %p105
      %p107 = scmp.ne.s32.totalorder %s98, %s99
      %p108 = scmp.eq.s32.totalorder %s25, 0
      %p109 = por %p107, %p108
      %p110 = scmp.ne.s32.totalorder %s98, %s99
      %p111 = scmp.eq.s32.totalorder %s26, 1
      %p112 = por %p110, %p111
      %p114 = scmp.ne.s32.totalorder %s99, %s113
      %p115 = scmp.eq.s32.totalorder %s26, 0
      %p116 = por %p114, %p115
      %s118 = sadd.s32 %s117, 1
      %p121 = scmp.eq.s32.totalorder %s20, 1
      %p122 = scmp.ne.s32.totalorder %s117, %s119
      %p123 = scmp.eq.s32.totalorder %s20, 0
      %p124 = por %p122, %p123
      %p125 = scmp.ne.s32.totalorder %s117, %s119
      %p126 = scmp.eq.s32.totalorder %s25, 1
      %p127 = por %p125, %p126
      %p128 = scmp.ne.s32.totalorder %s119, %s120
      %p129 = scmp.eq.s32.totalorder %s25, 0
      %p130 = por %p128, %p129
      %p131 = scmp.ne.s32.totalorder %s119, %s120
      %p132 = scmp.eq.s32.totalorder %s26, 1
      %p133 = por %p131, %p132
      %p135 = scmp.ne.s32.totalorder %s120, %s134
      %p136 = scmp.eq.s32.totalorder %s26, 0
      %p137 = por %p135, %p136
      %s139 = sadd.s32 %s138, 1
      %p142 = scmp.eq.s32.totalorder %s20, 1
      %p143 = scmp.ne.s32.totalorder %s138, %s140
      %p144 = scmp.eq.s32.totalorder %s20, 0
      %p145 = por %p143, %p144
      %p146 = scmp.ne.s32.totalorder %s138, %s140
      %p147 = scmp.eq.s32.totalorder %s25, 1
      %p148 = por %p146, %p147
      %p149 = scmp.ne.s32.totalorder %s140, %s141
      %p150 = scmp.eq.s32.totalorder %s25, 0
      %p151 = por %p149, %p150
      %p152 = scmp.ne.s32.totalorder %s140, %s141
      %p153 = scmp.eq.s32.totalorder %s26, 1
      %p154 = por %p152, %p153
      %p156 = scmp.ne.s32.totalorder %s141, %s155
      %p157 = scmp.eq.s32.totalorder %s26, 0
      %p158 = por %p156, %p157
      %s160 = sadd.s32 %s159, 1
      %p163 = scmp.eq.s32.totalorder %s20, 1
      %p164 = scmp.ne.s32.totalorder %s159, %s161
      %p165 = scmp.eq.s32.totalorder %s20, 0
      %p166 = por %p164, %p165
      %p167 = scmp.ne.s32.totalorder %s159, %s161
      %p168 = scmp.eq.s32.totalorder %s25, 1
      %p169 = por %p167, %p168
      %p170 = scmp.ne.s32.totalorder %s161, %s162
      %p171 = scmp.eq.s32.totalorder %s25, 0
      %p172 = por %p170, %p171
      %p173 = scmp.ne.s32.totalorder %s161, %s162
      %p174 = scmp.eq.s32.totalorder %s26, 1
      %p175 = por %p173, %p174
      %p177 = scmp.ne.s32.totalorder %s162, %s176
      %p178 = scmp.eq.s32.totalorder %s26, 0
      %p179 = por %p177, %p178
      %s181 = sadd.s32 %s180, 1
      %p184 = scmp.eq.s32.totalorder %s20, 1
      %p185 = scmp.ne.s32.totalorder %s180, %s182
      %p186 = scmp.eq.s32.totalorder %s20, 0
      %p187 = por %p185, %p186
      %p188 = scmp.ne.s32.totalorder %s180, %s182
      %p189 = scmp.eq.s32.totalorder %s25, 1
      %p190 = por %p188, %p189
      %p191 = scmp.ne.s32.totalorder %s182, %s183
      %p192 = scmp.eq.s32.totalorder %s25, 0
      %p193 = por %p191, %p192
      %p194 = scmp.ne.s32.totalorder %s182, %s183
      %p195 = scmp.eq.s32.totalorder %s26, 1
      %p196 = por %p194, %p195
      %p198 = scmp.ne.s32.totalorder %s183, %s197
      %p199 = scmp.eq.s32.totalorder %s26, 0
      %p200 = por %p198, %p199
      %s202 = sadd.s32 %s201, 1
      %p205 = scmp.eq.s32.totalorder %s20, 1
      %p206 = scmp.ne.s32.totalorder %s201, %s203
      %p207 = scmp.eq.s32.totalorder %s20, 0
      %p208 = por %p206, %p207
      %p209 = scmp.ne.s32.totalorder %s201, %s203
      %p210 = scmp.eq.s32.totalorder %s25, 1
      %p211 = por %p209, %p210
      %p212 = scmp.ne.s32.totalorder %s203, %s204
      %p213 = scmp.eq.s32.totalorder %s25, 0
      %p214 = por %p212, %p213
      %p215 = scmp.ne.s32.totalorder %s203, %s204
      %p216 = scmp.eq.s32.totalorder %s26, 1
      %p217 = por %p215, %p216
      %p219 = scmp.ne.s32.totalorder %s204, %s218
      %p220 = scmp.eq.s32.totalorder %s26, 0
      %p221 = por %p219, %p220
      %s223 = sadd.s32 %s222, 1
      %p226 = scmp.eq.s32.totalorder %s20, 1
      %p227 = scmp.ne.s32.totalorder %s222, %s224
      %p228 = scmp.eq.s32.totalorder %s20, 0
      %p229 = por %p227, %p228
      %p230 = scmp.ne.s32.totalorder %s222, %s224
      %p231 = scmp.eq.s32.totalorder %s25, 1
      %p232 = por %p230, %p231
      %p233 = scmp.ne.s32.totalorder %s224, %s225
      %p234 = scmp.eq.s32.totalorder %s25, 0
      %p235 = por %p233, %p234
      %p236 = scmp.ne.s32.totalorder %s224, %s225
      %p237 = scmp.eq.s32.totalorder %s26, 1
      %p238 = por %p236, %p237
      %p240 = scmp.ne.s32.totalorder %s225, %s239
      %p241 = scmp.eq.s32.totalorder %s26, 0
      %p242 = por %p240, %p241
      %s243 = ssub.s32 %s20, %s27
      %p244 = scmp.eq.s32.totalorder %s243, 0
      %s246 = sadd.s32 %s245, 1
      %s247 = scalar_select %p244, %s245, %s246
      %p250 = pneg %p244
      %p251 = scmp.eq.s32.totalorder %s20, 1
      %p252 = por %p250, %p251
      %p253 = scmp.ne.s32.totalorder %s245, %s248
      %p254 = scmp.eq.s32.totalorder %s20, 0
      %p255 = por %p253, %p254
      %p256 = scmp.ne.s32.totalorder %s245, %s248
      %p257 = scmp.eq.s32.totalorder %s25, 1
      %p258 = por %p256, %p257
      %p259 = scmp.ne.s32.totalorder %s248, %s249
      %p260 = scmp.eq.s32.totalorder %s25, 0
      %p261 = por %p259, %p260
      %p262 = scmp.ne.s32.totalorder %s248, %s249
      %p263 = scmp.eq.s32.totalorder %s26, 1
      %p264 = por %p262, %p263
      %p266 = scmp.ne.s32.totalorder %s249, %s265
      %p267 = scmp.eq.s32.totalorder %s26, 0
      %p268 = por %p266, %p267
      %p269 = scmp.le.s32.totalorder 1, %s20
      %p270 = scmp.lt.s32.totalorder %s20, 3
      %p271 = pnand %p269, %p270
      %p272 = pneg %p271
      // Predicated region
      $region9: #{custom_cnn_minidrop_forward.1} parent=5 // pred_check
        _
      $region10: #{custom_cnn_minidrop_forward.1} parent=5 // pred_check_branch
        %274 = sbr.rel (%p271) target = $region12
      $region11: #{custom_cnn_minidrop_forward.1} parent=5 // pred_region
        %s275 = ssub.s32 %s20, 1
        // Predicated region
        $region13: #{custom_cnn_minidrop_forward.1} parent=11 // pred_check
          %p276 = pneg %p41
        $region14: #{custom_cnn_minidrop_forward.1} parent=11 // pred_check_branch
          %278 = sbr.rel (%p276) target = $region16
        $region15: #{custom_cnn_minidrop_forward.1} parent=11 // pred_region
          _
        $region16: #{custom_cnn_minidrop_forward.1} parent=11 // pred_fallthru
          _
        // Predicated region
        $region17: #{custom_cnn_minidrop_forward.1} parent=11 // pred_check
          %p279 = pneg %p88
        $region18: #{custom_cnn_minidrop_forward.1} parent=11 // pred_check_branch
          %281 = sbr.rel (%p279) target = $region20
        $region19: #{custom_cnn_minidrop_forward.1} parent=11 // pred_region
          _
        $region20: #{custom_cnn_minidrop_forward.1} parent=11 // pred_fallthru
          _
        // Predicated region
        $region21: #{custom_cnn_minidrop_forward.1} parent=11 // pred_check
          %p282 = pneg %p109
        $region22: #{custom_cnn_minidrop_forward.1} parent=11 // pred_check_branch
          %284 = sbr.rel (%p282) target = $region24
        $region23: #{custom_cnn_minidrop_forward.1} parent=11 // pred_region
          _
        $region24: #{custom_cnn_minidrop_forward.1} parent=11 // pred_fallthru
          _
        // Predicated region
        $region25: #{custom_cnn_minidrop_forward.1} parent=11 // pred_check
          %p285 = pneg %p130
        $region26: #{custom_cnn_minidrop_forward.1} parent=11 // pred_check_branch
          %287 = sbr.rel (%p285) target = $region28
        $region27: #{custom_cnn_minidrop_forward.1} parent=11 // pred_region
          _
        $region28: #{custom_cnn_minidrop_forward.1} parent=11 // pred_fallthru
          _
        // Predicated region
        $region29: #{custom_cnn_minidrop_forward.1} parent=11 // pred_check
          %p288 = pneg %p151
        $region30: #{custom_cnn_minidrop_forward.1} parent=11 // pred_check_branch
          %290 = sbr.rel (%p288) target = $region32
        $region31: #{custom_cnn_minidrop_forward.1} parent=11 // pred_region
          _
        $region32: #{custom_cnn_minidrop_forward.1} parent=11 // pred_fallthru
          _
        // Predicated region
        $region33: #{custom_cnn_minidrop_forward.1} parent=11 // pred_check
          %p291 = pneg %p172
        $region34: #{custom_cnn_minidrop_forward.1} parent=11 // pred_check_branch
          %293 = sbr.rel (%p291) target = $region36
        $region35: #{custom_cnn_minidrop_forward.1} parent=11 // pred_region
          _
        $region36: #{custom_cnn_minidrop_forward.1} parent=11 // pred_fallthru
          _
        // Predicated region
        $region37: #{custom_cnn_minidrop_forward.1} parent=11 // pred_check
          %p294 = pneg %p193
        $region38: #{custom_cnn_minidrop_forward.1} parent=11 // pred_check_branch
          %296 = sbr.rel (%p294) target = $region40
        $region39: #{custom_cnn_minidrop_forward.1} parent=11 // pred_region
          _
        $region40: #{custom_cnn_minidrop_forward.1} parent=11 // pred_fallthru
          _
        // Predicated region
        $region41: #{custom_cnn_minidrop_forward.1} parent=11 // pred_check
          %p297 = pneg %p214
        $region42: #{custom_cnn_minidrop_forward.1} parent=11 // pred_check_branch
          %299 = sbr.rel (%p297) target = $region44
        $region43: #{custom_cnn_minidrop_forward.1} parent=11 // pred_region
          _
        $region44: #{custom_cnn_minidrop_forward.1} parent=11 // pred_fallthru
          _
        // Predicated region
        $region45: #{custom_cnn_minidrop_forward.1} parent=11 // pred_check
          %p300 = pneg %p235
        $region46: #{custom_cnn_minidrop_forward.1} parent=11 // pred_check_branch
          %302 = sbr.rel (%p300) target = $region48
        $region47: #{custom_cnn_minidrop_forward.1} parent=11 // pred_region
          _
        $region48: #{custom_cnn_minidrop_forward.1} parent=11 // pred_fallthru
          _
      $region12: #{custom_cnn_minidrop_forward.1} parent=5 // pred_fallthru
        _
      %p303 = scmp.lt.s32.totalorder %s20, 2
      // Predicated region
      $region49: #{custom_cnn_minidrop_forward.1} parent=5 // pred_check
        %p304 = pneg %p303
      $region50: #{custom_cnn_minidrop_forward.1} parent=5 // pred_check_branch
        %306 = sbr.rel (%p304) target = $region52
      $region51: #{custom_cnn_minidrop_forward.1} parent=5 // pred_region
        // Predicated region
        $region53: #{custom_cnn_minidrop_forward.1} parent=51 // pred_check
          %p307 = pneg %p61
        $region54: #{custom_cnn_minidrop_forward.1} parent=51 // pred_check_branch
          %309 = sbr.rel (%p307) target = $region56
        $region55: #{custom_cnn_minidrop_forward.1} parent=51 // pred_region
          %p310 = scmp.lt.s32.totalorder %s20, 1
          %s311 = scalar_select %p310, %s20, 1
          %s312 = smul.addr %s311, 32
          %s313 = smul.addr %s312, 4
          %s314 = scalar_lea.vmem %s1, %s313
        $region56: #{custom_cnn_minidrop_forward.1} parent=51 // pred_fallthru
          _
      $region52: #{custom_cnn_minidrop_forward.1} parent=5 // pred_fallthru
        _
      %p315 = scmp.le.s32.totalorder 1, %s20
      %p316 = scmp.lt.s32.totalorder %s20, 3
      %p317 = pnand %p315, %p316
      %p318 = pneg %p317
      // Predicated region
      $region57: #{custom_cnn_minidrop_forward.1} parent=5 // pred_check
        _
      $region58: #{custom_cnn_minidrop_forward.1} parent=5 // pred_check_branch
        %320 = sbr.rel (%p317) target = $region60
      $region59: #{custom_cnn_minidrop_forward.1} parent=5 // pred_region
        %s321 = ssub.s32 %s20, 1
        %p322 = pneg %p41
        %p323 = pneg %p38
        %p324 = scmp.lt.s32.totalorder %s25, 1
        %s325 = scalar_select %p324, %s25, 1
        %s326 = smul.addr %s325, 32
        %s327 = smul.addr %s326, 4
        %s328 = scalar_lea.vmem %s1, %s327
        %p329 = pneg %p67
        %p330 = pneg %p64
        %p331 = pneg %p88
        %p332 = pneg %p85
        %p333 = pneg %p109
        %p334 = pneg %p106
        %p335 = pneg %p130
        %p336 = pneg %p127
        %p337 = pneg %p151
        %p338 = pneg %p148
        %p339 = pneg %p172
        %p340 = pneg %p169
        %p341 = pneg %p193
        %p342 = pneg %p190
        %p343 = pneg %p214
        %p344 = pneg %p211
        %p345 = pneg %p235
        %p346 = pneg %p232
        %p347 = pneg %p261
        %p348 = pneg %p258
        %s349 = sand.u32 %s248, 1
        %s350 = scalar_lea.sflag [#allocation5], %s349
        %s351 = sand.u32 %s248, 1
        %s352 = scalar_lea.vmem [#allocation4], %s351
        %p353 = scmp.lt.s32.totalorder %s25, 1
        %s354 = scalar_select %p353, %s25, 1
        %s355 = smul.addr %s354, 32
        %s356 = smul.addr %s355, 4
        %s357 = scalar_lea.vmem %s1, %s356
        %v359 = vld [vmem:[%s357] sm:$0xf]
        %v360 = vld [vmem:[%s357 + $0x4] sm:$0xf]
        %v361 = vld [vmem:[%s357 + $0x8] sm:$0xf]
        %v362 = vld [vmem:[%s357 + $0xc] sm:$0xf]
        %v363 = vld [vmem:[%s357 + $0x10] sm:$0xf]
        %v364 = vld [vmem:[%s357 + $0x14] sm:$0xf]
        %v365 = vld [vmem:[%s357 + $0x18] sm:$0xf]
        %v366 = vld [vmem:[%s357 + $0x1c] sm:$0xf]
        %v367 = vld [vmem:[%s357 + $0x20] sm:$0xf]
        %v368 = vld [vmem:[%s357 + $0x24] sm:$0xf]
        %v369 = vld [vmem:[%s357 + $0x28] sm:$0xf]
        %v370 = vld [vmem:[%s357 + $0x2c] sm:$0xf]
        %v371 = vld [vmem:[%s357 + $0x30] sm:$0xf]
        %v372 = vld [vmem:[%s357 + $0x34] sm:$0xf]
        %v373 = vld [vmem:[%s357 + $0x38] sm:$0xf]
        %v374 = vld [vmem:[%s357 + $0x3c] sm:$0xf]
        %v375 = vld [vmem:[%s357 + $0x40] sm:$0xf]
        %v376 = vld [vmem:[%s357 + $0x44] sm:$0xf]
        %v377 = vld [vmem:[%s357 + $0x48] sm:$0xf]
        %v378 = vld [vmem:[%s357 + $0x4c] sm:$0xf]
        %v379 = vld [vmem:[%s357 + $0x50] sm:$0xf]
        %v380 = vld [vmem:[%s357 + $0x54] sm:$0xf]
        %v381 = vld [vmem:[%s357 + $0x58] sm:$0xf]
        %v382 = vld [vmem:[%s357 + $0x5c] sm:$0xf]
        %v383 = vld [vmem:[%s357 + $0x60] sm:$0xf]
        %v384 = vld [vmem:[%s357 + $0x64] sm:$0xf]
        %v385 = vld [vmem:[%s357 + $0x68] sm:$0xf]
        %v386 = vld [vmem:[%s357 + $0x6c] sm:$0xf]
        %v387 = vld [vmem:[%s357 + $0x70] sm:$0xf]
        %v388 = vld [vmem:[%s357 + $0x74] sm:$0xf]
        %v389 = vld [vmem:[%s357 + $0x78] sm:$0xf]
        %v390 = vld [vmem:[%s357 + $0x7c] sm:$0xf]
        %v391 = vld [vmem:[%s2] sm:$0xf]
        %v392 = vld [vmem:[%s2 + $0x4] sm:$0xf]
        %v425 = vunpack.c.l.b16 %v359
        %v426 = vunpack.c.l.b16 %v360
        %v427 = vunpack.c.l.b16 %v361
        %v428 = vunpack.c.l.b16 %v362
        %v429 = vunpack.c.l.b16 %v363
        %v430 = vunpack.c.l.b16 %v364
        %v431 = vunpack.c.l.b16 %v365
        %v432 = vunpack.c.l.b16 %v366
        %v433 = vunpack.c.l.b16 %v367
        %v434 = vunpack.c.l.b16 %v368
        %v435 = vunpack.c.l.b16 %v369
        %v436 = vunpack.c.l.b16 %v370
        %v437 = vunpack.c.l.b16 %v371
        %v438 = vunpack.c.l.b16 %v372
        %v439 = vunpack.c.l.b16 %v373
        %v440 = vunpack.c.l.b16 %v374
        %v441 = vunpack.c.l.b16 %v375
        %v442 = vunpack.c.l.b16 %v376
        %v443 = vunpack.c.l.b16 %v377
        %v444 = vunpack.c.l.b16 %v378
        %v445 = vunpack.c.l.b16 %v379
        %v446 = vunpack.c.l.b16 %v380
        %v447 = vunpack.c.l.b16 %v381
        %v448 = vunpack.c.l.b16 %v382
        %v449 = vunpack.c.l.b16 %v383
        %v450 = vunpack.c.l.b16 %v384
        %v451 = vunpack.c.l.b16 %v385
        %v452 = vunpack.c.l.b16 %v386
        %v453 = vunpack.c.l.b16 %v387
        %v454 = vunpack.c.l.b16 %v388
        %v455 = vunpack.c.l.b16 %v389
        %v456 = vunpack.c.l.b16 %v390
        %v457 = vpack.c.b16 %v426, %v425
        %v458 = vpack.c.b16 %v428, %v427
        %v459 = vpack.c.b16 %v430, %v429
        %v460 = vpack.c.b16 %v432, %v431
        %v461 = vpack.c.b16 %v434, %v433
        %v462 = vpack.c.b16 %v436, %v435
        %v463 = vpack.c.b16 %v438, %v437
        %v464 = vpack.c.b16 %v440, %v439
        %v465 = vpack.c.b16 %v442, %v441
        %v466 = vpack.c.b16 %v444, %v443
        %v467 = vpack.c.b16 %v446, %v445
        %v468 = vpack.c.b16 %v448, %v447
        %v469 = vpack.c.b16 %v450, %v449
        %v470 = vpack.c.b16 %v452, %v451
        %v471 = vpack.c.b16 %v454, %v453
        %v472 = vpack.c.b16 %v456, %v455
        %v475 = vunpack.c.l.b16 %v391
        %v476 = vunpack.c.l.b16 %v392
        %v477 = vpack.c.b16 %v476, %v475
        %vm479 = vcmask 130048
        %v481 = vsel %vm479, %v457, 0
        %v484 = vsel %vm479, %v458, 0
        %v487 = vsel %vm479, %v459, 0
        %v490 = vsel %vm479, %v460, 0
        %v493 = vsel %vm479, %v461, 0
        %v496 = vsel %vm479, %v462, 0
        %v499 = vsel %vm479, %v463, 0
        %v502 = vsel %vm479, %v464, 0
        %v505 = vsel %vm479, %v465, 0
        %v508 = vsel %vm479, %v466, 0
        %v511 = vsel %vm479, %v467, 0
        %v514 = vsel %vm479, %v468, 0
        %v517 = vsel %vm479, %v469, 0
        %v520 = vsel %vm479, %v470, 0
        %v523 = vsel %vm479, %v471, 0
        %v526 = vsel %vm479, %v472, 0
        %528 = vmatprep.subr.bf16.mxu0 0
        %529 = vmatpush1.bf16.msra.mxu0 %v477
        %530 = vmatprep.subr.bf16.mxu0 0
        %531 = vmatpush1.bf16.msra.mxu0 0
        %532 = vmatprep.subr.bf16.mxu0 0
        %533 = vmatpush1.bf16.msra.mxu0 0
        %534 = vmatprep.subr.bf16.mxu0 0
        %535 = vmatpush1.bf16.msra.mxu0 0
        %536 = vmatprep.subr.bf16.mxu0 0
        %537 = vmatpush1.bf16.msra.mxu0 0
        %538 = vmatprep.subr.bf16.mxu0 0
        %539 = vmatpush1.bf16.msra.mxu0 0
        %540 = vmatprep.subr.bf16.mxu0 0
        %541 = vmatpush1.bf16.msra.mxu0 0
        %542 = vmatprep.subr.bf16.mxu0 0
        %543 = vmatpush1.bf16.msra.mxu0 0
        %544 = vmatprep.subr.bf16.mxu0 0
        %545 = vmatpush1.bf16.msra.mxu0 0
        %546 = vmatprep.subr.bf16.mxu0 0
        %547 = vmatpush1.bf16.msra.mxu0 0
        %548 = vmatprep.subr.bf16.mxu0 0
        %549 = vmatpush1.bf16.msra.mxu0 0
        %550 = vmatprep.subr.bf16.mxu0 0
        %551 = vmatpush1.bf16.msra.mxu0 0
        %552 = vmatprep.subr.bf16.mxu0 0
        %553 = vmatpush1.bf16.msra.mxu0 0
        %554 = vmatprep.subr.bf16.mxu0 0
        %555 = vmatpush1.bf16.msra.mxu0 0
        %556 = vmatprep.subr.bf16.mxu0 0
        %557 = vmatpush1.bf16.msra.mxu0 0
        %558 = vmatprep.subr.bf16.mxu0 0
        %559 = vmatpush1.bf16.msra.mxu0 0
        %560 = vmatprep.mubr.bf16.mxu0 0
        %561 = vmatmul.mubr.bf16.gmra.mrb[0].mxu0 %v481
        %v562 = vpop.f32.mrb[0].mxu0
        %v563 = vadd.f32 0.0, %v562
        %v564 = vpop.f32.mrb[0].mxu0
        %v565 = vpop.f32.mrb[0].mxu0
        %v566 = vadd.f32 0.0, %v565
        %v567 = vpop.f32.mrb[0].mxu0
        %568 = vmatprep.mubr.bf16.mxu0 0
        %569 = vmatmul.mubr.bf16.gmra.mrb[0].mxu0 %v484
        %v570 = vpop.f32.mrb[0].mxu0
        %v571 = vadd.f32 0.0, %v570
        %v572 = vpop.f32.mrb[0].mxu0
        %v573 = vpop.f32.mrb[0].mxu0
        %v574 = vadd.f32 0.0, %v573
        %v575 = vpop.f32.mrb[0].mxu0
        %576 = vmatprep.mubr.bf16.mxu0 0
        %577 = vmatmul.mubr.bf16.gmra.mrb[0].mxu0 %v487
        %v578 = vpop.f32.mrb[0].mxu0
        %v579 = vadd.f32 0.0, %v578
        %v580 = vpop.f32.mrb[0].mxu0
        %v581 = vpop.f32.mrb[0].mxu0
        %v582 = vadd.f32 0.0, %v581
        %v583 = vpop.f32.mrb[0].mxu0
        %584 = vmatprep.mubr.bf16.mxu0 0
        %585 = vmatmul.mubr.bf16.gmra.mrb[0].mxu0 %v490
        %v586 = vpop.f32.mrb[0].mxu0
        %v587 = vadd.f32 0.0, %v586
        %v588 = vpop.f32.mrb[0].mxu0
        %v589 = vpop.f32.mrb[0].mxu0
        %v590 = vadd.f32 0.0, %v589
        %v591 = vpop.f32.mrb[0].mxu0
        %592 = vmatprep.mubr.bf16.mxu0 0
        %593 = vmatmul.mubr.bf16.gmra.mrb[0].mxu0 %v493
        %v594 = vpop.f32.mrb[0].mxu0
        %v595 = vadd.f32 0.0, %v594
        %v596 = vpop.f32.mrb[0].mxu0
        %v597 = vpop.f32.mrb[0].mxu0
        %v598 = vadd.f32 0.0, %v597
        %v599 = vpop.f32.mrb[0].mxu0
        %600 = vmatprep.mubr.bf16.mxu0 0
        %601 = vmatmul.mubr.bf16.gmra.mrb[0].mxu0 %v496
        %v602 = vpop.f32.mrb[0].mxu0
        %v603 = vadd.f32 0.0, %v602
        %v604 = vpop.f32.mrb[0].mxu0
        %v605 = vpop.f32.mrb[0].mxu0
        %v606 = vadd.f32 0.0, %v605
        %v607 = vpop.f32.mrb[0].mxu0
        %608 = vmatprep.mubr.bf16.mxu0 0
        %609 = vmatmul.mubr.bf16.gmra.mrb[0].mxu0 %v499
        %v610 = vpop.f32.mrb[0].mxu0
        %v611 = vadd.f32 0.0, %v610
        %v612 = vpop.f32.mrb[0].mxu0
        %v613 = vpop.f32.mrb[0].mxu0
        %v614 = vadd.f32 0.0, %v613
        %v615 = vpop.f32.mrb[0].mxu0
        %616 = vmatprep.mubr.bf16.mxu0 0
        %617 = vmatmul.mubr.bf16.gmra.mrb[0].mxu0 %v502
        %v618 = vpop.f32.mrb[0].mxu0
        %v619 = vadd.f32 0.0, %v618
        %v620 = vpop.f32.mrb[0].mxu0
        %v621 = vpop.f32.mrb[0].mxu0
        %v622 = vadd.f32 0.0, %v621
        %v623 = vpop.f32.mrb[0].mxu0
        %624 = vmatprep.mubr.bf16.mxu0 0
        %625 = vmatmul.mubr.bf16.gmra.mrb[0].mxu0 %v505
        %v626 = vpop.f32.mrb[0].mxu0
        %v627 = vadd.f32 0.0, %v626
        %v628 = vpop.f32.mrb[0].mxu0
        %v629 = vpop.f32.mrb[0].mxu0
        %v630 = vadd.f32 0.0, %v629
        %v631 = vpop.f32.mrb[0].mxu0
        %632 = vmatprep.mubr.bf16.mxu0 0
        %633 = vmatmul.mubr.bf16.gmra.mrb[0].mxu0 %v508
        %v634 = vpop.f32.mrb[0].mxu0
        %v635 = vadd.f32 0.0, %v634
        %v636 = vpop.f32.mrb[0].mxu0
        %v637 = vpop.f32.mrb[0].mxu0
        %v638 = vadd.f32 0.0, %v637
        %v639 = vpop.f32.mrb[0].mxu0
        %640 = vmatprep.mubr.bf16.mxu0 0
        %641 = vmatmul.mubr.bf16.gmra.mrb[0].mxu0 %v511
        %v642 = vpop.f32.mrb[0].mxu0
        %v643 = vadd.f32 0.0, %v642
        %v644 = vpop.f32.mrb[0].mxu0
        %v645 = vpop.f32.mrb[0].mxu0
        %v646 = vadd.f32 0.0, %v645
        %v647 = vpop.f32.mrb[0].mxu0
        %648 = vmatprep.mubr.bf16.mxu0 0
        %649 = vmatmul.mubr.bf16.gmra.mrb[0].mxu0 %v514
        %v650 = vpop.f32.mrb[0].mxu0
        %v651 = vadd.f32 0.0, %v650
        %v652 = vpop.f32.mrb[0].mxu0
        %v653 = vpop.f32.mrb[0].mxu0
        %v654 = vadd.f32 0.0, %v653
        %v655 = vpop.f32.mrb[0].mxu0
        %656 = vmatprep.mubr.bf16.mxu0 0
        %657 = vmatmul.mubr.bf16.gmra.mrb[0].mxu0 %v517
        %v658 = vpop.f32.mrb[0].mxu0
        %v659 = vadd.f32 0.0, %v658
        %v660 = vpop.f32.mrb[0].mxu0
        %v661 = vpop.f32.mrb[0].mxu0
        %v662 = vadd.f32 0.0, %v661
        %v663 = vpop.f32.mrb[0].mxu0
        %664 = vmatprep.mubr.bf16.mxu0 0
        %665 = vmatmul.mubr.bf16.gmra.mrb[0].mxu0 %v520
        %v666 = vpop.f32.mrb[0].mxu0
        %v667 = vadd.f32 0.0, %v666
        %v668 = vpop.f32.mrb[0].mxu0
        %v669 = vpop.f32.mrb[0].mxu0
        %v670 = vadd.f32 0.0, %v669
        %v671 = vpop.f32.mrb[0].mxu0
        %672 = vmatprep.mubr.bf16.mxu0 0
        %673 = vmatmul.mubr.bf16.gmra.mrb[0].mxu0 %v523
        %v674 = vpop.f32.mrb[0].mxu0
        %v675 = vadd.f32 0.0, %v674
        %v676 = vpop.f32.mrb[0].mxu0
        %v677 = vpop.f32.mrb[0].mxu0
        %v678 = vadd.f32 0.0, %v677
        %v679 = vpop.f32.mrb[0].mxu0
        %680 = vmatprep.mubr.bf16.mxu0 0
        %681 = vmatmul.mubr.bf16.gmra.mrb[0].mxu0 %v526
        %v682 = vpop.f32.mrb[0].mxu0
        %v683 = vadd.f32 0.0, %v682
        %v684 = vpop.f32.mrb[0].mxu0
        %v685 = vpop.f32.mrb[0].mxu0
        %v686 = vadd.f32 0.0, %v685
        %v687 = vpop.f32.mrb[0].mxu0
        %688 = vdwg.mxu0
        %v689 = vmax.f32 %v563, %v595
        %v690 = vmax.f32 %v689, %v627
        %v691 = vmax.f32 %v690, %v659
        %v692 = vmax.f32 %v566, %v598
        %v693 = vmax.f32 %v692, %v630
        %v694 = vmax.f32 %v693, %v662
        %v695 = vmax.f32 %v571, %v603
        %v696 = vmax.f32 %v695, %v635
        %v697 = vmax.f32 %v696, %v667
        %v698 = vmax.f32 %v574, %v606
        %v699 = vmax.f32 %v698, %v638
        %v700 = vmax.f32 %v699, %v670
        %v701 = vmax.f32 %v579, %v611
        %v702 = vmax.f32 %v701, %v643
        %v703 = vmax.f32 %v702, %v675
        %v704 = vmax.f32 %v582, %v614
        %v705 = vmax.f32 %v704, %v646
        %v706 = vmax.f32 %v705, %v678
        %v707 = vmax.f32 %v587, %v619
        %v708 = vmax.f32 %v707, %v651
        %v709 = vmax.f32 %v708, %v683
        %v710 = vmax.f32 %v590, %v622
        %v711 = vmax.f32 %v710, %v654
        %v712 = vmax.f32 %v711, %v686
        %v713 = vld [vmem:[%s3] sm:$0x1]
        %v715 = vlaneseq
        %v716 = vshrl.u32 %v715, 7
        %v717 = vsub.s32 0, %v716
        %v718 = vrot.slane %v713, %v717
        %v720 = vadd.f32 %v691, %v718
        %v721 = vadd.f32 %v694, %v718
        %v722 = vadd.f32 %v697, %v718
        %v723 = vadd.f32 %v700, %v718
        %v724 = vadd.f32 %v703, %v718
        %v725 = vadd.f32 %v706, %v718
        %v726 = vadd.f32 %v709, %v718
        %v727 = vadd.f32 %v712, %v718
        %v728 = vmax.f32 %v720, 0.0
        %v729 = vmax.f32 %v721, 0.0
        %v730 = vmax.f32 %v722, 0.0
        %v731 = vmax.f32 %v723, 0.0
        %v732 = vmax.f32 %v724, 0.0
        %v733 = vmax.f32 %v725, 0.0
        %v734 = vmax.f32 %v726, 0.0
        %v735 = vmax.f32 %v727, 0.0
        %736 = vst [vmem:[#allocation2] sm:$0xff] 0.0
        %737 = vst [vmem:[#allocation2 + $0x8] sm:$0x3] 0.0
        %738 = vst [vmem:[#allocation2 + $0x10] sm:$0xff] 0.0
        %739 = vst [vmem:[#allocation2 + $0x18] sm:$0x3] 0.0
        %740 = vst [vmem:[#allocation2 + $0x20] sm:$0xff] 0.0
        %741 = vst [vmem:[#allocation2 + $0x28] sm:$0x3] 0.0
        %742 = vst [vmem:[#allocation2 + $0x30] sm:$0xff] 0.0
        %743 = vst [vmem:[#allocation2 + $0x38] sm:$0x3] 0.0
        %744 = vst [vmem:[#allocation2 + $0x40] sm:$0xff] 0.0
        %745 = vst [vmem:[#allocation2 + $0x48] sm:$0x3] 0.0
        %746 = vst [vmem:[#allocation2 + $0x50] sm:$0xff] 0.0
        %747 = vst [vmem:[#allocation2 + $0x58] sm:$0x3] 0.0
        %748 = vst [vmem:[#allocation2 + $0x60] sm:$0xff] 0.0
        %749 = vst [vmem:[#allocation2 + $0x68] sm:$0x3] 0.0
        %750 = vst [vmem:[#allocation2 + $0x70] sm:$0xff] 0.0
        %751 = vst [vmem:[#allocation2 + $0x78] sm:$0x3] 0.0
        %752 = vst [vmem:[#allocation2 + $0x80] sm:$0xff] 0.0
        %753 = vst [vmem:[#allocation2 + $0x88] sm:$0x3] 0.0
        %754 = vst [vmem:[#allocation2 + $0x90] sm:$0xff] 0.0
        %755 = vst [vmem:[#allocation2 + $0x98] sm:$0x3] 0.0
        %s756 = scalar_lea.vmem [#allocation2], 16
        %757 = vst [vmem:[%s756 + $0x1] sm:$0xff] %v728
        %758 = vst [vmem:[%s756 + $0x11] sm:$0xff] %v729
        %759 = vst [vmem:[%s756 + $0x21] sm:$0xff] %v730
        %760 = vst [vmem:[%s756 + $0x31] sm:$0xff] %v731
        %761 = vst [vmem:[%s756 + $0x41] sm:$0xff] %v732
        %762 = vst [vmem:[%s756 + $0x51] sm:$0xff] %v733
        %763 = vst [vmem:[%s756 + $0x61] sm:$0xff] %v734
        %764 = vst [vmem:[%s756 + $0x71] sm:$0xff] %v735
        %v765 = vld [vmem:[#allocation2] sm:$0xff]
        %v766 = vld [vmem:[#allocation2 + $0x10] sm:$0xff]
        %v767 = vld [vmem:[#allocation2 + $0x20] sm:$0xff]
        %v768 = vld [vmem:[#allocation2 + $0x30] sm:$0xff]
        %v769 = vld [vmem:[#allocation2 + $0x40] sm:$0xff]
        %v770 = vld [vmem:[#allocation2 + $0x50] sm:$0xff]
        %v771 = vld [vmem:[#allocation2 + $0x60] sm:$0xff]
        %v772 = vld [vmem:[#allocation2 + $0x70] sm:$0xff]
        %v773 = vpack.c.bf16 %v766, %v765
        %v774 = vpack.c.bf16 %v768, %v767
        %v775 = vpack.c.bf16 %v770, %v769
        %v776 = vpack.c.bf16 %v772, %v771
        %v777 = vld [vmem:[%s4] sm:$0xf]
        %v778 = vld [vmem:[%s4 + $0x4] sm:$0xf]
        %v779 = vld [vmem:[%s4 + $0x8] sm:$0xf]
        %v780 = vld [vmem:[%s4 + $0xc] sm:$0xf]
        %v781 = vld [vmem:[%s4 + $0x10] sm:$0xf]
        %v782 = vld [vmem:[%s4 + $0x14] sm:$0xf]
        %v783 = vld [vmem:[%s4 + $0x18] sm:$0xf]
        %v784 = vld [vmem:[%s4 + $0x1c] sm:$0xf]
        %v785 = vld [vmem:[%s4 + $0x20] sm:$0xf]
        %v786 = vld [vmem:[%s4 + $0x24] sm:$0xf]
        %v787 = vld [vmem:[%s4 + $0x28] sm:$0xf]
        %v788 = vld [vmem:[%s4 + $0x2c] sm:$0xf]
        %v789 = vld [vmem:[%s4 + $0x30] sm:$0xf]
        %v790 = vld [vmem:[%s4 + $0x34] sm:$0xf]
        %v791 = vld [vmem:[%s4 + $0x38] sm:$0xf]
        %v792 = vld [vmem:[%s4 + $0x3c] sm:$0xf]
        %v793 = vld [vmem:[#allocation2 + $0x1] sm:$0xff]
        %v794 = vld [vmem:[#allocation2 + $0x11] sm:$0xff]
        %v795 = vld [vmem:[#allocation2 + $0x21] sm:$0xff]
        %v796 = vld [vmem:[#allocation2 + $0x31] sm:$0xff]
        %v797 = vld [vmem:[#allocation2 + $0x41] sm:$0xff]
        %v798 = vld [vmem:[#allocation2 + $0x51] sm:$0xff]
        %v799 = vld [vmem:[#allocation2 + $0x61] sm:$0xff]
        %v800 = vld [vmem:[#allocation2 + $0x71] sm:$0xff]
        %v801 = vpack.c.bf16 %v794, %v793
        %v802 = vpack.c.bf16 %v796, %v795
        %v803 = vpack.c.bf16 %v798, %v797
        %v804 = vpack.c.bf16 %v800, %v799
        %s805 = scalar_lea.vmem %s4, 64
        %v806 = vld [vmem:[%s805] sm:$0xf]
        %v807 = vld [vmem:[%s805 + $0x4] sm:$0xf]
        %v808 = vld [vmem:[%s805 + $0x8] sm:$0xf]
        %v809 = vld [vmem:[%s805 + $0xc] sm:$0xf]
        %v810 = vld [vmem:[%s805 + $0x10] sm:$0xf]
        %v811 = vld [vmem:[%s805 + $0x14] sm:$0xf]
        %v812 = vld [vmem:[%s805 + $0x18] sm:$0xf]
        %v813 = vld [vmem:[%s805 + $0x1c] sm:$0xf]
        %v814 = vld [vmem:[%s805 + $0x20] sm:$0xf]
        %v815 = vld [vmem:[%s805 + $0x24] sm:$0xf]
        %v816 = vld [vmem:[%s805 + $0x28] sm:$0xf]
        %v817 = vld [vmem:[%s805 + $0x2c] sm:$0xf]
        %v818 = vld [vmem:[%s805 + $0x30] sm:$0xf]
        %v819 = vld [vmem:[%s805 + $0x34] sm:$0xf]
        %v820 = vld [vmem:[%s805 + $0x38] sm:$0xf]
        %v821 = vld [vmem:[%s805 + $0x3c] sm:$0xf]
        %v838 = vunpack.c.l.b16 %v806
        %v839 = vunpack.c.l.b16 %v807
        %v840 = vunpack.c.l.b16 %v808
        %v841 = vunpack.c.l.b16 %v809
        %v842 = vunpack.c.l.b16 %v810
        %v843 = vunpack.c.l.b16 %v811
        %v844 = vunpack.c.l.b16 %v812
        %v845 = vunpack.c.l.b16 %v813
        %v846 = vunpack.c.l.b16 %v814
        %v847 = vunpack.c.l.b16 %v815
        %v848 = vunpack.c.l.b16 %v816
        %v849 = vunpack.c.l.b16 %v817
        %v850 = vunpack.c.l.b16 %v818
        %v851 = vunpack.c.l.b16 %v819
        %v852 = vunpack.c.l.b16 %v820
        %v853 = vunpack.c.l.b16 %v821
        %v854 = vpack.c.b16 %v839, %v838
        %v855 = vpack.c.b16 %v841, %v840
        %v856 = vpack.c.b16 %v843, %v842
        %v857 = vpack.c.b16 %v845, %v844
        %v858 = vpack.c.b16 %v847, %v846
        %v859 = vpack.c.b16 %v849, %v848
        %v860 = vpack.c.b16 %v851, %v850
        %v861 = vpack.c.b16 %v853, %v852
        %870 = vmatprep.subr.bf16.mxu0 0
        %871 = vmatpush1.bf16.msra.mxu0 %v854
        %872 = vmatprep.subr.bf16.mxu0 0
        %873 = vmatpush1.bf16.msra.mxu0 %v855
        %874 = vmatprep.subr.bf16.mxu0 0
        %875 = vmatpush1.bf16.msra.mxu0 %v856
        %876 = vmatprep.subr.bf16.mxu0 0
        %877 = vmatpush1.bf16.msra.mxu0 %v857
        %878 = vmatprep.subr.bf16.mxu0 0
        %879 = vmatpush1.bf16.msra.mxu0 %v858
        %880 = vmatprep.subr.bf16.mxu0 0
        %881 = vmatpush1.bf16.msra.mxu0 %v859
        %882 = vmatprep.subr.bf16.mxu0 0
        %883 = vmatpush1.bf16.msra.mxu0 %v860
        %884 = vmatprep.subr.bf16.mxu0 0
        %885 = vmatpush1.bf16.msra.mxu0 %v861
        %886 = vmatprep.subr.bf16.mxu0 0
        %887 = vmatpush1.bf16.msra.mxu0 0
        %888 = vmatprep.subr.bf16.mxu0 0
        %889 = vmatpush1.bf16.msra.mxu0 0
        %890 = vmatprep.subr.bf16.mxu0 0
        %891 = vmatpush1.bf16.msra.mxu0 0
        %892 = vmatprep.subr.bf16.mxu0 0
        %893 = vmatpush1.bf16.msra.mxu0 0
        %894 = vmatprep.subr.bf16.mxu0 0
        %895 = vmatpush1.bf16.msra.mxu0 0
        %896 = vmatprep.subr.bf16.mxu0 0
        %897 = vmatpush1.bf16.msra.mxu0 0
        %898 = vmatprep.subr.bf16.mxu0 0
        %899 = vmatpush1.bf16.msra.mxu0 0
        %900 = vmatprep.subr.bf16.mxu0 0
        %901 = vmatpush1.bf16.msra.mxu0 0
        %902 = vmatprep.mubr.bf16.mxu0 0
        %903 = vmatmul.mubr.bf16.gmra.mrb[0].mxu0 %v801
        %v904 = vpop.f32.mrb[0].mxu0
        %v905 = vadd.f32 0.0, %v904
        %v906 = vpop.f32.mrb[0].mxu0
        %v907 = vpop.f32.mrb[0].mxu0
        %v908 = vadd.f32 0.0, %v907
        %v909 = vpop.f32.mrb[0].mxu0
        %910 = vmatprep.mubr.bf16.mxu0 0
        %911 = vmatmul.mubr.bf16.gmra.mrb[0].mxu0 %v802
        %v912 = vpop.f32.mrb[0].mxu0
        %v913 = vadd.f32 0.0, %v912
        %v914 = vpop.f32.mrb[0].mxu0
        %v915 = vpop.f32.mrb[0].mxu0
        %v916 = vadd.f32 0.0, %v915
        %v917 = vpop.f32.mrb[0].mxu0
        %918 = vmatprep.mubr.bf16.mxu0 0
        %919 = vmatmul.mubr.bf16.gmra.mrb[0].mxu0 %v803
        %v920 = vpop.f32.mrb[0].mxu0
        %v921 = vadd.f32 0.0, %v920
        %v922 = vpop.f32.mrb[0].mxu0
        %v923 = vpop.f32.mrb[0].mxu0
        %v924 = vadd.f32 0.0, %v923
        %v925 = vpop.f32.mrb[0].mxu0
        %926 = vmatprep.mubr.bf16.mxu0 0
        %927 = vmatmul.mubr.bf16.gmra.mrb[0].mxu0 %v804
        %v928 = vpop.f32.mrb[0].mxu0
        %v929 = vadd.f32 0.0, %v928
        %v930 = vpop.f32.mrb[0].mxu0
        %v931 = vpop.f32.mrb[0].mxu0
        %v932 = vadd.f32 0.0, %v931
        %v933 = vpop.f32.mrb[0].mxu0
        %934 = vdwg.mxu0
        %v951 = vunpack.c.l.b16 %v777
        %v952 = vunpack.c.l.b16 %v778
        %v953 = vunpack.c.l.b16 %v779
        %v954 = vunpack.c.l.b16 %v780
        %v955 = vunpack.c.l.b16 %v781
        %v956 = vunpack.c.l.b16 %v782
        %v957 = vunpack.c.l.b16 %v783
        %v958 = vunpack.c.l.b16 %v784
        %v959 = vunpack.c.l.b16 %v785
        %v960 = vunpack.c.l.b16 %v786
        %v961 = vunpack.c.l.b16 %v787
        %v962 = vunpack.c.l.b16 %v788
        %v963 = vunpack.c.l.b16 %v789
        %v964 = vunpack.c.l.b16 %v790
        %v965 = vunpack.c.l.b16 %v791
        %v966 = vunpack.c.l.b16 %v792
        %v967 = vpack.c.b16 %v952, %v951
        %v968 = vpack.c.b16 %v954, %v953
        %v969 = vpack.c.b16 %v956, %v955
        %v970 = vpack.c.b16 %v958, %v957
        %v971 = vpack.c.b16 %v960, %v959
        %v972 = vpack.c.b16 %v962, %v961
        %v973 = vpack.c.b16 %v964, %v963
        %v974 = vpack.c.b16 %v966, %v965
        %983 = vmatprep.subr.bf16.mxu0 0
        %984 = vmatpush1.bf16.msra.mxu0 %v967
        %985 = vmatprep.subr.bf16.mxu0 0
        %986 = vmatpush1.bf16.msra.mxu0 %v968
        %987 = vmatprep.subr.bf16.mxu0 0
        %988 = vmatpush1.bf16.msra.mxu0 %v969
        %989 = vmatprep.subr.bf16.mxu0 0
        %990 = vmatpush1.bf16.msra.mxu0 %v970
        %991 = vmatprep.subr.bf16.mxu0 0
        %992 = vmatpush1.bf16.msra.mxu0 %v971
        %993 = vmatprep.subr.bf16.mxu0 0
        %994 = vmatpush1.bf16.msra.mxu0 %v972
        %995 = vmatprep.subr.bf16.mxu0 0
        %996 = vmatpush1.bf16.msra.mxu0 %v973
        %997 = vmatprep.subr.bf16.mxu0 0
        %998 = vmatpush1.bf16.msra.mxu0 %v974
        %999 = vmatprep.subr.bf16.mxu0 0
        %1000 = vmatpush1.bf16.msra.mxu0 0
        %1001 = vmatprep.subr.bf16.mxu0 0
        %1002 = vmatpush1.bf16.msra.mxu0 0
        %1003 = vmatprep.subr.bf16.mxu0 0
        %1004 = vmatpush1.bf16.msra.mxu0 0
        %1005 = vmatprep.subr.bf16.mxu0 0
        %1006 = vmatpush1.bf16.msra.mxu0 0
        %1007 = vmatprep.subr.bf16.mxu0 0
        %1008 = vmatpush1.bf16.msra.mxu0 0
        %1009 = vmatprep.subr.bf16.mxu0 0
        %1010 = vmatpush1.bf16.msra.mxu0 0
        %1011 = vmatprep.subr.bf16.mxu0 0
        %1012 = vmatpush1.bf16.msra.mxu0 0
        %1013 = vmatprep.subr.bf16.mxu0 0
        %1014 = vmatpush1.bf16.msra.mxu0 0
        %1015 = vmatprep.mubr.bf16.mxu0 0
        %1016 = vmatmul.mubr.bf16.gmra.mrb[0].mxu0 %v773
        %v1017 = vpop.f32.mrb[0].mxu0
        %v1018 = vadd.f32 %v905, %v1017
        %v1019 = vpop.f32.mrb[0].mxu0
        %v1020 = vpop.f32.mrb[0].mxu0
        %v1021 = vadd.f32 %v908, %v1020
        %v1022 = vpop.f32.mrb[0].mxu0
        %1023 = vmatprep.mubr.bf16.mxu0 0
        %1024 = vmatmul.mubr.bf16.gmra.mrb[0].mxu0 %v774
        %v1025 = vpop.f32.mrb[0].mxu0
        %v1026 = vadd.f32 %v913, %v1025
        %v1027 = vpop.f32.mrb[0].mxu0
        %v1028 = vpop.f32.mrb[0].mxu0
        %v1029 = vadd.f32 %v916, %v1028
        %v1030 = vpop.f32.mrb[0].mxu0
        %1031 = vmatprep.mubr.bf16.mxu0 0
        %1032 = vmatmul.mubr.bf16.gmra.mrb[0].mxu0 %v775
        %v1033 = vpop.f32.mrb[0].mxu0
        %v1034 = vadd.f32 %v921, %v1033
        %v1035 = vpop.f32.mrb[0].mxu0
        %v1036 = vpop.f32.mrb[0].mxu0
        %v1037 = vadd.f32 %v924, %v1036
        %v1038 = vpop.f32.mrb[0].mxu0
        %1039 = vmatprep.mubr.bf16.mxu0 0
        %1040 = vmatmul.mubr.bf16.gmra.mrb[0].mxu0 %v776
        %v1041 = vpop.f32.mrb[0].mxu0
        %v1042 = vadd.f32 %v929, %v1041
        %v1043 = vpop.f32.mrb[0].mxu0
        %v1044 = vpop.f32.mrb[0].mxu0
        %v1045 = vadd.f32 %v932, %v1044
        %v1046 = vpop.f32.mrb[0].mxu0
        %1047 = vdwg.mxu0
        %v1048 = vld [vmem:[#allocation2 + $0x2] sm:$0xff]
        %v1049 = vld [vmem:[#allocation2 + $0x12] sm:$0xff]
        %v1050 = vld [vmem:[#allocation2 + $0x22] sm:$0xff]
        %v1051 = vld [vmem:[#allocation2 + $0x32] sm:$0xff]
        %v1052 = vld [vmem:[#allocation2 + $0x42] sm:$0xff]
        %v1053 = vld [vmem:[#allocation2 + $0x52] sm:$0xff]
        %v1054 = vld [vmem:[#allocation2 + $0x62] sm:$0xff]
        %v1055 = vld [vmem:[#allocation2 + $0x72] sm:$0xff]
        %v1056 = vpack.c.bf16 %v1049, %v1048
        %v1057 = vpack.c.bf16 %v1051, %v1050
        %v1058 = vpack.c.bf16 %v1053, %v1052
        %v1059 = vpack.c.bf16 %v1055, %v1054
        %s1060 = scalar_lea.vmem %s4, 128
        %v1061 = vld [vmem:[%s1060] sm:$0xf]
        %v1062 = vld [vmem:[%s1060 + $0x4] sm:$0xf]
        %v1063 = vld [vmem:[%s1060 + $0x8] sm:$0xf]
        %v1064 = vld [vmem:[%s1060 + $0xc] sm:$0xf]
        %v1065 = vld [vmem:[%s1060 + $0x10] sm:$0xf]
        %v1066 = vld [vmem:[%s1060 + $0x14] sm:$0xf]
        %v1067 = vld [vmem:[%s1060 + $0x18] sm:$0xf]
        %v1068 = vld [vmem:[%s1060 + $0x1c] sm:$0xf]
        %v1069 = vld [vmem:[%s1060 + $0x20] sm:$0xf]
        %v1070 = vld [vmem:[%s1060 + $0x24] sm:$0xf]
        %v1071 = vld [vmem:[%s1060 + $0x28] sm:$0xf]
        %v1072 = vld [vmem:[%s1060 + $0x2c] sm:$0xf]
        %v1073 = vld [vmem:[%s1060 + $0x30] sm:$0xf]
        %v1074 = vld [vmem:[%s1060 + $0x34] sm:$0xf]
        %v1075 = vld [vmem:[%s1060 + $0x38] sm:$0xf]
        %v1076 = vld [vmem:[%s1060 + $0x3c] sm:$0xf]
        %v1093 = vunpack.c.l.b16 %v1061
        %v1094 = vunpack.c.l.b16 %v1062
        %v1095 = vunpack.c.l.b16 %v1063
        %v1096 = vunpack.c.l.b16 %v1064
        %v1097 = vunpack.c.l.b16 %v1065
        %v1098 = vunpack.c.l.b16 %v1066
        %v1099 = vunpack.c.l.b16 %v1067
        %v1100 = vunpack.c.l.b16 %v1068
        %v1101 = vunpack.c.l.b16 %v1069
        %v1102 = vunpack.c.l.b16 %v1070
        %v1103 = vunpack.c.l.b16 %v1071
        %v1104 = vunpack.c.l.b16 %v1072
        %v1105 = vunpack.c.l.b16 %v1073
        %v1106 = vunpack.c.l.b16 %v1074
        %v1107 = vunpack.c.l.b16 %v1075
        %v1108 = vunpack.c.l.b16 %v1076
        %v1109 = vpack.c.b16 %v1094, %v1093
        %v1110 = vpack.c.b16 %v1096, %v1095
        %v1111 = vpack.c.b16 %v1098, %v1097
        %v1112 = vpack.c.b16 %v1100, %v1099
        %v1113 = vpack.c.b16 %v1102, %v1101
        %v1114 = vpack.c.b16 %v1104, %v1103
        %v1115 = vpack.c.b16 %v1106, %v1105
        %v1116 = vpack.c.b16 %v1108, %v1107
        %1125 = vmatprep.subr.bf16.mxu0 0
        %1126 = vmatpush1.bf16.msra.mxu0 %v1109
        %1127 = vmatprep.subr.bf16.mxu0 0
        %1128 = vmatpush1.bf16.msra.mxu0 %v1110
        %1129 = vmatprep.subr.bf16.mxu0 0
        %1130 = vmatpush1.bf16.msra.mxu0 %v1111
        %1131 = vmatprep.subr.bf16.mxu0 0
        %1132 = vmatpush1.bf16.msra.mxu0 %v1112
        %1133 = vmatprep.subr.bf16.mxu0 0
        %1134 = vmatpush1.bf16.msra.mxu0 %v1113
        %1135 = vmatprep.subr.bf16.mxu0 0
        %1136 = vmatpush1.bf16.msra.mxu0 %v1114
        %1137 = vmatprep.subr.bf16.mxu0 0
        %1138 = vmatpush1.bf16.msra.mxu0 %v1115
        %1139 = vmatprep.subr.bf16.mxu0 0
        %1140 = vmatpush1.bf16.msra.mxu0 %v1116
        %1141 = vmatprep.subr.bf16.mxu0 0
        %1142 = vmatpush1.bf16.msra.mxu0 0
        %1143 = vmatprep.subr.bf16.mxu0 0
        %1144 = vmatpush1.bf16.msra.mxu0 0
        %1145 = vmatprep.subr.bf16.mxu0 0
        %1146 = vmatpush1.bf16.msra.mxu0 0
        %1147 = vmatprep.subr.bf16.mxu0 0
        %1148 = vmatpush1.bf16.msra.mxu0 0
        %1149 = vmatprep.subr.bf16.mxu0 0
        %1150 = vmatpush1.bf16.msra.mxu0 0
        %1151 = vmatprep.subr.bf16.mxu0 0
        %1152 = vmatpush1.bf16.msra.mxu0 0
        %1153 = vmatprep.subr.bf16.mxu0 0
        %1154 = vmatpush1.bf16.msra.mxu0 0
        %1155 = vmatprep.subr.bf16.mxu0 0
        %1156 = vmatpush1.bf16.msra.mxu0 0
        %1157 = vmatprep.mubr.bf16.mxu0 0
        %1158 = vmatmul.mubr.bf16.gmra.mrb[0].mxu0 %v1056
        %v1159 = vpop.f32.mrb[0].mxu0
        %v1160 = vadd.f32 0.0, %v1159
        %v1161 = vpop.f32.mrb[0].mxu0
        %v1162 = vpop.f32.mrb[0].mxu0
        %v1163 = vadd.f32 0.0, %v1162
        %v1164 = vpop.f32.mrb[0].mxu0
        %1165 = vmatprep.mubr.bf16.mxu0 0
        %1166 = vmatmul.mubr.bf16.gmra.mrb[0].mxu0 %v1057
        %v1167 = vpop.f32.mrb[0].mxu0
        %v1168 = vadd.f32 0.0, %v1167
        %v1169 = vpop.f32.mrb[0].mxu0
        %v1170 = vpop.f32.mrb[0].mxu0
        %v1171 = vadd.f32 0.0, %v1170
        %v1172 = vpop.f32.mrb[0].mxu0
        %1173 = vmatprep.mubr.bf16.mxu0 0
        %1174 = vmatmul.mubr.bf16.gmra.mrb[0].mxu0 %v1058
        %v1175 = vpop.f32.mrb[0].mxu0
        %v1176 = vadd.f32 0.0, %v1175
        %v1177 = vpop.f32.mrb[0].mxu0
        %v1178 = vpop.f32.mrb[0].mxu0
        %v1179 = vadd.f32 0.0, %v1178
        %v1180 = vpop.f32.mrb[0].mxu0
        %1181 = vmatprep.mubr.bf16.mxu0 0
        %1182 = vmatmul.mubr.bf16.gmra.mrb[0].mxu0 %v1059
        %v1183 = vpop.f32.mrb[0].mxu0
        %v1184 = vadd.f32 0.0, %v1183
        %v1185 = vpop.f32.mrb[0].mxu0
        %v1186 = vpop.f32.mrb[0].mxu0
        %v1187 = vadd.f32 0.0, %v1186
        %v1188 = vpop.f32.mrb[0].mxu0
        %1189 = vdwg.mxu0
        %v1190 = vadd.f32 %v1018, %v1160
        %v1191 = vadd.f32 %v1021, %v1163
        %v1192 = vadd.f32 %v1026, %v1168
        %v1193 = vadd.f32 %v1029, %v1171
        %v1194 = vadd.f32 %v1034, %v1176
        %v1195 = vadd.f32 %v1037, %v1179
        %v1196 = vadd.f32 %v1042, %v1184
        %v1197 = vadd.f32 %v1045, %v1187
        %v1198 = vld [vmem:[%s756] sm:$0xff]
        %v1199 = vld [vmem:[%s756 + $0x10] sm:$0xff]
        %v1200 = vld [vmem:[%s756 + $0x20] sm:$0xff]
        %v1201 = vld [vmem:[%s756 + $0x30] sm:$0xff]
        %v1202 = vld [vmem:[%s756 + $0x40] sm:$0xff]
        %v1203 = vld [vmem:[%s756 + $0x50] sm:$0xff]
        %v1204 = vld [vmem:[%s756 + $0x60] sm:$0xff]
        %v1205 = vld [vmem:[%s756 + $0x70] sm:$0xff]
        %v1206 = vpack.c.bf16 %v1199, %v1198
        %v1207 = vpack.c.bf16 %v1201, %v1200
        %v1208 = vpack.c.bf16 %v1203, %v1202
        %v1209 = vpack.c.bf16 %v1205, %v1204
        %s1210 = scalar_lea.vmem %s4, 192
        %v1211 = vld [vmem:[%s1210] sm:$0xf]
        %v1212 = vld [vmem:[%s1210 + $0x4] sm:$0xf]
        %v1213 = vld [vmem:[%s1210 + $0x8] sm:$0xf]
        %v1214 = vld [vmem:[%s1210 + $0xc] sm:$0xf]
        %v1215 = vld [vmem:[%s1210 + $0x10] sm:$0xf]
        %v1216 = vld [vmem:[%s1210 + $0x14] sm:$0xf]
        %v1217 = vld [vmem:[%s1210 + $0x18] sm:$0xf]
        %v1218 = vld [vmem:[%s1210 + $0x1c] sm:$0xf]
        %v1219 = vld [vmem:[%s1210 + $0x20] sm:$0xf]
        %v1220 = vld [vmem:[%s1210 + $0x24] sm:$0xf]
        %v1221 = vld [vmem:[%s1210 + $0x28] sm:$0xf]
        %v1222 = vld [vmem:[%s1210 + $0x2c] sm:$0xf]
        %v1223 = vld [vmem:[%s1210 + $0x30] sm:$0xf]
        %v1224 = vld [vmem:[%s1210 + $0x34] sm:$0xf]
        %v1225 = vld [vmem:[%s1210 + $0x38] sm:$0xf]
        %v1226 = vld [vmem:[%s1210 + $0x3c] sm:$0xf]
        %v1243 = vunpack.c.l.b16 %v1211
        %v1244 = vunpack.c.l.b16 %v1212
        %v1245 = vunpack.c.l.b16 %v1213
        %v1246 = vunpack.c.l.b16 %v1214
        %v1247 = vunpack.c.l.b16 %v1215
        %v1248 = vunpack.c.l.b16 %v1216
        %v1249 = vunpack.c.l.b16 %v1217
        %v1250 = vunpack.c.l.b16 %v1218
        %v1251 = vunpack.c.l.b16 %v1219
        %v1252 = vunpack.c.l.b16 %v1220
        %v1253 = vunpack.c.l.b16 %v1221
        %v1254 = vunpack.c.l.b16 %v1222
        %v1255 = vunpack.c.l.b16 %v1223
        %v1256 = vunpack.c.l.b16 %v1224
        %v1257 = vunpack.c.l.b16 %v1225
        %v1258 = vunpack.c.l.b16 %v1226
        %v1259 = vpack.c.b16 %v1244, %v1243
        %v1260 = vpack.c.b16 %v1246, %v1245
        %v1261 = vpack.c.b16 %v1248, %v1247
        %v1262 = vpack.c.b16 %v1250, %v1249
        %v1263 = vpack.c.b16 %v1252, %v1251
        %v1264 = vpack.c.b16 %v1254, %v1253
        %v1265 = vpack.c.b16 %v1256, %v1255
        %v1266 = vpack.c.b16 %v1258, %v1257
        %1275 = vmatprep.subr.bf16.mxu0 0
        %1276 = vmatpush1.bf16.msra.mxu0 %v1259
        %1277 = vmatprep.subr.bf16.mxu0 0
        %1278 = vmatpush1.bf16.msra.mxu0 %v1260
        %1279 = vmatprep.subr.bf16.mxu0 0
        %1280 = vmatpush1.bf16.msra.mxu0 %v1261
        %1281 = vmatprep.subr.bf16.mxu0 0
        %1282 = vmatpush1.bf16.msra.mxu0 %v1262
        %1283 = vmatprep.subr.bf16.mxu0 0
        %1284 = vmatpush1.bf16.msra.mxu0 %v1263
        %1285 = vmatprep.subr.bf16.mxu0 0
        %1286 = vmatpush1.bf16.msra.mxu0 %v1264
        %1287 = vmatprep.subr.bf16.mxu0 0
        %1288 = vmatpush1.bf16.msra.mxu0 %v1265
        %1289 = vmatprep.subr.bf16.mxu0 0
        %1290 = vmatpush1.bf16.msra.mxu0 %v1266
        %1291 = vmatprep.subr.bf16.mxu0 0
        %1292 = vmatpush1.bf16.msra.mxu0 0
        %1293 = vmatprep.subr.bf16.mxu0 0
        %1294 = vmatpush1.bf16.msra.mxu0 0
        %1295 = vmatprep.subr.bf16.mxu0 0
        %1296 = vmatpush1.bf16.msra.mxu0 0
        %1297 = vmatprep.subr.bf16.mxu0 0
        %1298 = vmatpush1.bf16.msra.mxu0 0
        %1299 = vmatprep.subr.bf16.mxu0 0
        %1300 = vmatpush1.bf16.msra.mxu0 0
        %1301 = vmatprep.subr.bf16.mxu0 0
        %1302 = vmatpush1.bf16.msra.mxu0 0
        %1303 = vmatprep.subr.bf16.mxu0 0
        %1304 = vmatpush1.bf16.msra.mxu0 0
        %1305 = vmatprep.subr.bf16.mxu0 0
        %1306 = vmatpush1.bf16.msra.mxu0 0
        %1307 = vmatprep.mubr.bf16.mxu0 0
        %1308 = vmatmul.mubr.bf16.gmra.mrb[0].mxu0 %v1206
        %v1309 = vpop.f32.mrb[0].mxu0
        %v1310 = vadd.f32 0.0, %v1309
        %v1311 = vpop.f32.mrb[0].mxu0
        %v1312 = vpop.f32.mrb[0].mxu0
        %v1313 = vadd.f32 0.0, %v1312
        %v1314 = vpop.f32.mrb[0].mxu0
        %1315 = vmatprep.mubr.bf16.mxu0 0
        %1316 = vmatmul.mubr.bf16.gmra.mrb[0].mxu0 %v1207
        %v1317 = vpop.f32.mrb[0].mxu0
        %v1318 = vadd.f32 0.0, %v1317
        %v1319 = vpop.f32.mrb[0].mxu0
        %v1320 = vpop.f32.mrb[0].mxu0
        %v1321 = vadd.f32 0.0, %v1320
        %v1322 = vpop.f32.mrb[0].mxu0
        %1323 = vmatprep.mubr.bf16.mxu0 0
        %1324 = vmatmul.mubr.bf16.gmra.mrb[0].mxu0 %v1208
        %v1325 = vpop.f32.mrb[0].mxu0
        %v1326 = vadd.f32 0.0, %v1325
        %v1327 = vpop.f32.mrb[0].mxu0
        %v1328 = vpop.f32.mrb[0].mxu0
        %v1329 = vadd.f32 0.0, %v1328
        %v1330 = vpop.f32.mrb[0].mxu0
        %1331 = vmatprep.mubr.bf16.mxu0 0
        %1332 = vmatmul.mubr.bf16.gmra.mrb[0].mxu0 %v1209
        %v1333 = vpop.f32.mrb[0].mxu0
        %v1334 = vadd.f32 0.0, %v1333
        %v1335 = vpop.f32.mrb[0].mxu0
        %v1336 = vpop.f32.mrb[0].mxu0
        %v1337 = vadd.f32 0.0, %v1336
        %v1338 = vpop.f32.mrb[0].mxu0
        %1339 = vdwg.mxu0
        %v1340 = vadd.f32 %v1190, %v1310
        %v1341 = vadd.f32 %v1191, %v1313
        %v1342 = vadd.f32 %v1192, %v1318
        %v1343 = vadd.f32 %v1193, %v1321
        %v1344 = vadd.f32 %v1194, %v1326
        %v1345 = vadd.f32 %v1195, %v1329
        %v1346 = vadd.f32 %v1196, %v1334
        %v1347 = vadd.f32 %v1197, %v1337
        %v1348 = vld [vmem:[%s756 + $0x1] sm:$0xff]
        %v1349 = vld [vmem:[%s756 + $0x11] sm:$0xff]
        %v1350 = vld [vmem:[%s756 + $0x21] sm:$0xff]
        %v1351 = vld [vmem:[%s756 + $0x31] sm:$0xff]
        %v1352 = vld [vmem:[%s756 + $0x41] sm:$0xff]
        %v1353 = vld [vmem:[%s756 + $0x51] sm:$0xff]
        %v1354 = vld [vmem:[%s756 + $0x61] sm:$0xff]
        %v1355 = vld [vmem:[%s756 + $0x71] sm:$0xff]
        %v1356 = vpack.c.bf16 %v1349, %v1348
        %v1357 = vpack.c.bf16 %v1351, %v1350
        %v1358 = vpack.c.bf16 %v1353, %v1352
        %v1359 = vpack.c.bf16 %v1355, %v1354
        %s1360 = scalar_lea.vmem %s4, 256
        %v1361 = vld [vmem:[%s1360] sm:$0xf]
        %v1362 = vld [vmem:[%s1360 + $0x4] sm:$0xf]
        %v1363 = vld [vmem:[%s1360 + $0x8] sm:$0xf]
        %v1364 = vld [vmem:[%s1360 + $0xc] sm:$0xf]
        %v1365 = vld [vmem:[%s1360 + $0x10] sm:$0xf]
        %v1366 = vld [vmem:[%s1360 + $0x14] sm:$0xf]
        %v1367 = vld [vmem:[%s1360 + $0x18] sm:$0xf]
        %v1368 = vld [vmem:[%s1360 + $0x1c] sm:$0xf]
        %v1369 = vld [vmem:[%s1360 + $0x20] sm:$0xf]
        %v1370 = vld [vmem:[%s1360 + $0x24] sm:$0xf]
        %v1371 = vld [vmem:[%s1360 + $0x28] sm:$0xf]
        %v1372 = vld [vmem:[%s1360 + $0x2c] sm:$0xf]
        %v1373 = vld [vmem:[%s1360 + $0x30] sm:$0xf]
        %v1374 = vld [vmem:[%s1360 + $0x34] sm:$0xf]
        %v1375 = vld [vmem:[%s1360 + $0x38] sm:$0xf]
        %v1376 = vld [vmem:[%s1360 + $0x3c] sm:$0xf]
        %v1393 = vunpack.c.l.b16 %v1361
        %v1394 = vunpack.c.l.b16 %v1362
        %v1395 = vunpack.c.l.b16 %v1363
        %v1396 = vunpack.c.l.b16 %v1364
        %v1397 = vunpack.c.l.b16 %v1365
        %v1398 = vunpack.c.l.b16 %v1366
        %v1399 = vunpack.c.l.b16 %v1367
        %v1400 = vunpack.c.l.b16 %v1368
        %v1401 = vunpack.c.l.b16 %v1369
        %v1402 = vunpack.c.l.b16 %v1370
        %v1403 = vunpack.c.l.b16 %v1371
        %v1404 = vunpack.c.l.b16 %v1372
        %v1405 = vunpack.c.l.b16 %v1373
        %v1406 = vunpack.c.l.b16 %v1374
        %v1407 = vunpack.c.l.b16 %v1375
        %v1408 = vunpack.c.l.b16 %v1376
        %v1409 = vpack.c.b16 %v1394, %v1393
        %v1410 = vpack.c.b16 %v1396, %v1395
        %v1411 = vpack.c.b16 %v1398, %v1397
        %v1412 = vpack.c.b16 %v1400, %v1399
        %v1413 = vpack.c.b16 %v1402, %v1401
        %v1414 = vpack.c.b16 %v1404, %v1403
        %v1415 = vpack.c.b16 %v1406, %v1405
        %v1416 = vpack.c.b16 %v1408, %v1407
        %1425 = vmatprep.subr.bf16.mxu0 0
        %1426 = vmatpush1.bf16.msra.mxu0 %v1409
        %1427 = vmatprep.subr.bf16.mxu0 0
        %1428 = vmatpush1.bf16.msra.mxu0 %v1410
        %1429 = vmatprep.subr.bf16.mxu0 0
        %1430 = vmatpush1.bf16.msra.mxu0 %v1411
        %1431 = vmatprep.subr.bf16.mxu0 0
        %1432 = vmatpush1.bf16.msra.mxu0 %v1412
        %1433 = vmatprep.subr.bf16.mxu0 0
        %1434 = vmatpush1.bf16.msra.mxu0 %v1413
        %1435 = vmatprep.subr.bf16.mxu0 0
        %1436 = vmatpush1.bf16.msra.mxu0 %v1414
        %1437 = vmatprep.subr.bf16.mxu0 0
        %1438 = vmatpush1.bf16.msra.mxu0 %v1415
        %1439 = vmatprep.subr.bf16.mxu0 0
        %1440 = vmatpush1.bf16.msra.mxu0 %v1416
        %1441 = vmatprep.subr.bf16.mxu0 0
        %1442 = vmatpush1.bf16.msra.mxu0 0
        %1443 = vmatprep.subr.bf16.mxu0 0
        %1444 = vmatpush1.bf16.msra.mxu0 0
        %1445 = vmatprep.subr.bf16.mxu0 0
        %1446 = vmatpush1.bf16.msra.mxu0 0
        %1447 = vmatprep.subr.bf16.mxu0 0
        %1448 = vmatpush1.bf16.msra.mxu0 0
        %1449 = vmatprep.subr.bf16.mxu0 0
        %1450 = vmatpush1.bf16.msra.mxu0 0
        %1451 = vmatprep.subr.bf16.mxu0 0
        %1452 = vmatpush1.bf16.msra.mxu0 0
        %1453 = vmatprep.subr.bf16.mxu0 0
        %1454 = vmatpush1.bf16.msra.mxu0 0
        %1455 = vmatprep.subr.bf16.mxu0 0
        %1456 = vmatpush1.bf16.msra.mxu0 0
        %1457 = vmatprep.mubr.bf16.mxu0 0
        %1458 = vmatmul.mubr.bf16.gmra.mrb[0].mxu0 %v1356
        %v1459 = vpop.f32.mrb[0].mxu0
        %v1460 = vadd.f32 0.0, %v1459
        %v1461 = vpop.f32.mrb[0].mxu0
        %v1462 = vpop.f32.mrb[0].mxu0
        %v1463 = vadd.f32 0.0, %v1462
        %v1464 = vpop.f32.mrb[0].mxu0
        %1465 = vmatprep.mubr.bf16.mxu0 0
        %1466 = vmatmul.mubr.bf16.gmra.mrb[0].mxu0 %v1357
        %v1467 = vpop.f32.mrb[0].mxu0
        %v1468 = vadd.f32 0.0, %v1467
        %v1469 = vpop.f32.mrb[0].mxu0
        %v1470 = vpop.f32.mrb[0].mxu0
        %v1471 = vadd.f32 0.0, %v1470
        %v1472 = vpop.f32.mrb[0].mxu0
        %1473 = vmatprep.mubr.bf16.mxu0 0
        %1474 = vmatmul.mubr.bf16.gmra.mrb[0].mxu0 %v1358
        %v1475 = vpop.f32.mrb[0].mxu0
        %v1476 = vadd.f32 0.0, %v1475
        %v1477 = vpop.f32.mrb[0].mxu0
        %v1478 = vpop.f32.mrb[0].mxu0
        %v1479 = vadd.f32 0.0, %v1478
        %v1480 = vpop.f32.mrb[0].mxu0
        %1481 = vmatprep.mubr.bf16.mxu0 0
        %1482 = vmatmul.mubr.bf16.gmra.mrb[0].mxu0 %v1359
        %v1483 = vpop.f32.mrb[0].mxu0
        %v1484 = vadd.f32 0.0, %v1483
        %v1485 = vpop.f32.mrb[0].mxu0
        %v1486 = vpop.f32.mrb[0].mxu0
        %v1487 = vadd.f32 0.0, %v1486
        %v1488 = vpop.f32.mrb[0].mxu0
        %1489 = vdwg.mxu0
        %v1490 = vadd.f32 %v1340, %v1460
        %v1491 = vadd.f32 %v1341, %v1463
        %v1492 = vadd.f32 %v1342, %v1468
        %v1493 = vadd.f32 %v1343, %v1471
        %v1494 = vadd.f32 %v1344, %v1476
        %v1495 = vadd.f32 %v1345, %v1479
        %v1496 = vadd.f32 %v1346, %v1484
        %v1497 = vadd.f32 %v1347, %v1487
        %v1498 = vld [vmem:[%s756 + $0x2] sm:$0xff]
        %v1499 = vld [vmem:[%s756 + $0x12] sm:$0xff]
        %v1500 = vld [vmem:[%s756 + $0x22] sm:$0xff]
        %v1501 = vld [vmem:[%s756 + $0x32] sm:$0xff]
        %v1502 = vld [vmem:[%s756 + $0x42] sm:$0xff]
        %v1503 = vld [vmem:[%s756 + $0x52] sm:$0xff]
        %v1504 = vld [vmem:[%s756 + $0x62] sm:$0xff]
        %v1505 = vld [vmem:[%s756 + $0x72] sm:$0xff]
        %v1506 = vpack.c.bf16 %v1499, %v1498
        %v1507 = vpack.c.bf16 %v1501, %v1500
        %v1508 = vpack.c.bf16 %v1503, %v1502
        %v1509 = vpack.c.bf16 %v1505, %v1504
        %s1510 = scalar_lea.vmem %s4, 320
        %v1511 = vld [vmem:[%s1510] sm:$0xf]
        %v1512 = vld [vmem:[%s1510 + $0x4] sm:$0xf]
        %v1513 = vld [vmem:[%s1510 + $0x8] sm:$0xf]
        %v1514 = vld [vmem:[%s1510 + $0xc] sm:$0xf]
        %v1515 = vld [vmem:[%s1510 + $0x10] sm:$0xf]
        %v1516 = vld [vmem:[%s1510 + $0x14] sm:$0xf]
        %v1517 = vld [vmem:[%s1510 + $0x18] sm:$0xf]
        %v1518 = vld [vmem:[%s1510 + $0x1c] sm:$0xf]
        %v1519 = vld [vmem:[%s1510 + $0x20] sm:$0xf]
        %v1520 = vld [vmem:[%s1510 + $0x24] sm:$0xf]
        %v1521 = vld [vmem:[%s1510 + $0x28] sm:$0xf]
        %v1522 = vld [vmem:[%s1510 + $0x2c] sm:$0xf]
        %v1523 = vld [vmem:[%s1510 + $0x30] sm:$0xf]
        %v1524 = vld [vmem:[%s1510 + $0x34] sm:$0xf]
        %v1525 = vld [vmem:[%s1510 + $0x38] sm:$0xf]
        %v1526 = vld [vmem:[%s1510 + $0x3c] sm:$0xf]
        %v1543 = vunpack.c.l.b16 %v1511
        %v1544 = vunpack.c.l.b16 %v1512
        %v1545 = vunpack.c.l.b16 %v1513
        %v1546 = vunpack.c.l.b16 %v1514
        %v1547 = vunpack.c.l.b16 %v1515
        %v1548 = vunpack.c.l.b16 %v1516
        %v1549 = vunpack.c.l.b16 %v1517
        %v1550 = vunpack.c.l.b16 %v1518
        %v1551 = vunpack.c.l.b16 %v1519
        %v1552 = vunpack.c.l.b16 %v1520
        %v1553 = vunpack.c.l.b16 %v1521
        %v1554 = vunpack.c.l.b16 %v1522
        %v1555 = vunpack.c.l.b16 %v1523
        %v1556 = vunpack.c.l.b16 %v1524
        %v1557 = vunpack.c.l.b16 %v1525
        %v1558 = vunpack.c.l.b16 %v1526
        %v1559 = vpack.c.b16 %v1544, %v1543
        %v1560 = vpack.c.b16 %v1546, %v1545
        %v1561 = vpack.c.b16 %v1548, %v1547
        %v1562 = vpack.c.b16 %v1550, %v1549
        %v1563 = vpack.c.b16 %v1552, %v1551
        %v1564 = vpack.c.b16 %v1554, %v1553
        %v1565 = vpack.c.b16 %v1556, %v1555
        %v1566 = vpack.c.b16 %v1558, %v1557
        %1575 = vmatprep.subr.bf16.mxu0 0
        %1576 = vmatpush1.bf16.msra.mxu0 %v1559
        %1577 = vmatprep.subr.bf16.mxu0 0
        %1578 = vmatpush1.bf16.msra.mxu0 %v1560
        %1579 = vmatprep.subr.bf16.mxu0 0
        %1580 = vmatpush1.bf16.msra.mxu0 %v1561
        %1581 = vmatprep.subr.bf16.mxu0 0
        %1582 = vmatpush1.bf16.msra.mxu0 %v1562
        %1583 = vmatprep.subr.bf16.mxu0 0
        %1584 = vmatpush1.bf16.msra.mxu0 %v1563
        %1585 = vmatprep.subr.bf16.mxu0 0
        %1586 = vmatpush1.bf16.msra.mxu0 %v1564
        %1587 = vmatprep.subr.bf16.mxu0 0
        %1588 = vmatpush1.bf16.msra.mxu0 %v1565
        %1589 = vmatprep.subr.bf16.mxu0 0
        %1590 = vmatpush1.bf16.msra.mxu0 %v1566
        %1591 = vmatprep.subr.bf16.mxu0 0
        %1592 = vmatpush1.bf16.msra.mxu0 0
        %1593 = vmatprep.subr.bf16.mxu0 0
        %1594 = vmatpush1.bf16.msra.mxu0 0
        %1595 = vmatprep.subr.bf16.mxu0 0
        %1596 = vmatpush1.bf16.msra.mxu0 0
        %1597 = vmatprep.subr.bf16.mxu0 0
        %1598 = vmatpush1.bf16.msra.mxu0 0
        %1599 = vmatprep.subr.bf16.mxu0 0
        %1600 = vmatpush1.bf16.msra.mxu0 0
        %1601 = vmatprep.subr.bf16.mxu0 0
        %1602 = vmatpush1.bf16.msra.mxu0 0
        %1603 = vmatprep.subr.bf16.mxu0 0
        %1604 = vmatpush1.bf16.msra.mxu0 0
        %1605 = vmatprep.subr.bf16.mxu0 0
        %1606 = vmatpush1.bf16.msra.mxu0 0
        %1607 = vmatprep.mubr.bf16.mxu0 0
        %1608 = vmatmul.mubr.bf16.gmra.mrb[0].mxu0 %v1506
        %v1609 = vpop.f32.mrb[0].mxu0
        %v1610 = vadd.f32 0.0, %v1609
        %v1611 = vpop.f32.mrb[0].mxu0
        %v1612 = vpop.f32.mrb[0].mxu0
        %v1613 = vadd.f32 0.0, %v1612
        %v1614 = vpop.f32.mrb[0].mxu0
        %1615 = vmatprep.mubr.bf16.mxu0 0
        %1616 = vmatmul.mubr.bf16.gmra.mrb[0].mxu0 %v1507
        %v1617 = vpop.f32.mrb[0].mxu0
        %v1618 = vadd.f32 0.0, %v1617
        %v1619 = vpop.f32.mrb[0].mxu0
        %v1620 = vpop.f32.mrb[0].mxu0
        %v1621 = vadd.f32 0.0, %v1620
        %v1622 = vpop.f32.mrb[0].mxu0
        %1623 = vmatprep.mubr.bf16.mxu0 0
        %1624 = vmatmul.mubr.bf16.gmra.mrb[0].mxu0 %v1508
        %v1625 = vpop.f32.mrb[0].mxu0
        %v1626 = vadd.f32 0.0, %v1625
        %v1627 = vpop.f32.mrb[0].mxu0
        %v1628 = vpop.f32.mrb[0].mxu0
        %v1629 = vadd.f32 0.0, %v1628
        %v1630 = vpop.f32.mrb[0].mxu0
        %1631 = vmatprep.mubr.bf16.mxu0 0
        %1632 = vmatmul.mubr.bf16.gmra.mrb[0].mxu0 %v1509
        %v1633 = vpop.f32.mrb[0].mxu0
        %v1634 = vadd.f32 0.0, %v1633
        %v1635 = vpop.f32.mrb[0].mxu0
        %v1636 = vpop.f32.mrb[0].mxu0
        %v1637 = vadd.f32 0.0, %v1636
        %v1638 = vpop.f32.mrb[0].mxu0
        %1639 = vdwg.mxu0
        %v1640 = vadd.f32 %v1490, %v1610
        %v1641 = vadd.f32 %v1491, %v1613
        %v1642 = vadd.f32 %v1492, %v1618
        %v1643 = vadd.f32 %v1493, %v1621
        %v1644 = vadd.f32 %v1494, %v1626
        %v1645 = vadd.f32 %v1495, %v1629
        %v1646 = vadd.f32 %v1496, %v1634
        %v1647 = vadd.f32 %v1497, %v1637
        %s1648 = scalar_lea.vmem [#allocation2], 32
        %v1649 = vld [vmem:[%s1648] sm:$0xff]
        %v1650 = vld [vmem:[%s1648 + $0x10] sm:$0xff]
        %v1651 = vld [vmem:[%s1648 + $0x20] sm:$0xff]
        %v1652 = vld [vmem:[%s1648 + $0x30] sm:$0xff]
        %v1653 = vld [vmem:[%s1648 + $0x40] sm:$0xff]
        %v1654 = vld [vmem:[%s1648 + $0x50] sm:$0xff]
        %v1655 = vld [vmem:[%s1648 + $0x60] sm:$0xff]
        %v1656 = vld [vmem:[%s1648 + $0x70] sm:$0xff]
        %v1657 = vpack.c.bf16 %v1650, %v1649
        %v1658 = vpack.c.bf16 %v1652, %v1651
        %v1659 = vpack.c.bf16 %v1654, %v1653
        %v1660 = vpack.c.bf16 %v1656, %v1655
        %s1661 = scalar_lea.vmem %s4, 384
        %v1662 = vld [vmem:[%s1661] sm:$0xf]
        %v1663 = vld [vmem:[%s1661 + $0x4] sm:$0xf]
        %v1664 = vld [vmem:[%s1661 + $0x8] sm:$0xf]
        %v1665 = vld [vmem:[%s1661 + $0xc] sm:$0xf]
        %v1666 = vld [vmem:[%s1661 + $0x10] sm:$0xf]
        %v1667 = vld [vmem:[%s1661 + $0x14] sm:$0xf]
        %v1668 = vld [vmem:[%s1661 + $0x18] sm:$0xf]
        %v1669 = vld [vmem:[%s1661 + $0x1c] sm:$0xf]
        %v1670 = vld [vmem:[%s1661 + $0x20] sm:$0xf]
        %v1671 = vld [vmem:[%s1661 + $0x24] sm:$0xf]
        %v1672 = vld [vmem:[%s1661 + $0x28] sm:$0xf]
        %v1673 = vld [vmem:[%s1661 + $0x2c] sm:$0xf]
        %v1674 = vld [vmem:[%s1661 + $0x30] sm:$0xf]
        %v1675 = vld [vmem:[%s1661 + $0x34] sm:$0xf]
        %v1676 = vld [vmem:[%s1661 + $0x38] sm:$0xf]
        %v1677 = vld [vmem:[%s1661 + $0x3c] sm:$0xf]
        %v1694 = vunpack.c.l.b16 %v1662
        %v1695 = vunpack.c.l.b16 %v1663
        %v1696 = vunpack.c.l.b16 %v1664
        %v1697 = vunpack.c.l.b16 %v1665
        %v1698 = vunpack.c.l.b16 %v1666
        %v1699 = vunpack.c.l.b16 %v1667
        %v1700 = vunpack.c.l.b16 %v1668
        %v1701 = vunpack.c.l.b16 %v1669
        %v1702 = vunpack.c.l.b16 %v1670
        %v1703 = vunpack.c.l.b16 %v1671
        %v1704 = vunpack.c.l.b16 %v1672
        %v1705 = vunpack.c.l.b16 %v1673
        %v1706 = vunpack.c.l.b16 %v1674
        %v1707 = vunpack.c.l.b16 %v1675
        %v1708 = vunpack.c.l.b16 %v1676
        %v1709 = vunpack.c.l.b16 %v1677
        %v1710 = vpack.c.b16 %v1695, %v1694
        %v1711 = vpack.c.b16 %v1697, %v1696
        %v1712 = vpack.c.b16 %v1699, %v1698
        %v1713 = vpack.c.b16 %v1701, %v1700
        %v1714 = vpack.c.b16 %v1703, %v1702
        %v1715 = vpack.c.b16 %v1705, %v1704
        %v1716 = vpack.c.b16 %v1707, %v1706
        %v1717 = vpack.c.b16 %v1709, %v1708
        %1726 = vmatprep.subr.bf16.mxu0 0
        %1727 = vmatpush1.bf16.msra.mxu0 %v1710
        %1728 = vmatprep.subr.bf16.mxu0 0
        %1729 = vmatpush1.bf16.msra.mxu0 %v1711
        %1730 = vmatprep.subr.bf16.mxu0 0
        %1731 = vmatpush1.bf16.msra.mxu0 %v1712
        %1732 = vmatprep.subr.bf16.mxu0 0
        %1733 = vmatpush1.bf16.msra.mxu0 %v1713
        %1734 = vmatprep.subr.bf16.mxu0 0
        %1735 = vmatpush1.bf16.msra.mxu0 %v1714
        %1736 = vmatprep.subr.bf16.mxu0 0
        %1737 = vmatpush1.bf16.msra.mxu0 %v1715
        %1738 = vmatprep.subr.bf16.mxu0 0
        %1739 = vmatpush1.bf16.msra.mxu0 %v1716
        %1740 = vmatprep.subr.bf16.mxu0 0
        %1741 = vmatpush1.bf16.msra.mxu0 %v1717
        %1742 = vmatprep.subr.bf16.mxu0 0
        %1743 = vmatpush1.bf16.msra.mxu0 0
        %1744 = vmatprep.subr.bf16.mxu0 0
        %1745 = vmatpush1.bf16.msra.mxu0 0
        %1746 = vmatprep.subr.bf16.mxu0 0
        %1747 = vmatpush1.bf16.msra.mxu0 0
        %1748 = vmatprep.subr.bf16.mxu0 0
        %1749 = vmatpush1.bf16.msra.mxu0 0
        %1750 = vmatprep.subr.bf16.mxu0 0
        %1751 = vmatpush1.bf16.msra.mxu0 0
        %1752 = vmatprep.subr.bf16.mxu0 0
        %1753 = vmatpush1.bf16.msra.mxu0 0
        %1754 = vmatprep.subr.bf16.mxu0 0
        %1755 = vmatpush1.bf16.msra.mxu0 0
        %1756 = vmatprep.subr.bf16.mxu0 0
        %1757 = vmatpush1.bf16.msra.mxu0 0
        %1758 = vmatprep.mubr.bf16.mxu0 0
        %1759 = vmatmul.mubr.bf16.gmra.mrb[0].mxu0 %v1657
        %v1760 = vpop.f32.mrb[0].mxu0
        %v1761 = vadd.f32 0.0, %v1760
        %v1762 = vpop.f32.mrb[0].mxu0
        %v1763 = vpop.f32.mrb[0].mxu0
        %v1764 = vadd.f32 0.0, %v1763
        %v1765 = vpop.f32.mrb[0].mxu0
        %1766 = vmatprep.mubr.bf16.mxu0 0
        %1767 = vmatmul.mubr.bf16.gmra.mrb[0].mxu0 %v1658
        %v1768 = vpop.f32.mrb[0].mxu0
        %v1769 = vadd.f32 0.0, %v1768
        %v1770 = vpop.f32.mrb[0].mxu0
        %v1771 = vpop.f32.mrb[0].mxu0
        %v1772 = vadd.f32 0.0, %v1771
        %v1773 = vpop.f32.mrb[0].mxu0
        %1774 = vmatprep.mubr.bf16.mxu0 0
        %1775 = vmatmul.mubr.bf16.gmra.mrb[0].mxu0 %v1659
        %v1776 = vpop.f32.mrb[0].mxu0
        %v1777 = vadd.f32 0.0, %v1776
        %v1778 = vpop.f32.mrb[0].mxu0
        %v1779 = vpop.f32.mrb[0].mxu0
        %v1780 = vadd.f32 0.0, %v1779
        %v1781 = vpop.f32.mrb[0].mxu0
        %1782 = vmatprep.mubr.bf16.mxu0 0
        %1783 = vmatmul.mubr.bf16.gmra.mrb[0].mxu0 %v1660
        %v1784 = vpop.f32.mrb[0].mxu0
        %v1785 = vadd.f32 0.0, %v1784
        %v1786 = vpop.f32.mrb[0].mxu0
        %v1787 = vpop.f32.mrb[0].mxu0
        %v1788 = vadd.f32 0.0, %v1787
        %v1789 = vpop.f32.mrb[0].mxu0
        %1790 = vdwg.mxu0
        %v1791 = vadd.f32 %v1640, %v1761
        %v1792 = vadd.f32 %v1641, %v1764
        %v1793 = vadd.f32 %v1642, %v1769
        %v1794 = vadd.f32 %v1643, %v1772
        %v1795 = vadd.f32 %v1644, %v1777
        %v1796 = vadd.f32 %v1645, %v1780
        %v1797 = vadd.f32 %v1646, %v1785
        %v1798 = vadd.f32 %v1647, %v1788
        %v1799 = vld [vmem:[%s1648 + $0x1] sm:$0xff]
        %v1800 = vld [vmem:[%s1648 + $0x11] sm:$0xff]
        %v1801 = vld [vmem:[%s1648 + $0x21] sm:$0xff]
        %v1802 = vld [vmem:[%s1648 + $0x31] sm:$0xff]
        %v1803 = vld [vmem:[%s1648 + $0x41] sm:$0xff]
        %v1804 = vld [vmem:[%s1648 + $0x51] sm:$0xff]
        %v1805 = vld [vmem:[%s1648 + $0x61] sm:$0xff]
        %v1806 = vld [vmem:[%s1648 + $0x71] sm:$0xff]
        %v1807 = vpack.c.bf16 %v1800, %v1799
        %v1808 = vpack.c.bf16 %v1802, %v1801
        %v1809 = vpack.c.bf16 %v1804, %v1803
        %v1810 = vpack.c.bf16 %v1806, %v1805
        %s1811 = scalar_lea.vmem %s4, 448
        %v1812 = vld [vmem:[%s1811] sm:$0xf]
        %v1813 = vld [vmem:[%s1811 + $0x4] sm:$0xf]
        %v1814 = vld [vmem:[%s1811 + $0x8] sm:$0xf]
        %v1815 = vld [vmem:[%s1811 + $0xc] sm:$0xf]
        %v1816 = vld [vmem:[%s1811 + $0x10] sm:$0xf]
        %v1817 = vld [vmem:[%s1811 + $0x14] sm:$0xf]
        %v1818 = vld [vmem:[%s1811 + $0x18] sm:$0xf]
        %v1819 = vld [vmem:[%s1811 + $0x1c] sm:$0xf]
        %v1820 = vld [vmem:[%s1811 + $0x20] sm:$0xf]
        %v1821 = vld [vmem:[%s1811 + $0x24] sm:$0xf]
        %v1822 = vld [vmem:[%s1811 + $0x28] sm:$0xf]
        %v1823 = vld [vmem:[%s1811 + $0x2c] sm:$0xf]
        %v1824 = vld [vmem:[%s1811 + $0x30] sm:$0xf]
        %v1825 = vld [vmem:[%s1811 + $0x34] sm:$0xf]
        %v1826 = vld [vmem:[%s1811 + $0x38] sm:$0xf]
        %v1827 = vld [vmem:[%s1811 + $0x3c] sm:$0xf]
        %v1844 = vunpack.c.l.b16 %v1812
        %v1845 = vunpack.c.l.b16 %v1813
        %v1846 = vunpack.c.l.b16 %v1814
        %v1847 = vunpack.c.l.b16 %v1815
        %v1848 = vunpack.c.l.b16 %v1816
        %v1849 = vunpack.c.l.b16 %v1817
        %v1850 = vunpack.c.l.b16 %v1818
        %v1851 = vunpack.c.l.b16 %v1819
        %v1852 = vunpack.c.l.b16 %v1820
        %v1853 = vunpack.c.l.b16 %v1821
        %v1854 = vunpack.c.l.b16 %v1822
        %v1855 = vunpack.c.l.b16 %v1823
        %v1856 = vunpack.c.l.b16 %v1824
        %v1857 = vunpack.c.l.b16 %v1825
        %v1858 = vunpack.c.l.b16 %v1826
        %v1859 = vunpack.c.l.b16 %v1827
        %v1860 = vpack.c.b16 %v1845, %v1844
        %v1861 = vpack.c.b16 %v1847, %v1846
        %v1862 = vpack.c.b16 %v1849, %v1848
        %v1863 = vpack.c.b16 %v1851, %v1850
        %v1864 = vpack.c.b16 %v1853, %v1852
        %v1865 = vpack.c.b16 %v1855, %v1854
        %v1866 = vpack.c.b16 %v1857, %v1856
        %v1867 = vpack.c.b16 %v1859, %v1858
        %1876 = vmatprep.subr.bf16.mxu0 0
        %1877 = vmatpush1.bf16.msra.mxu0 %v1860
        %1878 = vmatprep.subr.bf16.mxu0 0
        %1879 = vmatpush1.bf16.msra.mxu0 %v1861
        %1880 = vmatprep.subr.bf16.mxu0 0
        %1881 = vmatpush1.bf16.msra.mxu0 %v1862
        %1882 = vmatprep.subr.bf16.mxu0 0
        %1883 = vmatpush1.bf16.msra.mxu0 %v1863
        %1884 = vmatprep.subr.bf16.mxu0 0
        %1885 = vmatpush1.bf16.msra.mxu0 %v1864
        %1886 = vmatprep.subr.bf16.mxu0 0
        %1887 = vmatpush1.bf16.msra.mxu0 %v1865
        %1888 = vmatprep.subr.bf16.mxu0 0
        %1889 = vmatpush1.bf16.msra.mxu0 %v1866
        %1890 = vmatprep.subr.bf16.mxu0 0
        %1891 = vmatpush1.bf16.msra.mxu0 %v1867
        %1892 = vmatprep.subr.bf16.mxu0 0
        %1893 = vmatpush1.bf16.msra.mxu0 0
        %1894 = vmatprep.subr.bf16.mxu0 0
        %1895 = vmatpush1.bf16.msra.mxu0 0
        %1896 = vmatprep.subr.bf16.mxu0 0
        %1897 = vmatpush1.bf16.msra.mxu0 0
        %1898 = vmatprep.subr.bf16.mxu0 0
        %1899 = vmatpush1.bf16.msra.mxu0 0
        %1900 = vmatprep.subr.bf16.mxu0 0
        %1901 = vmatpush1.bf16.msra.mxu0 0
        %1902 = vmatprep.subr.bf16.mxu0 0
        %1903 = vmatpush1.bf16.msra.mxu0 0
        %1904 = vmatprep.subr.bf16.mxu0 0
        %1905 = vmatpush1.bf16.msra.mxu0 0
        %1906 = vmatprep.subr.bf16.mxu0 0
        %1907 = vmatpush1.bf16.msra.mxu0 0
        %1908 = vmatprep.mubr.bf16.mxu0 0
        %1909 = vmatmul.mubr.bf16.gmra.mrb[0].mxu0 %v1807
        %v1910 = vpop.f32.mrb[0].mxu0
        %v1911 = vadd.f32 0.0, %v1910
        %v1912 = vpop.f32.mrb[0].mxu0
        %v1913 = vpop.f32.mrb[0].mxu0
        %v1914 = vadd.f32 0.0, %v1913
        %v1915 = vpop.f32.mrb[0].mxu0
        %1916 = vmatprep.mubr.bf16.mxu0 0
        %1917 = vmatmul.mubr.bf16.gmra.mrb[0].mxu0 %v1808
        %v1918 = vpop.f32.mrb[0].mxu0
        %v1919 = vadd.f32 0.0, %v1918
        %v1920 = vpop.f32.mrb[0].mxu0
        %v1921 = vpop.f32.mrb[0].mxu0
        %v1922 = vadd.f32 0.0, %v1921
        %v1923 = vpop.f32.mrb[0].mxu0
        %1924 = vmatprep.mubr.bf16.mxu0 0
        %1925 = vmatmul.mubr.bf16.gmra.mrb[0].mxu0 %v1809
        %v1926 = vpop.f32.mrb[0].mxu0
        %v1927 = vadd.f32 0.0, %v1926
        %v1928 = vpop.f32.mrb[0].mxu0
        %v1929 = vpop.f32.mrb[0].mxu0
        %v1930 = vadd.f32 0.0, %v1929
        %v1931 = vpop.f32.mrb[0].mxu0
        %1932 = vmatprep.mubr.bf16.mxu0 0
        %1933 = vmatmul.mubr.bf16.gmra.mrb[0].mxu0 %v1810
        %v1934 = vpop.f32.mrb[0].mxu0
        %v1935 = vadd.f32 0.0, %v1934
        %v1936 = vpop.f32.mrb[0].mxu0
        %v1937 = vpop.f32.mrb[0].mxu0
        %v1938 = vadd.f32 0.0, %v1937
        %v1939 = vpop.f32.mrb[0].mxu0
        %1940 = vdwg.mxu0
        %v1941 = vadd.f32 %v1791, %v1911
        %v1942 = vadd.f32 %v1792, %v1914
        %v1943 = vadd.f32 %v1793, %v1919
        %v1944 = vadd.f32 %v1794, %v1922
        %v1945 = vadd.f32 %v1795, %v1927
        %v1946 = vadd.f32 %v1796, %v1930
        %v1947 = vadd.f32 %v1797, %v1935
        %v1948 = vadd.f32 %v1798, %v1938
        %v1949 = vld [vmem:[%s1648 + $0x2] sm:$0xff]
        %v1950 = vld [vmem:[%s1648 + $0x12] sm:$0xff]
        %v1951 = vld [vmem:[%s1648 + $0x22] sm:$0xff]
        %v1952 = vld [vmem:[%s1648 + $0x32] sm:$0xff]
        %v1953 = vld [vmem:[%s1648 + $0x42] sm:$0xff]
        %v1954 = vld [vmem:[%s1648 + $0x52] sm:$0xff]
        %v1955 = vld [vmem:[%s1648 + $0x62] sm:$0xff]
        %v1956 = vld [vmem:[%s1648 + $0x72] sm:$0xff]
        %v1957 = vpack.c.bf16 %v1950, %v1949
        %v1958 = vpack.c.bf16 %v1952, %v1951
        %v1959 = vpack.c.bf16 %v1954, %v1953
        %v1960 = vpack.c.bf16 %v1956, %v1955
        %s1961 = scalar_lea.vmem %s4, 512
        %v1962 = vld [vmem:[%s1961] sm:$0xf]
        %v1963 = vld [vmem:[%s1961 + $0x4] sm:$0xf]
        %v1964 = vld [vmem:[%s1961 + $0x8] sm:$0xf]
        %v1965 = vld [vmem:[%s1961 + $0xc] sm:$0xf]
        %v1966 = vld [vmem:[%s1961 + $0x10] sm:$0xf]
        %v1967 = vld [vmem:[%s1961 + $0x14] sm:$0xf]
        %v1968 = vld [vmem:[%s1961 + $0x18] sm:$0xf]
        %v1969 = vld [vmem:[%s1961 + $0x1c] sm:$0xf]
        %v1970 = vld [vmem:[%s1961 + $0x20] sm:$0xf]
        %v1971 = vld [vmem:[%s1961 + $0x24] sm:$0xf]
        %v1972 = vld [vmem:[%s1961 + $0x28] sm:$0xf]
        %v1973 = vld [vmem:[%s1961 + $0x2c] sm:$0xf]
        %v1974 = vld [vmem:[%s1961 + $0x30] sm:$0xf]
        %v1975 = vld [vmem:[%s1961 + $0x34] sm:$0xf]
        %v1976 = vld [vmem:[%s1961 + $0x38] sm:$0xf]
        %v1977 = vld [vmem:[%s1961 + $0x3c] sm:$0xf]
        %v1994 = vunpack.c.l.b16 %v1962
        %v1995 = vunpack.c.l.b16 %v1963
        %v1996 = vunpack.c.l.b16 %v1964
        %v1997 = vunpack.c.l.b16 %v1965
        %v1998 = vunpack.c.l.b16 %v1966
        %v1999 = vunpack.c.l.b16 %v1967
        %v2000 = vunpack.c.l.b16 %v1968
        %v2001 = vunpack.c.l.b16 %v1969
        %v2002 = vunpack.c.l.b16 %v1970
        %v2003 = vunpack.c.l.b16 %v1971
        %v2004 = vunpack.c.l.b16 %v1972
        %v2005 = vunpack.c.l.b16 %v1973
        %v2006 = vunpack.c.l.b16 %v1974
        %v2007 = vunpack.c.l.b16 %v1975
        %v2008 = vunpack.c.l.b16 %v1976
        %v2009 = vunpack.c.l.b16 %v1977
        %v2010 = vpack.c.b16 %v1995, %v1994
        %v2011 = vpack.c.b16 %v1997, %v1996
        %v2012 = vpack.c.b16 %v1999, %v1998
        %v2013 = vpack.c.b16 %v2001, %v2000
        %v2014 = vpack.c.b16 %v2003, %v2002
        %v2015 = vpack.c.b16 %v2005, %v2004
        %v2016 = vpack.c.b16 %v2007, %v2006
        %v2017 = vpack.c.b16 %v2009, %v2008
        %2026 = vmatprep.subr.bf16.mxu0 0
        %2027 = vmatpush1.bf16.msra.mxu0 %v2010
        %2028 = vmatprep.subr.bf16.mxu0 0
        %2029 = vmatpush1.bf16.msra.mxu0 %v2011
        %2030 = vmatprep.subr.bf16.mxu0 0
        %2031 = vmatpush1.bf16.msra.mxu0 %v2012
        %2032 = vmatprep.subr.bf16.mxu0 0
        %2033 = vmatpush1.bf16.msra.mxu0 %v2013
        %2034 = vmatprep.subr.bf16.mxu0 0
        %2035 = vmatpush1.bf16.msra.mxu0 %v2014
        %2036 = vmatprep.subr.bf16.mxu0 0
        %2037 = vmatpush1.bf16.msra.mxu0 %v2015
        %2038 = vmatprep.subr.bf16.mxu0 0
        %2039 = vmatpush1.bf16.msra.mxu0 %v2016
        %2040 = vmatprep.subr.bf16.mxu0 0
        %2041 = vmatpush1.bf16.msra.mxu0 %v2017
        %2042 = vmatprep.subr.bf16.mxu0 0
        %2043 = vmatpush1.bf16.msra.mxu0 0
        %2044 = vmatprep.subr.bf16.mxu0 0
        %2045 = vmatpush1.bf16.msra.mxu0 0
        %2046 = vmatprep.subr.bf16.mxu0 0
        %2047 = vmatpush1.bf16.msra.mxu0 0
        %2048 = vmatprep.subr.bf16.mxu0 0
        %2049 = vmatpush1.bf16.msra.mxu0 0
        %2050 = vmatprep.subr.bf16.mxu0 0
        %2051 = vmatpush1.bf16.msra.mxu0 0
        %2052 = vmatprep.subr.bf16.mxu0 0
        %2053 = vmatpush1.bf16.msra.mxu0 0
        %2054 = vmatprep.subr.bf16.mxu0 0
        %2055 = vmatpush1.bf16.msra.mxu0 0
        %2056 = vmatprep.subr.bf16.mxu0 0
        %2057 = vmatpush1.bf16.msra.mxu0 0
        %2058 = vmatprep.mubr.bf16.mxu0 0
        %2059 = vmatmul.mubr.bf16.gmra.mrb[0].mxu0 %v1957
        %v2060 = vpop.f32.mrb[0].mxu0
        %v2061 = vadd.f32 0.0, %v2060
        %v2062 = vpop.f32.mrb[0].mxu0
        %v2063 = vpop.f32.mrb[0].mxu0
        %v2064 = vadd.f32 0.0, %v2063
        %v2065 = vpop.f32.mrb[0].mxu0
        %2066 = vmatprep.mubr.bf16.mxu0 0
        %2067 = vmatmul.mubr.bf16.gmra.mrb[0].mxu0 %v1958
        %v2068 = vpop.f32.mrb[0].mxu0
        %v2069 = vadd.f32 0.0, %v2068
        %v2070 = vpop.f32.mrb[0].mxu0
        %v2071 = vpop.f32.mrb[0].mxu0
        %v2072 = vadd.f32 0.0, %v2071
        %v2073 = vpop.f32.mrb[0].mxu0
        %2074 = vmatprep.mubr.bf16.mxu0 0
        %2075 = vmatmul.mubr.bf16.gmra.mrb[0].mxu0 %v1959
        %v2076 = vpop.f32.mrb[0].mxu0
        %v2077 = vadd.f32 0.0, %v2076
        %v2078 = vpop.f32.mrb[0].mxu0
        %v2079 = vpop.f32.mrb[0].mxu0
        %v2080 = vadd.f32 0.0, %v2079
        %v2081 = vpop.f32.mrb[0].mxu0
        %2082 = vmatprep.mubr.bf16.mxu0 0
        %2083 = vmatmul.mubr.bf16.gmra.mrb[0].mxu0 %v1960
        %v2084 = vpop.f32.mrb[0].mxu0
        %v2085 = vadd.f32 0.0, %v2084
        %v2086 = vpop.f32.mrb[0].mxu0
        %v2087 = vpop.f32.mrb[0].mxu0
        %v2088 = vadd.f32 0.0, %v2087
        %v2089 = vpop.f32.mrb[0].mxu0
        %2090 = vdwg.mxu0
        %v2091 = vadd.f32 %v1941, %v2061
        %v2092 = vadd.f32 %v1942, %v2064
        %v2093 = vadd.f32 %v1943, %v2069
        %v2094 = vadd.f32 %v1944, %v2072
        %v2095 = vadd.f32 %v1945, %v2077
        %v2096 = vadd.f32 %v1946, %v2080
        %v2097 = vadd.f32 %v1947, %v2085
        %v2098 = vadd.f32 %v1948, %v2088
        %v2107 = vcombine.high %v2091, %v2091
        %v2109 = vunpack.c.l.s4 1983009808
        %v2110 = vunpack.c.0.s8 %v2109
        %v2111 = vlaneseq
        %v2112 = vshrl.u32 %v2111, 7
        %v2113 = vsub.s32 %v2110, %v2112
        %v2114 = vrot.slane %v2091, %v2113
        %v2116 = vunpack.c.l.s4 1983009808
        %v2117 = vunpack.c.0.s8 %v2116
        %v2118 = vlaneseq
        %v2119 = vshrl.u32 %v2118, 7
        %v2120 = vsub.s32 %v2117, %v2119
        %v2121 = vrot.slane %v2107, %v2120
        %v2122 = vcombine.high %v2114, %v2114
        %v2123 = vcombine.high %v2121, %v2121
        %v2124 = vcombine.high %v2092, %v2092
        %v2126 = vunpack.c.l.s4 1983009808
        %v2127 = vunpack.c.0.s8 %v2126
        %v2128 = vlaneseq
        %v2129 = vshrl.u32 %v2128, 7
        %v2130 = vsub.s32 %v2127, %v2129
        %v2131 = vrot.slane %v2092, %v2130
        %v2133 = vunpack.c.l.s4 1983009808
        %v2134 = vunpack.c.0.s8 %v2133
        %v2135 = vlaneseq
        %v2136 = vshrl.u32 %v2135, 7
        %v2137 = vsub.s32 %v2134, %v2136
        %v2138 = vrot.slane %v2124, %v2137
        %v2139 = vcombine.high %v2131, %v2131
        %v2140 = vcombine.high %v2138, %v2138
        %v2141 = vcombine.high %v2093, %v2093
        %v2143 = vunpack.c.l.s4 1983009808
        %v2144 = vunpack.c.0.s8 %v2143
        %v2145 = vlaneseq
        %v2146 = vshrl.u32 %v2145, 7
        %v2147 = vsub.s32 %v2144, %v2146
        %v2148 = vrot.slane %v2093, %v2147
        %v2150 = vunpack.c.l.s4 1983009808
        %v2151 = vunpack.c.0.s8 %v2150
        %v2152 = vlaneseq
        %v2153 = vshrl.u32 %v2152, 7
        %v2154 = vsub.s32 %v2151, %v2153
        %v2155 = vrot.slane %v2141, %v2154
        %v2156 = vcombine.high %v2148, %v2148
        %v2157 = vcombine.high %v2155, %v2155
        %v2158 = vcombine.high %v2094, %v2094
        %v2160 = vunpack.c.l.s4 1983009808
        %v2161 = vunpack.c.0.s8 %v2160
        %v2162 = vlaneseq
        %v2163 = vshrl.u32 %v2162, 7
        %v2164 = vsub.s32 %v2161, %v2163
        %v2165 = vrot.slane %v2094, %v2164
        %v2167 = vunpack.c.l.s4 1983009808
        %v2168 = vunpack.c.0.s8 %v2167
        %v2169 = vlaneseq
        %v2170 = vshrl.u32 %v2169, 7
        %v2171 = vsub.s32 %v2168, %v2170
        %v2172 = vrot.slane %v2158, %v2171
        %v2173 = vcombine.high %v2165, %v2165
        %v2174 = vcombine.high %v2172, %v2172
        %v2175 = vcombine.high %v2095, %v2095
        %v2177 = vunpack.c.l.s4 1983009808
        %v2178 = vunpack.c.0.s8 %v2177
        %v2179 = vlaneseq
        %v2180 = vshrl.u32 %v2179, 7
        %v2181 = vsub.s32 %v2178, %v2180
        %v2182 = vrot.slane %v2095, %v2181
        %v2184 = vunpack.c.l.s4 1983009808
        %v2185 = vunpack.c.0.s8 %v2184
        %v2186 = vlaneseq
        %v2187 = vshrl.u32 %v2186, 7
        %v2188 = vsub.s32 %v2185, %v2187
        %v2189 = vrot.slane %v2175, %v2188
        %v2190 = vcombine.high %v2182, %v2182
        %v2191 = vcombine.high %v2189, %v2189
        %v2192 = vcombine.high %v2096, %v2096
        %v2194 = vunpack.c.l.s4 1983009808
        %v2195 = vunpack.c.0.s8 %v2194
        %v2196 = vlaneseq
        %v2197 = vshrl.u32 %v2196, 7
        %v2198 = vsub.s32 %v2195, %v2197
        %v2199 = vrot.slane %v2096, %v2198
        %v2201 = vunpack.c.l.s4 1983009808
        %v2202 = vunpack.c.0.s8 %v2201
        %v2203 = vlaneseq
        %v2204 = vshrl.u32 %v2203, 7
        %v2205 = vsub.s32 %v2202, %v2204
        %v2206 = vrot.slane %v2192, %v2205
        %v2207 = vcombine.high %v2199, %v2199
        %v2208 = vcombine.high %v2206, %v2206
        %v2209 = vcombine.high %v2097, %v2097
        %v2211 = vunpack.c.l.s4 1983009808
        %v2212 = vunpack.c.0.s8 %v2211
        %v2213 = vlaneseq
        %v2214 = vshrl.u32 %v2213, 7
        %v2215 = vsub.s32 %v2212, %v2214
        %v2216 = vrot.slane %v2097, %v2215
        %v2218 = vunpack.c.l.s4 1983009808
        %v2219 = vunpack.c.0.s8 %v2218
        %v2220 = vlaneseq
        %v2221 = vshrl.u32 %v2220, 7
        %v2222 = vsub.s32 %v2219, %v2221
        %v2223 = vrot.slane %v2209, %v2222
        %v2224 = vcombine.high %v2216, %v2216
        %v2225 = vcombine.high %v2223, %v2223
        %v2226 = vcombine.high %v2098, %v2098
        %v2228 = vunpack.c.l.s4 1983009808
        %v2229 = vunpack.c.0.s8 %v2228
        %v2230 = vlaneseq
        %v2231 = vshrl.u32 %v2230, 7
        %v2232 = vsub.s32 %v2229, %v2231
        %v2233 = vrot.slane %v2098, %v2232
        %v2235 = vunpack.c.l.s4 1983009808
        %v2236 = vunpack.c.0.s8 %v2235
        %v2237 = vlaneseq
        %v2238 = vshrl.u32 %v2237, 7
        %v2239 = vsub.s32 %v2236, %v2238
        %v2240 = vrot.slane %v2226, %v2239
        %v2241 = vcombine.high %v2233, %v2233
        %v2242 = vcombine.high %v2240, %v2240
        %v2275 = vrot.slane %v2114, 7
        %v2276 = vrot.slane %v2275, 2
        %v2277 = vrot.slane %v2122, 7
        %v2278 = vrot.slane %v2277, 2
        %v2279 = vrot.slane %v2121, 7
        %v2280 = vrot.slane %v2279, 2
        %v2281 = vrot.slane %v2123, 7
        %v2282 = vrot.slane %v2281, 2
        %v2283 = vrot.slane %v2131, 7
        %v2284 = vrot.slane %v2283, 2
        %v2285 = vrot.slane %v2139, 7
        %v2286 = vrot.slane %v2285, 2
        %v2287 = vrot.slane %v2138, 7
        %v2288 = vrot.slane %v2287, 2
        %v2289 = vrot.slane %v2140, 7
        %v2290 = vrot.slane %v2289, 2
        %v2291 = vrot.slane %v2148, 7
        %v2292 = vrot.slane %v2291, 2
        %v2293 = vrot.slane %v2156, 7
        %v2294 = vrot.slane %v2293, 2
        %v2295 = vrot.slane %v2155, 7
        %v2296 = vrot.slane %v2295, 2
        %v2297 = vrot.slane %v2157, 7
        %v2298 = vrot.slane %v2297, 2
        %v2299 = vrot.slane %v2165, 7
        %v2300 = vrot.slane %v2299, 2
        %v2301 = vrot.slane %v2173, 7
        %v2302 = vrot.slane %v2301, 2
        %v2303 = vrot.slane %v2172, 7
        %v2304 = vrot.slane %v2303, 2
        %v2305 = vrot.slane %v2174, 7
        %v2306 = vrot.slane %v2305, 2
        %v2307 = vrot.slane %v2182, 7
        %v2308 = vrot.slane %v2307, 2
        %v2309 = vrot.slane %v2190, 7
        %v2310 = vrot.slane %v2309, 2
        %v2311 = vrot.slane %v2189, 7
        %v2312 = vrot.slane %v2311, 2
        %v2313 = vrot.slane %v2191, 7
        %v2314 = vrot.slane %v2313, 2
        %v2315 = vrot.slane %v2199, 7
        %v2316 = vrot.slane %v2315, 2
        %v2317 = vrot.slane %v2207, 7
        %v2318 = vrot.slane %v2317, 2
        %v2319 = vrot.slane %v2206, 7
        %v2320 = vrot.slane %v2319, 2
        %v2321 = vrot.slane %v2208, 7
        %v2322 = vrot.slane %v2321, 2
        %v2323 = vrot.slane %v2216, 7
        %v2324 = vrot.slane %v2323, 2
        %v2325 = vrot.slane %v2224, 7
        %v2326 = vrot.slane %v2325, 2
        %v2327 = vrot.slane %v2223, 7
        %v2328 = vrot.slane %v2327, 2
        %v2329 = vrot.slane %v2225, 7
        %v2330 = vrot.slane %v2329, 2
        %v2331 = vrot.slane %v2233, 7
        %v2332 = vrot.slane %v2331, 2
        %v2333 = vrot.slane %v2241, 7
        %v2334 = vrot.slane %v2333, 2
        %v2335 = vrot.slane %v2240, 7
        %v2336 = vrot.slane %v2335, 2
        %v2337 = vrot.slane %v2242, 7
        %v2338 = vrot.slane %v2337, 2
        %v2371 = vmax.f32 %v2114, %v2276
        %v2372 = vmax.f32 %v2122, %v2278
        %v2373 = vmax.f32 %v2121, %v2280
        %v2374 = vmax.f32 %v2123, %v2282
        %v2375 = vmax.f32 %v2131, %v2284
        %v2376 = vmax.f32 %v2139, %v2286
        %v2377 = vmax.f32 %v2138, %v2288
        %v2378 = vmax.f32 %v2140, %v2290
        %v2379 = vmax.f32 %v2148, %v2292
        %v2380 = vmax.f32 %v2156, %v2294
        %v2381 = vmax.f32 %v2155, %v2296
        %v2382 = vmax.f32 %v2157, %v2298
        %v2383 = vmax.f32 %v2165, %v2300
        %v2384 = vmax.f32 %v2173, %v2302
        %v2385 = vmax.f32 %v2172, %v2304
        %v2386 = vmax.f32 %v2174, %v2306
        %v2387 = vmax.f32 %v2182, %v2308
        %v2388 = vmax.f32 %v2190, %v2310
        %v2389 = vmax.f32 %v2189, %v2312
        %v2390 = vmax.f32 %v2191, %v2314
        %v2391 = vmax.f32 %v2199, %v2316
        %v2392 = vmax.f32 %v2207, %v2318
        %v2393 = vmax.f32 %v2206, %v2320
        %v2394 = vmax.f32 %v2208, %v2322
        %v2395 = vmax.f32 %v2216, %v2324
        %v2396 = vmax.f32 %v2224, %v2326
        %v2397 = vmax.f32 %v2223, %v2328
        %v2398 = vmax.f32 %v2225, %v2330
        %v2399 = vmax.f32 %v2233, %v2332
        %v2400 = vmax.f32 %v2241, %v2334
        %v2401 = vmax.f32 %v2240, %v2336
        %v2402 = vmax.f32 %v2242, %v2338
        %v2403 = vmax.f32 %v2371, %v2375
        %v2404 = vmax.f32 %v2372, %v2376
        %v2405 = vmax.f32 %v2373, %v2377
        %v2406 = vmax.f32 %v2374, %v2378
        %v2407 = vmax.f32 %v2379, %v2383
        %v2408 = vmax.f32 %v2380, %v2384
        %v2409 = vmax.f32 %v2381, %v2385
        %v2410 = vmax.f32 %v2382, %v2386
        %v2411 = vmax.f32 %v2387, %v2391
        %v2412 = vmax.f32 %v2388, %v2392
        %v2413 = vmax.f32 %v2389, %v2393
        %v2414 = vmax.f32 %v2390, %v2394
        %v2415 = vmax.f32 %v2395, %v2399
        %v2416 = vmax.f32 %v2396, %v2400
        %v2417 = vmax.f32 %v2397, %v2401
        %v2418 = vmax.f32 %v2398, %v2402
        %v2419 = vld [vmem:[%s5] sm:$0x1]
        %v2421 = vlaneseq
        %v2422 = vshrl.u32 %v2421, 7
        %v2423 = vsub.s32 0, %v2422
        %v2424 = vrot.slane %v2419, %v2423
        %v2426 = vunpack.c.l.s4 1983009808
        %v2427 = vunpack.c.0.s8 %v2426
        %v2428 = vlaneseq
        %v2429 = vshrl.u32 %v2428, 7
        %v2430 = vsub.s32 %v2427, %v2429
        %v2431 = vrot.slane %v2424, %v2430
        %v2432 = vcombine.high %v2431, %v2431
        %v2433 = vrot.slane %v2431, 1
        %v2434 = vrot.slane %v2432, 1
        %v2439 = vadd.f32 %v2403, %v2431
        %v2440 = vadd.f32 %v2404, %v2433
        %v2441 = vadd.f32 %v2405, %v2432
        %v2442 = vadd.f32 %v2406, %v2434
        %v2443 = vadd.f32 %v2407, %v2431
        %v2444 = vadd.f32 %v2408, %v2433
        %v2445 = vadd.f32 %v2409, %v2432
        %v2446 = vadd.f32 %v2410, %v2434
        %v2447 = vadd.f32 %v2411, %v2431
        %v2448 = vadd.f32 %v2412, %v2433
        %v2449 = vadd.f32 %v2413, %v2432
        %v2450 = vadd.f32 %v2414, %v2434
        %v2451 = vadd.f32 %v2415, %v2431
        %v2452 = vadd.f32 %v2416, %v2433
        %v2453 = vadd.f32 %v2417, %v2432
        %v2454 = vadd.f32 %v2418, %v2434
        %v2455 = vmax.f32 %v2439, 0.0
        %v2456 = vmax.f32 %v2440, 0.0
        %v2457 = vmax.f32 %v2441, 0.0
        %v2458 = vmax.f32 %v2442, 0.0
        %v2459 = vmax.f32 %v2443, 0.0
        %v2460 = vmax.f32 %v2444, 0.0
        %v2461 = vmax.f32 %v2445, 0.0
        %v2462 = vmax.f32 %v2446, 0.0
        %v2463 = vmax.f32 %v2447, 0.0
        %v2464 = vmax.f32 %v2448, 0.0
        %v2465 = vmax.f32 %v2449, 0.0
        %v2466 = vmax.f32 %v2450, 0.0
        %v2467 = vmax.f32 %v2451, 0.0
        %v2468 = vmax.f32 %v2452, 0.0
        %v2469 = vmax.f32 %v2453, 0.0
        %v2470 = vmax.f32 %v2454, 0.0
        %v2472 = vlaneseq
        %v2473 = vshrl.u32 %v2472, 7
        %v2474 = vsub.s32 0, %v2473
        %v2475 = vrot.slane %v2456, %v2474
        %2476 = vrot.lane.b32.xlu0 %v2475, 32
        %v2477 = vpop.permute.xlu0 %2476
        %v2480 = vlaneseq
        %v2481 = vshrl.u32 %v2480, 7
        %v2482 = vsub.s32 0, %v2481
        %v2483 = vrot.slane %v2457, %v2482
        %2484 = vrot.lane.b32.xlu0 %v2483, 64
        %v2485 = vpop.permute.xlu0 %2484
        %v2488 = vlaneseq
        %v2489 = vshrl.u32 %v2488, 7
        %v2490 = vsub.s32 0, %v2489
        %v2491 = vrot.slane %v2458, %v2490
        %2492 = vrot.lane.b32.xlu0 %v2491, 96
        %v2493 = vpop.permute.xlu0 %2492
        %v2496 = vlaneseq
        %v2497 = vshrl.u32 %v2496, 7
        %v2498 = vsub.s32 0, %v2497
        %v2499 = vrot.slane %v2460, %v2498
        %2500 = vrot.lane.b32.xlu0 %v2499, 32
        %v2501 = vpop.permute.xlu0 %2500
        %v2504 = vlaneseq
        %v2505 = vshrl.u32 %v2504, 7
        %v2506 = vsub.s32 0, %v2505
        %v2507 = vrot.slane %v2461, %v2506
        %2508 = vrot.lane.b32.xlu0 %v2507, 64
        %v2509 = vpop.permute.xlu0 %2508
        %v2512 = vlaneseq
        %v2513 = vshrl.u32 %v2512, 7
        %v2514 = vsub.s32 0, %v2513
        %v2515 = vrot.slane %v2462, %v2514
        %2516 = vrot.lane.b32.xlu0 %v2515, 96
        %v2517 = vpop.permute.xlu0 %2516
        %v2520 = vlaneseq
        %v2521 = vshrl.u32 %v2520, 7
        %v2522 = vsub.s32 0, %v2521
        %v2523 = vrot.slane %v2464, %v2522
        %2524 = vrot.lane.b32.xlu0 %v2523, 32
        %v2525 = vpop.permute.xlu0 %2524
        %v2528 = vlaneseq
        %v2529 = vshrl.u32 %v2528, 7
        %v2530 = vsub.s32 0, %v2529
        %v2531 = vrot.slane %v2465, %v2530
        %2532 = vrot.lane.b32.xlu0 %v2531, 64
        %v2533 = vpop.permute.xlu0 %2532
        %v2536 = vlaneseq
        %v2537 = vshrl.u32 %v2536, 7
        %v2538 = vsub.s32 0, %v2537
        %v2539 = vrot.slane %v2466, %v2538
        %2540 = vrot.lane.b32.xlu0 %v2539, 96
        %v2541 = vpop.permute.xlu0 %2540
        %v2544 = vlaneseq
        %v2545 = vshrl.u32 %v2544, 7
        %v2546 = vsub.s32 0, %v2545
        %v2547 = vrot.slane %v2468, %v2546
        %2548 = vrot.lane.b32.xlu0 %v2547, 32
        %v2549 = vpop.permute.xlu0 %2548
        %v2552 = vlaneseq
        %v2553 = vshrl.u32 %v2552, 7
        %v2554 = vsub.s32 0, %v2553
        %v2555 = vrot.slane %v2469, %v2554
        %2556 = vrot.lane.b32.xlu0 %v2555, 64
        %v2557 = vpop.permute.xlu0 %2556
        %v2560 = vlaneseq
        %v2561 = vshrl.u32 %v2560, 7
        %v2562 = vsub.s32 0, %v2561
        %v2563 = vrot.slane %v2470, %v2562
        %2564 = vrot.lane.b32.xlu0 %v2563, 96
        %v2565 = vpop.permute.xlu0 %2564
        %vm2567 = vcmask 261120
        %v2568 = vsel %vm2567, %v2455, %v2477
        %vm2569 = vcmask 523264
        %v2570 = vsel %vm2569, %v2568, %v2485
        %vm2571 = vcmask 785408
        %v2572 = vsel %vm2571, %v2570, %v2493
        %v2573 = vsel %vm2567, %v2459, %v2501
        %v2574 = vsel %vm2569, %v2573, %v2509
        %v2575 = vsel %vm2571, %v2574, %v2517
        %v2576 = vsel %vm2567, %v2463, %v2525
        %v2577 = vsel %vm2569, %v2576, %v2533
        %v2578 = vsel %vm2571, %v2577, %v2541
        %v2579 = vsel %vm2567, %v2467, %v2549
        %v2580 = vsel %vm2569, %v2579, %v2557
        %v2581 = vsel %vm2571, %v2580, %v2565
        %v2582 = vpack.c.bf16 %v2572, %v2572
        %v2583 = vpack.c.bf16 %v2575, %v2575
        %v2584 = vpack.c.bf16 %v2578, %v2578
        %v2585 = vpack.c.bf16 %v2581, %v2581
        %v2586 = vld [vmem:[%s6] sm:$0xf]
        %v2587 = vld [vmem:[%s6 + $0x4] sm:$0xf]
        %v2588 = vld [vmem:[%s6 + $0x8] sm:$0xf]
        %v2589 = vld [vmem:[%s6 + $0xc] sm:$0xf]
        %v2590 = vld [vmem:[%s6 + $0x10] sm:$0xf]
        %v2591 = vld [vmem:[%s6 + $0x14] sm:$0xf]
        %v2592 = vld [vmem:[%s6 + $0x18] sm:$0xf]
        %v2593 = vld [vmem:[%s6 + $0x1c] sm:$0xf]
        %v2594 = vld [vmem:[%s6 + $0x20] sm:$0xf]
        %v2595 = vld [vmem:[%s6 + $0x24] sm:$0xf]
        %v2596 = vld [vmem:[%s6 + $0x28] sm:$0xf]
        %v2597 = vld [vmem:[%s6 + $0x2c] sm:$0xf]
        %v2598 = vld [vmem:[%s6 + $0x30] sm:$0xf]
        %v2599 = vld [vmem:[%s6 + $0x34] sm:$0xf]
        %v2600 = vld [vmem:[%s6 + $0x38] sm:$0xf]
        %v2601 = vld [vmem:[%s6 + $0x3c] sm:$0xf]
        %v2602 = vld [vmem:[%s6 + $0x40] sm:$0xf]
        %v2603 = vld [vmem:[%s6 + $0x44] sm:$0xf]
        %v2604 = vld [vmem:[%s6 + $0x48] sm:$0xf]
        %v2605 = vld [vmem:[%s6 + $0x4c] sm:$0xf]
        %v2606 = vld [vmem:[%s6 + $0x50] sm:$0xf]
        %v2607 = vld [vmem:[%s6 + $0x54] sm:$0xf]
        %v2608 = vld [vmem:[%s6 + $0x58] sm:$0xf]
        %v2609 = vld [vmem:[%s6 + $0x5c] sm:$0xf]
        %v2610 = vld [vmem:[%s6 + $0x60] sm:$0xf]
        %v2611 = vld [vmem:[%s6 + $0x64] sm:$0xf]
        %v2612 = vld [vmem:[%s6 + $0x68] sm:$0xf]
        %v2613 = vld [vmem:[%s6 + $0x6c] sm:$0xf]
        %v2614 = vld [vmem:[%s6 + $0x70] sm:$0xf]
        %v2615 = vld [vmem:[%s6 + $0x74] sm:$0xf]
        %v2616 = vld [vmem:[%s6 + $0x78] sm:$0xf]
        %v2617 = vld [vmem:[%s6 + $0x7c] sm:$0xf]
        %v2618 = vld [vmem:[%s6 + $0x80] sm:$0xf]
        %v2619 = vld [vmem:[%s6 + $0x84] sm:$0xf]
        %v2620 = vld [vmem:[%s6 + $0x88] sm:$0xf]
        %v2621 = vld [vmem:[%s6 + $0x8c] sm:$0xf]
        %v2622 = vld [vmem:[%s6 + $0x90] sm:$0xf]
        %v2623 = vld [vmem:[%s6 + $0x94] sm:$0xf]
        %v2624 = vld [vmem:[%s6 + $0x98] sm:$0xf]
        %v2625 = vld [vmem:[%s6 + $0x9c] sm:$0xf]
        %v2626 = vld [vmem:[%s6 + $0xa0] sm:$0xf]
        %v2627 = vld [vmem:[%s6 + $0xa4] sm:$0xf]
        %v2628 = vld [vmem:[%s6 + $0xa8] sm:$0xf]
        %v2629 = vld [vmem:[%s6 + $0xac] sm:$0xf]
        %v2630 = vld [vmem:[%s6 + $0xb0] sm:$0xf]
        %v2631 = vld [vmem:[%s6 + $0xb4] sm:$0xf]
        %v2632 = vld [vmem:[%s6 + $0xb8] sm:$0xf]
        %v2633 = vld [vmem:[%s6 + $0xbc] sm:$0xf]
        %v2634 = vld [vmem:[%s6 + $0xc0] sm:$0xf]
        %v2635 = vld [vmem:[%s6 + $0xc4] sm:$0xf]
        %v2636 = vld [vmem:[%s6 + $0xc8] sm:$0xf]
        %v2637 = vld [vmem:[%s6 + $0xcc] sm:$0xf]
        %v2638 = vld [vmem:[%s6 + $0xd0] sm:$0xf]
        %v2639 = vld [vmem:[%s6 + $0xd4] sm:$0xf]
        %v2640 = vld [vmem:[%s6 + $0xd8] sm:$0xf]
        %v2641 = vld [vmem:[%s6 + $0xdc] sm:$0xf]
        %v2642 = vld [vmem:[%s6 + $0xe0] sm:$0xf]
        %v2643 = vld [vmem:[%s6 + $0xe4] sm:$0xf]
        %v2644 = vld [vmem:[%s6 + $0xe8] sm:$0xf]
        %v2645 = vld [vmem:[%s6 + $0xec] sm:$0xf]
        %v2646 = vld [vmem:[%s6 + $0xf0] sm:$0xf]
        %v2647 = vld [vmem:[%s6 + $0xf4] sm:$0xf]
        %v2648 = vld [vmem:[%s6 + $0xf8] sm:$0xf]
        %v2649 = vld [vmem:[%s6 + $0xfc] sm:$0xf]
        %v2650 = vld [vmem:[%s7] sm:$0x1]
        %v2715 = vunpack.c.l.b16 %v2586
        %v2716 = vunpack.c.l.b16 %v2587
        %v2717 = vunpack.c.l.b16 %v2588
        %v2718 = vunpack.c.l.b16 %v2589
        %v2719 = vunpack.c.l.b16 %v2590
        %v2720 = vunpack.c.l.b16 %v2591
        %v2721 = vunpack.c.l.b16 %v2592
        %v2722 = vunpack.c.l.b16 %v2593
        %v2723 = vunpack.c.l.b16 %v2594
        %v2724 = vunpack.c.l.b16 %v2595
        %v2725 = vunpack.c.l.b16 %v2596
        %v2726 = vunpack.c.l.b16 %v2597
        %v2727 = vunpack.c.l.b16 %v2598
        %v2728 = vunpack.c.l.b16 %v2599
        %v2729 = vunpack.c.l.b16 %v2600
        %v2730 = vunpack.c.l.b16 %v2601
        %v2731 = vunpack.c.l.b16 %v2602
        %v2732 = vunpack.c.l.b16 %v2603
        %v2733 = vunpack.c.l.b16 %v2604
        %v2734 = vunpack.c.l.b16 %v2605
        %v2735 = vunpack.c.l.b16 %v2606
        %v2736 = vunpack.c.l.b16 %v2607
        %v2737 = vunpack.c.l.b16 %v2608
        %v2738 = vunpack.c.l.b16 %v2609
        %v2739 = vunpack.c.l.b16 %v2610
        %v2740 = vunpack.c.l.b16 %v2611
        %v2741 = vunpack.c.l.b16 %v2612
        %v2742 = vunpack.c.l.b16 %v2613
        %v2743 = vunpack.c.l.b16 %v2614
        %v2744 = vunpack.c.l.b16 %v2615
        %v2745 = vunpack.c.l.b16 %v2616
        %v2746 = vunpack.c.l.b16 %v2617
        %v2747 = vunpack.c.l.b16 %v2618
        %v2748 = vunpack.c.l.b16 %v2619
        %v2749 = vunpack.c.l.b16 %v2620
        %v2750 = vunpack.c.l.b16 %v2621
        %v2751 = vunpack.c.l.b16 %v2622
        %v2752 = vunpack.c.l.b16 %v2623
        %v2753 = vunpack.c.l.b16 %v2624
        %v2754 = vunpack.c.l.b16 %v2625
        %v2755 = vunpack.c.l.b16 %v2626
        %v2756 = vunpack.c.l.b16 %v2627
        %v2757 = vunpack.c.l.b16 %v2628
        %v2758 = vunpack.c.l.b16 %v2629
        %v2759 = vunpack.c.l.b16 %v2630
        %v2760 = vunpack.c.l.b16 %v2631
        %v2761 = vunpack.c.l.b16 %v2632
        %v2762 = vunpack.c.l.b16 %v2633
        %v2763 = vunpack.c.l.b16 %v2634
        %v2764 = vunpack.c.l.b16 %v2635
        %v2765 = vunpack.c.l.b16 %v2636
        %v2766 = vunpack.c.l.b16 %v2637
        %v2767 = vunpack.c.l.b16 %v2638
        %v2768 = vunpack.c.l.b16 %v2639
        %v2769 = vunpack.c.l.b16 %v2640
        %v2770 = vunpack.c.l.b16 %v2641
        %v2771 = vunpack.c.l.b16 %v2642
        %v2772 = vunpack.c.l.b16 %v2643
        %v2773 = vunpack.c.l.b16 %v2644
        %v2774 = vunpack.c.l.b16 %v2645
        %v2775 = vunpack.c.l.b16 %v2646
        %v2776 = vunpack.c.l.b16 %v2647
        %v2777 = vunpack.c.l.b16 %v2648
        %v2778 = vunpack.c.l.b16 %v2649
        %v2779 = vpack.c.b16 %v2716, %v2715
        %v2780 = vpack.c.b16 %v2718, %v2717
        %v2781 = vpack.c.b16 %v2720, %v2719
        %v2782 = vpack.c.b16 %v2722, %v2721
        %v2783 = vpack.c.b16 %v2724, %v2723
        %v2784 = vpack.c.b16 %v2726, %v2725
        %v2785 = vpack.c.b16 %v2728, %v2727
        %v2786 = vpack.c.b16 %v2730, %v2729
        %v2787 = vpack.c.b16 %v2732, %v2731
        %v2788 = vpack.c.b16 %v2734, %v2733
        %v2789 = vpack.c.b16 %v2736, %v2735
        %v2790 = vpack.c.b16 %v2738, %v2737
        %v2791 = vpack.c.b16 %v2740, %v2739
        %v2792 = vpack.c.b16 %v2742, %v2741
        %v2793 = vpack.c.b16 %v2744, %v2743
        %v2794 = vpack.c.b16 %v2746, %v2745
        %v2795 = vpack.c.b16 %v2748, %v2747
        %v2796 = vpack.c.b16 %v2750, %v2749
        %v2797 = vpack.c.b16 %v2752, %v2751
        %v2798 = vpack.c.b16 %v2754, %v2753
        %v2799 = vpack.c.b16 %v2756, %v2755
        %v2800 = vpack.c.b16 %v2758, %v2757
        %v2801 = vpack.c.b16 %v2760, %v2759
        %v2802 = vpack.c.b16 %v2762, %v2761
        %v2803 = vpack.c.b16 %v2764, %v2763
        %v2804 = vpack.c.b16 %v2766, %v2765
        %v2805 = vpack.c.b16 %v2768, %v2767
        %v2806 = vpack.c.b16 %v2770, %v2769
        %v2807 = vpack.c.b16 %v2772, %v2771
        %v2808 = vpack.c.b16 %v2774, %v2773
        %v2809 = vpack.c.b16 %v2776, %v2775
        %v2810 = vpack.c.b16 %v2778, %v2777
        %2843 = vmatprep.subr.bf16.mxu0 0
        %2844 = vmatpush1.bf16.msra.mxu0 %v2779
        %2845 = vmatprep.subr.bf16.mxu0 0
        %2846 = vmatpush1.bf16.msra.mxu0 %v2780
        %2847 = vmatprep.subr.bf16.mxu0 0
        %2848 = vmatpush1.bf16.msra.mxu0 %v2781
        %2849 = vmatprep.subr.bf16.mxu0 0
        %2850 = vmatpush1.bf16.msra.mxu0 %v2782
        %2851 = vmatprep.subr.bf16.mxu0 0
        %2852 = vmatpush1.bf16.msra.mxu0 %v2783
        %2853 = vmatprep.subr.bf16.mxu0 0
        %2854 = vmatpush1.bf16.msra.mxu0 %v2784
        %2855 = vmatprep.subr.bf16.mxu0 0
        %2856 = vmatpush1.bf16.msra.mxu0 %v2785
        %2857 = vmatprep.subr.bf16.mxu0 0
        %2858 = vmatpush1.bf16.msra.mxu0 %v2786
        %2859 = vmatprep.subr.bf16.mxu0 0
        %2860 = vmatpush1.bf16.msra.mxu0 %v2787
        %2861 = vmatprep.subr.bf16.mxu0 0
        %2862 = vmatpush1.bf16.msra.mxu0 %v2788
        %2863 = vmatprep.subr.bf16.mxu0 0
        %2864 = vmatpush1.bf16.msra.mxu0 %v2789
        %2865 = vmatprep.subr.bf16.mxu0 0
        %2866 = vmatpush1.bf16.msra.mxu0 %v2790
        %2867 = vmatprep.subr.bf16.mxu0 0
        %2868 = vmatpush1.bf16.msra.mxu0 %v2791
        %2869 = vmatprep.subr.bf16.mxu0 0
        %2870 = vmatpush1.bf16.msra.mxu0 %v2792
        %2871 = vmatprep.subr.bf16.mxu0 0
        %2872 = vmatpush1.bf16.msra.mxu0 %v2793
        %2873 = vmatprep.subr.bf16.mxu0 0
        %2874 = vmatpush1.bf16.msra.mxu0 %v2794
        %2875 = vmatprep.mubr.bf16.mxu0 %v2583
        %2876 = vmatmul.mubr.bf16.gmra.mrb[0].mxu0 %v2582
        %v2877 = vpop.f32.mrb[0].mxu0
        %v2878 = vadd.f32 %v2650, %v2877
        %v2879 = vpop.f32.mrb[0].mxu0
        %v2880 = vpop.f32.mrb[0].mxu0
        %v2881 = vpop.f32.mrb[0].mxu0
        %2882 = vdwg.mxu0
        %2883 = vmatprep.subr.bf16.mxu0 0
        %2884 = vmatpush1.bf16.msra.mxu0 %v2795
        %2885 = vmatprep.subr.bf16.mxu0 0
        %2886 = vmatpush1.bf16.msra.mxu0 %v2796
        %2887 = vmatprep.subr.bf16.mxu0 0
        %2888 = vmatpush1.bf16.msra.mxu0 %v2797
        %2889 = vmatprep.subr.bf16.mxu0 0
        %2890 = vmatpush1.bf16.msra.mxu0 %v2798
        %2891 = vmatprep.subr.bf16.mxu0 0
        %2892 = vmatpush1.bf16.msra.mxu0 %v2799
        %2893 = vmatprep.subr.bf16.mxu0 0
        %2894 = vmatpush1.bf16.msra.mxu0 %v2800
        %2895 = vmatprep.subr.bf16.mxu0 0
        %2896 = vmatpush1.bf16.msra.mxu0 %v2801
        %2897 = vmatprep.subr.bf16.mxu0 0
        %2898 = vmatpush1.bf16.msra.mxu0 %v2802
        %2899 = vmatprep.subr.bf16.mxu0 0
        %2900 = vmatpush1.bf16.msra.mxu0 %v2803
        %2901 = vmatprep.subr.bf16.mxu0 0
        %2902 = vmatpush1.bf16.msra.mxu0 %v2804
        %2903 = vmatprep.subr.bf16.mxu0 0
        %2904 = vmatpush1.bf16.msra.mxu0 %v2805
        %2905 = vmatprep.subr.bf16.mxu0 0
        %2906 = vmatpush1.bf16.msra.mxu0 %v2806
        %2907 = vmatprep.subr.bf16.mxu0 0
        %2908 = vmatpush1.bf16.msra.mxu0 %v2807
        %2909 = vmatprep.subr.bf16.mxu0 0
        %2910 = vmatpush1.bf16.msra.mxu0 %v2808
        %2911 = vmatprep.subr.bf16.mxu0 0
        %2912 = vmatpush1.bf16.msra.mxu0 %v2809
        %2913 = vmatprep.subr.bf16.mxu0 0
        %2914 = vmatpush1.bf16.msra.mxu0 %v2810
        %2915 = vmatprep.mubr.bf16.mxu0 %v2585
        %2916 = vmatmul.mubr.bf16.gmra.mrb[0].mxu0 %v2584
        %v2917 = vpop.f32.mrb[0].mxu0
        %v2918 = vadd.f32 %v2878, %v2917
        %v2919 = vpop.f32.mrb[0].mxu0
        %v2920 = vpop.f32.mrb[0].mxu0
        %v2921 = vpop.f32.mrb[0].mxu0
        %2922 = vdwg.mxu0
        %v2923 = vmax.f32 %v2918, 0.0
        %v2924 = vpack.c.bf16 %v2923, %v2923
        %v2925 = vld [vmem:[%s8] sm:$0xf]
        %v2926 = vld [vmem:[%s8 + $0x4] sm:$0xf]
        %v2927 = vld [vmem:[%s8 + $0x8] sm:$0xf]
        %v2928 = vld [vmem:[%s8 + $0xc] sm:$0xf]
        %v2929 = vld [vmem:[%s8 + $0x10] sm:$0xf]
        %v2930 = vld [vmem:[%s8 + $0x14] sm:$0xf]
        %v2931 = vld [vmem:[%s8 + $0x18] sm:$0xf]
        %v2932 = vld [vmem:[%s8 + $0x1c] sm:$0xf]
        %v2933 = vld [vmem:[%s8 + $0x20] sm:$0xf]
        %v2934 = vld [vmem:[%s8 + $0x24] sm:$0xf]
        %v2935 = vld [vmem:[%s8 + $0x28] sm:$0xf]
        %v2936 = vld [vmem:[%s8 + $0x2c] sm:$0xf]
        %v2937 = vld [vmem:[%s8 + $0x30] sm:$0xf]
        %v2938 = vld [vmem:[%s8 + $0x34] sm:$0xf]
        %v2939 = vld [vmem:[%s8 + $0x38] sm:$0xf]
        %v2940 = vld [vmem:[%s8 + $0x3c] sm:$0xf]
        %v2941 = vld [vmem:[%s9] sm:$0x1]
        %v2958 = vunpack.c.l.b16 %v2925
        %v2959 = vunpack.c.l.b16 %v2926
        %v2960 = vunpack.c.l.b16 %v2927
        %v2961 = vunpack.c.l.b16 %v2928
        %v2962 = vunpack.c.l.b16 %v2929
        %v2963 = vunpack.c.l.b16 %v2930
        %v2964 = vunpack.c.l.b16 %v2931
        %v2965 = vunpack.c.l.b16 %v2932
        %v2966 = vunpack.c.l.b16 %v2933
        %v2967 = vunpack.c.l.b16 %v2934
        %v2968 = vunpack.c.l.b16 %v2935
        %v2969 = vunpack.c.l.b16 %v2936
        %v2970 = vunpack.c.l.b16 %v2937
        %v2971 = vunpack.c.l.b16 %v2938
        %v2972 = vunpack.c.l.b16 %v2939
        %v2973 = vunpack.c.l.b16 %v2940
        %v2974 = vpack.c.b16 %v2959, %v2958
        %v2975 = vpack.c.b16 %v2961, %v2960
        %v2976 = vpack.c.b16 %v2963, %v2962
        %v2977 = vpack.c.b16 %v2965, %v2964
        %v2978 = vpack.c.b16 %v2967, %v2966
        %v2979 = vpack.c.b16 %v2969, %v2968
        %v2980 = vpack.c.b16 %v2971, %v2970
        %v2981 = vpack.c.b16 %v2973, %v2972
        %2990 = vmatprep.subr.bf16.mxu0 0
        %2991 = vmatpush1.bf16.msra.mxu0 %v2974
        %2992 = vmatprep.subr.bf16.mxu0 0
        %2993 = vmatpush1.bf16.msra.mxu0 %v2975
        %2994 = vmatprep.subr.bf16.mxu0 0
        %2995 = vmatpush1.bf16.msra.mxu0 %v2976
        %2996 = vmatprep.subr.bf16.mxu0 0
        %2997 = vmatpush1.bf16.msra.mxu0 %v2977
        %2998 = vmatprep.subr.bf16.mxu0 0
        %2999 = vmatpush1.bf16.msra.mxu0 %v2978
        %3000 = vmatprep.subr.bf16.mxu0 0
        %3001 = vmatpush1.bf16.msra.mxu0 %v2979
        %3002 = vmatprep.subr.bf16.mxu0 0
        %3003 = vmatpush1.bf16.msra.mxu0 %v2980
        %3004 = vmatprep.subr.bf16.mxu0 0
        %3005 = vmatpush1.bf16.msra.mxu0 %v2981
        %3006 = vmatprep.subr.bf16.mxu0 0
        %3007 = vmatpush1.bf16.msra.mxu0 0
        %3008 = vmatprep.subr.bf16.mxu0 0
        %3009 = vmatpush1.bf16.msra.mxu0 0
        %3010 = vmatprep.subr.bf16.mxu0 0
        %3011 = vmatpush1.bf16.msra.mxu0 0
        %3012 = vmatprep.subr.bf16.mxu0 0
        %3013 = vmatpush1.bf16.msra.mxu0 0
        %3014 = vmatprep.subr.bf16.mxu0 0
        %3015 = vmatpush1.bf16.msra.mxu0 0
        %3016 = vmatprep.subr.bf16.mxu0 0
        %3017 = vmatpush1.bf16.msra.mxu0 0
        %3018 = vmatprep.subr.bf16.mxu0 0
        %3019 = vmatpush1.bf16.msra.mxu0 0
        %3020 = vmatprep.subr.bf16.mxu0 0
        %3021 = vmatpush1.bf16.msra.mxu0 0
        %3022 = vmatprep.mubr.bf16.mxu0 0
        %3023 = vmatmul.mubr.bf16.gmra.mrb[0].mxu0 %v2924
        %v3024 = vpop.f32.mrb[0].mxu0
        %v3025 = vadd.f32 %v2941, %v3024
        %v3026 = vpop.f32.mrb[0].mxu0
        %v3027 = vpop.f32.mrb[0].mxu0
        %v3028 = vpop.f32.mrb[0].mxu0
        %3029 = vdwg.mxu0
        %v3030 = vmul.f32 %v3025, %v3025
        %vm3031 = vcmask 516096
        %v3032 = vsel %vm3031, %v3030, 0.0
        %3033 = vadd.xlane.f32.xlu0 %v3032
        %v3034 = vpop.xlane.xlu0 %3033
        %v3035 = vmax.f32 %v3034, 1e-24
        %v3036 = vrsqrt.pop %v3035
        %v3037 = vmul.f32 %v3025, %v3036
        %3038 = vst.msk [vmem:[%s352] sm:$0x1] %vm3031, %v3037
        %s3039 = sand.u32 %s248, 1
        %s3040 = scalar_lea.sflag [#allocation5], %s3039
        %s3041 = sand.u32 %s248, 1
        %s3042 = scalar_lea.vmem [#allocation4], %s3041
        // Predicated region
        $region61: #{custom_cnn_minidrop_forward.1} parent=59 // pred_check
          %p3043 = pneg %p258
        $region62: #{custom_cnn_minidrop_forward.1} parent=59 // pred_check_branch
          %3045 = sbr.rel (%p3043) target = $region64
        $region63: #{custom_cnn_minidrop_forward.1} parent=59 // pred_region
          %s3047 = ssub.s32 16, 16
          %3048 = vsyncadd %s3040, %s3047
          %s3049 = smul.addr %s25, 16
          %s3050 = scalar_lea.hbm %s10, %s3049
          %s3052 = sshll.u32 %s3042, 4
          %s3053 = int_to_ptr.vmem [resolvable:$true] %s3052
          %3055 = dma.vmem_to_hbm [thread:$0]  %s3053, 16, %s3050, %s3040
        $region64: #{custom_cnn_minidrop_forward.1} parent=59 // pred_fallthru
          _
      $region60: #{custom_cnn_minidrop_forward.1} parent=5 // pred_fallthru
        _
      %p3056 = scmp.le.s32.totalorder 2, %s20
      // Predicated region
      $region65: #{custom_cnn_minidrop_forward.1} parent=5 // pred_check
        %p3057 = pneg %p3056
      $region66: #{custom_cnn_minidrop_forward.1} parent=5 // pred_check_branch
        %3059 = sbr.rel (%p3057) target = $region68
      $region67: #{custom_cnn_minidrop_forward.1} parent=5 // pred_region
        %s3060 = ssub.s32 %s20, 2
        // Predicated region
        $region69: #{custom_cnn_minidrop_forward.1} parent=67 // pred_check
          %p3061 = pneg %p264
        $region70: #{custom_cnn_minidrop_forward.1} parent=67 // pred_check_branch
          %3063 = sbr.rel (%p3061) target = $region72
        $region71: #{custom_cnn_minidrop_forward.1} parent=67 // pred_region
          %s3064 = sand.u32 %s249, 1
          %s3065 = scalar_lea.sflag [#allocation5], %s3064
          %s3066 = sand.u32 %s249, 1
          %s3067 = scalar_lea.vmem [#allocation4], %s3066
          %3068 = dma.done %s3065, 16
        $region72: #{custom_cnn_minidrop_forward.1} parent=67 // pred_fallthru
          _
      $region68: #{custom_cnn_minidrop_forward.1} parent=5 // pred_fallthru
        _
    $region6: #{custom_cnn_minidrop_forward.1} parent=1 // loop_footer
      %s24 = sadd.s32 1, %s20
    $region7: #{custom_cnn_minidrop_forward.1} parent=1 // loop_footer_branch
      %19 = sbr.rel target = $region3
    $region8: #{custom_cnn_minidrop_forward.1} parent=1 // loop_exit
      _
    %3069 = vsyncpa [#allocation5], 1
    %s3070 = scalar_lea.sflag [#allocation5], 1
    %3071 = vsyncpa %s3070, 1

</llo_original>
